<compile_context>
chip_gen: v5e
topology: v5e:2x2
jax: 0.10.0
libtpu: 0.0.40
codegen_flags: <defaults>
</compile_context>

<pallas_src>
import functools

import jax
import jax.numpy as jnp
import numpy as np
from jax.experimental import pallas as pl
from jax.experimental.pallas import tpu as pltpu


# --------------------------------------------------------------------------
# in-kernel helper: zero-padded shift  s[i] = v[i + delta]  along `axis`
# --------------------------------------------------------------------------
def _shift(v, axis, delta):
    if delta == 0:
        return v
    n = v.shape[axis]
    zshape = list(v.shape)
    zshape[axis] = abs(delta)
    zeros = jnp.zeros(zshape, v.dtype)
    if delta > 0:
        kept = jax.lax.slice_in_dim(v, delta, n, axis=axis)
        return jnp.concatenate([kept, zeros], axis=axis)
    kept = jax.lax.slice_in_dim(v, 0, n + delta, axis=axis)
    return jnp.concatenate([zeros, kept], axis=axis)


# --------------------------------------------------------------------------
# Fused RB kernel: one grid step = one RCAU stage for one batch element
# --------------------------------------------------------------------------
def _rb_kernel(D, H, W, C,
               x_ref, wc1_ref, bc1_ref, wc2_ref, bc2_ref,
               w3_ref, b3_ref, caw1_ref, cab1_ref, caw2_ref, cab2_ref,
               o_ref, cur_ref):
    f32, bf16 = jnp.float32, jnp.bfloat16
    DH, WC = D * H, W * C
    s = pl.program_id(1)

    x_orig = x_ref[0]                                    # (DH, WC) f32

    @pl.when(s == 0)                                     # new batch element
    def _():
        cur_ref[...] = x_orig

    prev = cur_ref[...]

    def conv3x3x3_relu(v, w_ref, b_ref):
        """conv3d(relu(v), k=3, pad=1) + bias as ONE MXU matmul (K = 9*WC)."""
        a = jnp.maximum(v, 0.0).reshape(D, H, WC)        # ReLU fused in
        slabs = []
        for kd in range(3):                              # kd/kh shifts in-register;
            ad = _shift(a, 0, kd - 1)                    # kw shift folded in weights
            for kh in range(3):
                adh = _shift(ad, 1, kh - 1)
                slabs.append(adh.reshape(DH, WC).astype(bf16))
        lhs = jnp.concatenate(slabs, axis=1)             # (DH, 9*WC) in-VMEM im2col
        y = jnp.dot(lhs, w_ref[0], preferred_element_type=f32)
        return y + b_ref[0]

    x1 = conv3x3x3_relu(prev, wc1_ref, bc1_ref)
    x2 = conv3x3x3_relu(x1, wc2_ref, bc2_ref)

    # 1x1x1 conv over cat([prev, x1, x2], channels): one K = 3*WC matmul
    lhs3 = jnp.concatenate(
        [prev.astype(bf16), x1.astype(bf16), x2.astype(bf16)], axis=1)
    x3 = jnp.dot(lhs3, w3_ref[0], preferred_element_type=f32) + b3_ref[0]

    # channel attention: z = sigmoid(W2 relu(W1 mean(x3) + b1) + b2)
    m = jnp.mean(x3, axis=0, keepdims=True)              # (1, WC); /W folded in caw1
    h = jnp.sum(m * caw1_ref[0], axis=1, keepdims=True) + cab1_ref[0]
    h = jnp.maximum(h, 0.0)                              # (hid, 1)
    z = jax.nn.sigmoid(jnp.sum(h * caw2_ref[0], axis=0, keepdims=True)
                       + cab2_ref[0])                    # (1, WC)

    new_cur = prev + x_orig + x3 * z                     # RCAU residual + RB `+ x`
    cur_ref[...] = new_cur

    @pl.when(s == pl.num_programs(1) - 1)
    def _():
        o_ref[0] = new_cur


def rb_forward(x2d, sp, D, H, W, C):
    B, DH, WC = x2d.shape
    S = sp["wc1"].shape[0]                               # number of RCAU stages
    hid = sp["caw1"].shape[1]
    kernel = functools.partial(_rb_kernel, D, H, W, C)

    vol = pl.BlockSpec((1, DH, WC), lambda b, s: (b, 0, 0))
    stage = lambda *dims: pl.BlockSpec((1,) + dims, lambda b, s: (s, 0, 0))

    return pl.pallas_call(
        kernel,
        out_shape=jax.ShapeDtypeStruct((B, DH, WC), jnp.float32),
        grid=(B, S),
        in_specs=[
            vol,                                         # x (RB input)
            stage(9 * WC, WC), stage(1, WC),             # conv1 weights / bias
            stage(9 * WC, WC), stage(1, WC),             # conv2 weights / bias
            stage(3 * WC, WC), stage(1, WC),             # conv3 (1x1x1) weights / bias
            stage(hid, WC), stage(hid, 1),               # CA excitation layer 1
            stage(hid, WC), stage(1, WC),                # CA excitation layer 2
        ],
        out_specs=vol,
        scratch_shapes=[pltpu.VMEM((DH, WC), jnp.float32)],   # recurrent activation
        compiler_params=pltpu.CompilerParams(
            dimension_semantics=("parallel", "arbitrary")),
    )(x2d, sp["wc1"], sp["bc1"], sp["wc2"], sp["bc2"],
      sp["w3"], sp["b3"], sp["caw1"], sp["cab1"], sp["caw2"], sp["cab2"])


# --------------------------------------------------------------------------
# one-time parameter prep (hoisted out of the traced forward)
# --------------------------------------------------------------------------
def _conv_weight_stacked(w_pt, W):
    """(Cout,Cin,3,3,3) conv weight -> (9*W*Cin, W*Cout) bf16.

    Row block t = kd*3+kh holds sum_kw kron(shift_W(kw-1), tap[kd,kh,kw]^T):
    the width shift is applied by the matmul itself and the 3 kw taps are
    pre-summed (27 -> 9 effective taps, 3x less weight data / MXU work)."""
    taps = jnp.transpose(w_pt.astype(jnp.float32), (2, 3, 4, 1, 0))  # (3,3,3,Cin,Cout)
    Cin, Cout = taps.shape[3], taps.shape[4]
    blocks = []
    for kd in range(3):
        for kh in range(3):
            m = jnp.zeros((W * Cin, W * Cout), jnp.float32)
            for kw in range(3):
                shift_w = jnp.eye(W, k=-(kw - 1), dtype=jnp.float32)
                m = m + jnp.kron(shift_w, taps[kd, kh, kw])
            blocks.append(m)
    return jnp.concatenate(blocks, axis=0).astype(jnp.bfloat16)


def prepare_rcau_params(p, W):
    C = p["b1"].shape[0]
    WC = W * C
    hid = p["ca_w1"].shape[0]
    eye_w = jnp.eye(W, dtype=jnp.float32)
    tile_row = lambda v: jnp.tile(v.astype(jnp.float32), W).reshape(1, WC)
    blk = lambda a: jnp.kron(eye_w, a)                   # (C,C) -> (WC,WC) block-diag
    w3 = p["w3"].reshape(C, 3 * C).astype(jnp.float32)
    w3_stacked = jnp.concatenate(
        [blk(w3[:, 0:C].T), blk(w3[:, C:2 * C].T), blk(w3[:, 2 * C:3 * C].T)],
        axis=0).astype(jnp.bfloat16)                     # (3*WC, WC)
    return dict(
        wc1=_conv_weight_stacked(p["w1"], W), bc1=tile_row(p["b1"]),
        wc2=_conv_weight_stacked(p["w2"], W), bc2=tile_row(p["b2"]),
        w3=w3_stacked, b3=tile_row(p["b3"]),
        # SE weights tiled to the 128-lane (w,c) layout; the /W of the global
        # mean is folded into caw1 (the in-kernel row mean provides the /(D*H)).
        caw1=jnp.tile(p["ca_w1"].astype(jnp.float32), (1, W)) / W,   # (hid, WC)
        cab1=p["ca_b1"].astype(jnp.float32).reshape(hid, 1),
        caw2=jnp.tile(p["ca_w2"].T.astype(jnp.float32), (1, W)),     # (hid, WC)
        cab2=tile_row(p["ca_b2"]),
    )


def prepare_rb_params(params, W):
    """Stack the 5 per-stage prepped params along a leading stage axis."""
    prepped = [prepare_rcau_params(p, W) for p in params]
    return {k: jnp.stack([pp[k] for pp in prepped]) for k in prepped[0]}


# --------------------------------------------------------------------------
# parameter init (PyTorch-layout weights, as in the nn.Module spec)
# --------------------------------------------------------------------------
def init_rcau_params(key, C, ratio=16, scale=0.05):
    hid = max(C // ratio, 1)
    ks = jax.random.split(key, 10)
    n = lambda k, s: jax.random.normal(k, s, jnp.float32) * scale
    return dict(
        w1=n(ks[0], (C, C, 3, 3, 3)), b1=n(ks[1], (C,)),
        w2=n(ks[2], (C, C, 3, 3, 3)), b2=n(ks[3], (C,)),
        w3=n(ks[4], (C, 3 * C, 1, 1, 1)), b3=n(ks[5], (C,)),
        ca_w1=n(ks[6], (hid, C)), ca_b1=n(ks[7], (hid,)),
        ca_w2=n(ks[8], (C, hid)), ca_b2=n(ks[9], (C,)),
    )


def init_rb_params(key, C, ratio=16):
    return [init_rcau_params(k, C, ratio) for k in jax.random.split(key, 5)]


# --------------------------------------------------------------------------
# pure-JAX f32 reference (mirrors the PyTorch module) for a tolerance check
# --------------------------------------------------------------------------
def _conv3d(x, w, b, pad):
    y = jax.lax.conv_general_dilated(
        x, w, window_strides=(1, 1, 1), padding=[(pad, pad)] * 3,
        dimension_numbers=("NCDHW", "OIDHW", "NCDHW"))
    return y + b.reshape(1, -1, 1, 1, 1)


def rb_reference(x, params):
    def rcau(v, p):
        x1 = _conv3d(jnp.maximum(v, 0.0), p["w1"], p["b1"], 1)
        x2 = _conv3d(jnp.maximum(x1, 0.0), p["w2"], p["b2"], 1)
        xc = jnp.concatenate([v, x1, x2], axis=1)
        x3 = _conv3d(xc, p["w3"], p["b3"], 0)
        y = jnp.mean(x3, axis=(2, 3, 4))                       # squeeze (B, C)
        h = jnp.maximum(y @ p["ca_w1"].T + p["ca_b1"], 0.0)
        z = jax.nn.sigmoid(h @ p["ca_w2"].T + p["ca_b2"])      # (B, C)
        return v + x3 * z[:, :, None, None, None]
    cur = x
    for p in params:
        cur = rcau(cur, p) + x
    return cur


# --------------------------------------------------------------------------
if __name__ == "__main__":
    B, C, D, H, W = 2, 16, 8, 8, 8              # W*C = 128 -> lane-dense layout
    key = jax.random.PRNGKey(0)
    kx, kp = jax.random.split(key)
    x_ncdhw = jax.random.normal(kx, (B, C, D, H, W), jnp.float32)
    params = init_rb_params(kp, C, ratio=16)
    sp = prepare_rb_params(params, W)           # one-time weight prep (hoisted)

    @jax.jit
    def run(x5d, sp):
        b = x5d.shape[0]
        # NCDHW -> lane-dense (B, D*H, W*C) channels-last slabs (free reshape)
        x = jnp.transpose(x5d, (0, 2, 3, 4, 1)).reshape(b, D * H, W * C)
        y = rb_forward(x, sp, D, H, W, C)
        return jnp.transpose(y.reshape(b, D, H, W, C), (0, 4, 1, 2, 3))

    out = jax.block_until_ready(run(x_ncdhw, sp))
    assert out.shape == (B, C, D, H, W)

    # tolerance-checked reference (kernel uses bf16 MXU operands, f32 accum)
    ref = jax.block_until_ready(jax.jit(rb_reference)(x_ncdhw, params))
    np.testing.assert_allclose(np.asarray(out), np.asarray(ref),
                               rtol=5e-2, atol=1.5e-1)
    print("KERNEL_OK")
</pallas_src>

<mosaic_0001>
module attributes {stable_mosaic.version = 11 : i64} {
  func.func @_rb_kernel(%arg0: i32, %arg1: i32, %arg2: memref<1x64x128xf32, #tpu.memory_space<vmem>>, %arg3: memref<1x1152x128xbf16, #tpu.memory_space<vmem>>, %arg4: memref<1x1x128xf32, #tpu.memory_space<vmem>>, %arg5: memref<1x1152x128xbf16, #tpu.memory_space<vmem>>, %arg6: memref<1x1x128xf32, #tpu.memory_space<vmem>>, %arg7: memref<1x384x128xbf16, #tpu.memory_space<vmem>>, %arg8: memref<1x1x128xf32, #tpu.memory_space<vmem>>, %arg9: memref<1x1x128xf32, #tpu.memory_space<vmem>>, %arg10: memref<1x1x1xf32, #tpu.memory_space<vmem>>, %arg11: memref<1x1x128xf32, #tpu.memory_space<vmem>>, %arg12: memref<1x1x128xf32, #tpu.memory_space<vmem>>, %arg13: memref<1x64x128xf32, #tpu.memory_space<vmem>>, %arg14: memref<64x128xf32, #tpu.memory_space<vmem>>) attributes {dimension_semantics = [#tpu.dimension_semantics<parallel>, #tpu.dimension_semantics<arbitrary>], iteration_bounds = array<i64: 2, 5>, scalar_prefetch = 0 : i64, scratch_operands = 1 : i64, tpu.core_type = #tpu.core_type<tc>, window_params = [{transform_indices = @transform_0, window_bounds = array<i64: 1, 64, 128>}, {transform_indices = @transform_1, window_bounds = array<i64: 1, 1152, 128>}, {transform_indices = @transform_2, window_bounds = array<i64: 1, 1, 128>}, {transform_indices = @transform_3, window_bounds = array<i64: 1, 1152, 128>}, {transform_indices = @transform_4, window_bounds = array<i64: 1, 1, 128>}, {transform_indices = @transform_5, window_bounds = array<i64: 1, 384, 128>}, {transform_indices = @transform_6, window_bounds = array<i64: 1, 1, 128>}, {transform_indices = @transform_7, window_bounds = array<i64: 1, 1, 128>}, {transform_indices = @transform_8, window_bounds = array<i64: 1, 1, 1>}, {transform_indices = @transform_9, window_bounds = array<i64: 1, 1, 128>}, {transform_indices = @transform_10, window_bounds = array<i64: 1, 1, 128>}, {transform_indices = @transform_11, window_bounds = array<i64: 1, 64, 128>}]} {
    %c0 = arith.constant 0 : index
    %c0_0 = arith.constant 0 : index
    %c0_1 = arith.constant 0 : index
    %0 = vector.load %arg2[%c0, %c0_0, %c0_1] : memref<1x64x128xf32, #tpu.memory_space<vmem>>, vector<1x64x128xf32>
    %1 = vector.shape_cast %0 : vector<1x64x128xf32> to vector<64x128xf32>
    %c0_i32 = arith.constant 0 : i32
    %2 = arith.cmpi eq, %arg1, %c0_i32 : i32
    %3 = arith.extui %2 : i1 to i32
    %c0_i32_2 = arith.constant 0 : i32
    %4 = arith.cmpi ne, %3, %c0_i32_2 : i32
    scf.if %4 {
      %c0_64 = arith.constant 0 : index
      %c0_65 = arith.constant 0 : index
      %159 = vector.load %arg14[%c0_64, %c0_65] : memref<64x128xf32, #tpu.memory_space<vmem>>, vector<64x128xf32>
      tpu.vector_store %arg14[%c0_64, %c0_65], %1 {strides = array<i32>} : memref<64x128xf32, #tpu.memory_space<vmem>>, vector<64x128xf32>,
    } else {
    }
    %c0_3 = arith.constant 0 : index
    %c0_4 = arith.constant 0 : index
    %5 = vector.load %arg14[%c0_3, %c0_4] : memref<64x128xf32, #tpu.memory_space<vmem>>, vector<64x128xf32>
    %cst = arith.constant 0.000000e+00 : f32
    %6 = vector.broadcast %cst : f32 to vector<64x128xf32>
    %7 = arith.maximumf %5, %6 : vector<64x128xf32>
    %8 = vector.shape_cast %7 : vector<64x128xf32> to vector<8x8x128xf32>
    %cst_5 = arith.constant 0.000000e+00 : f32
    %9 = vector.broadcast %cst_5 : f32 to vector<1x8x128xf32>
    %10 = vector.extract_strided_slice %8 {offsets = [0, 0, 0], sizes = [7, 8, 128], strides = [1, 1, 1]} : vector<8x8x128xf32> to vector<7x8x128xf32>
    %11 = tpu.concatenate %9, %10 in 0 : vector<1x8x128xf32>, vector<7x8x128xf32> -> vector<8x8x128xf32>
    %cst_6 = arith.constant 0.000000e+00 : f32
    %12 = vector.broadcast %cst_6 : f32 to vector<8x1x128xf32>
    %13 = vector.extract_strided_slice %11 {offsets = [0, 0, 0], sizes = [8, 7, 128], strides = [1, 1, 1]} : vector<8x8x128xf32> to vector<8x7x128xf32>
    %14 = tpu.concatenate %12, %13 in 1 : vector<8x1x128xf32>, vector<8x7x128xf32> -> vector<8x8x128xf32>
    %15 = vector.shape_cast %14 : vector<8x8x128xf32> to vector<64x128xf32>
    %16 = arith.truncf %15 : vector<64x128xf32> to vector<64x128xbf16>
    %17 = vector.shape_cast %11 : vector<8x8x128xf32> to vector<64x128xf32>
    %18 = arith.truncf %17 : vector<64x128xf32> to vector<64x128xbf16>
    %cst_7 = arith.constant 0.000000e+00 : f32
    %19 = vector.broadcast %cst_7 : f32 to vector<8x1x128xf32>
    %20 = vector.extract_strided_slice %11 {offsets = [0, 1, 0], sizes = [8, 7, 128], strides = [1, 1, 1]} : vector<8x8x128xf32> to vector<8x7x128xf32>
    %21 = tpu.concatenate %20, %19 in 1 : vector<8x7x128xf32>, vector<8x1x128xf32> -> vector<8x8x128xf32>
    %22 = vector.shape_cast %21 : vector<8x8x128xf32> to vector<64x128xf32>
    %23 = arith.truncf %22 : vector<64x128xf32> to vector<64x128xbf16>
    %cst_8 = arith.constant 0.000000e+00 : f32
    %24 = vector.broadcast %cst_8 : f32 to vector<8x1x128xf32>
    %25 = vector.extract_strided_slice %8 {offsets = [0, 0, 0], sizes = [8, 7, 128], strides = [1, 1, 1]} : vector<8x8x128xf32> to vector<8x7x128xf32>
    %26 = tpu.concatenate %24, %25 in 1 : vector<8x1x128xf32>, vector<8x7x128xf32> -> vector<8x8x128xf32>
    %27 = vector.shape_cast %26 : vector<8x8x128xf32> to vector<64x128xf32>
    %28 = arith.truncf %27 : vector<64x128xf32> to vector<64x128xbf16>
    %29 = vector.shape_cast %8 : vector<8x8x128xf32> to vector<64x128xf32>
    %30 = arith.truncf %29 : vector<64x128xf32> to vector<64x128xbf16>
    %cst_9 = arith.constant 0.000000e+00 : f32
    %31 = vector.broadcast %cst_9 : f32 to vector<8x1x128xf32>
    %32 = vector.extract_strided_slice %8 {offsets = [0, 1, 0], sizes = [8, 7, 128], strides = [1, 1, 1]} : vector<8x8x128xf32> to vector<8x7x128xf32>
    %33 = tpu.concatenate %32, %31 in 1 : vector<8x7x128xf32>, vector<8x1x128xf32> -> vector<8x8x128xf32>
    %34 = vector.shape_cast %33 : vector<8x8x128xf32> to vector<64x128xf32>
    %35 = arith.truncf %34 : vector<64x128xf32> to vector<64x128xbf16>
    %cst_10 = arith.constant 0.000000e+00 : f32
    %36 = vector.broadcast %cst_10 : f32 to vector<1x8x128xf32>
    %37 = vector.extract_strided_slice %8 {offsets = [1, 0, 0], sizes = [7, 8, 128], strides = [1, 1, 1]} : vector<8x8x128xf32> to vector<7x8x128xf32>
    %38 = tpu.concatenate %37, %36 in 0 : vector<7x8x128xf32>, vector<1x8x128xf32> -> vector<8x8x128xf32>
    %cst_11 = arith.constant 0.000000e+00 : f32
    %39 = vector.broadcast %cst_11 : f32 to vector<8x1x128xf32>
    %40 = vector.extract_strided_slice %38 {offsets = [0, 0, 0], sizes = [8, 7, 128], strides = [1, 1, 1]} : vector<8x8x128xf32> to vector<8x7x128xf32>
    %41 = tpu.concatenate %39, %40 in 1 : vector<8x1x128xf32>, vector<8x7x128xf32> -> vector<8x8x128xf32>
    %42 = vector.shape_cast %41 : vector<8x8x128xf32> to vector<64x128xf32>
    %43 = arith.truncf %42 : vector<64x128xf32> to vector<64x128xbf16>
    %44 = vector.shape_cast %38 : vector<8x8x128xf32> to vector<64x128xf32>
    %45 = arith.truncf %44 : vector<64x128xf32> to vector<64x128xbf16>
    %cst_12 = arith.constant 0.000000e+00 : f32
    %46 = vector.broadcast %cst_12 : f32 to vector<8x1x128xf32>
    %47 = vector.extract_strided_slice %38 {offsets = [0, 1, 0], sizes = [8, 7, 128], strides = [1, 1, 1]} : vector<8x8x128xf32> to vector<8x7x128xf32>
    %48 = tpu.concatenate %47, %46 in 1 : vector<8x7x128xf32>, vector<8x1x128xf32> -> vector<8x8x128xf32>
    %49 = vector.shape_cast %48 : vector<8x8x128xf32> to vector<64x128xf32>
    %50 = arith.truncf %49 : vector<64x128xf32> to vector<64x128xbf16>
    %51 = tpu.concatenate %16, %18, %23, %28, %30, %35, %43, %45, %50 in 1 : vector<64x128xbf16>, vector<64x128xbf16>, vector<64x128xbf16>, vector<64x128xbf16>, vector<64x128xbf16>, vector<64x128xbf16>, vector<64x128xbf16>, vector<64x128xbf16>, vector<64x128xbf16> -> vector<64x1152xbf16>
    %c0_13 = arith.constant 0 : index
    %c0_14 = arith.constant 0 : index
    %c0_15 = arith.constant 0 : index
    %52 = vector.load %arg3[%c0_13, %c0_14, %c0_15] : memref<1x1152x128xbf16, #tpu.memory_space<vmem>>, vector<1x1152x128xbf16>
    %53 = vector.shape_cast %52 : vector<1x1152x128xbf16> to vector<1152x128xbf16>
    %cst_16 = arith.constant dense<0.000000e+00> : vector<64x128xf32>
    %54 = tpu.matmul %51, %53, %cst_16 {dimension_numbers = #tpu.dot_dimension_numbers<[1], [0], [0], [1], [0, 0, 1, 1], [], []>} : vector<64x1152xbf16>, vector<1152x128xbf16>, vector<64x128xf32> -> vector<64x128xf32>
    %c0_17 = arith.constant 0 : index
    %c0_18 = arith.constant 0 : index
    %c0_19 = arith.constant 0 : index
    %55 = vector.load %arg4[%c0_17, %c0_18, %c0_19] : memref<1x1x128xf32, #tpu.memory_space<vmem>>, vector<1x1x128xf32>
    %56 = vector.shape_cast %55 : vector<1x1x128xf32> to vector<1x128xf32>
    %57 = vector.broadcast %56 : vector<1x128xf32> to vector<64x128xf32>
    %58 = arith.addf %54, %57 : vector<64x128xf32>
    %cst_20 = arith.constant 0.000000e+00 : f32
    %59 = vector.broadcast %cst_20 : f32 to vector<64x128xf32>
    %60 = arith.maximumf %58, %59 : vector<64x128xf32>
    %61 = vector.shape_cast %60 : vector<64x128xf32> to vector<8x8x128xf32>
    %cst_21 = arith.constant 0.000000e+00 : f32
    %62 = vector.broadcast %cst_21 : f32 to vector<1x8x128xf32>
    %63 = vector.extract_strided_slice %61 {offsets = [0, 0, 0], sizes = [7, 8, 128], strides = [1, 1, 1]} : vector<8x8x128xf32> to vector<7x8x128xf32>
    %64 = tpu.concatenate %62, %63 in 0 : vector<1x8x128xf32>, vector<7x8x128xf32> -> vector<8x8x128xf32>
    %cst_22 = arith.constant 0.000000e+00 : f32
    %65 = vector.broadcast %cst_22 : f32 to vector<8x1x128xf32>
    %66 = vector.extract_strided_slice %64 {offsets = [0, 0, 0], sizes = [8, 7, 128], strides = [1, 1, 1]} : vector<8x8x128xf32> to vector<8x7x128xf32>
    %67 = tpu.concatenate %65, %66 in 1 : vector<8x1x128xf32>, vector<8x7x128xf32> -> vector<8x8x128xf32>
    %68 = vector.shape_cast %67 : vector<8x8x128xf32> to vector<64x128xf32>
    %69 = arith.truncf %68 : vector<64x128xf32> to vector<64x128xbf16>
    %70 = vector.shape_cast %64 : vector<8x8x128xf32> to vector<64x128xf32>
    %71 = arith.truncf %70 : vector<64x128xf32> to vector<64x128xbf16>
    %cst_23 = arith.constant 0.000000e+00 : f32
    %72 = vector.broadcast %cst_23 : f32 to vector<8x1x128xf32>
    %73 = vector.extract_strided_slice %64 {offsets = [0, 1, 0], sizes = [8, 7, 128], strides = [1, 1, 1]} : vector<8x8x128xf32> to vector<8x7x128xf32>
    %74 = tpu.concatenate %73, %72 in 1 : vector<8x7x128xf32>, vector<8x1x128xf32> -> vector<8x8x128xf32>
    %75 = vector.shape_cast %74 : vector<8x8x128xf32> to vector<64x128xf32>
    %76 = arith.truncf %75 : vector<64x128xf32> to vector<64x128xbf16>
    %cst_24 = arith.constant 0.000000e+00 : f32
    %77 = vector.broadcast %cst_24 : f32 to vector<8x1x128xf32>
    %78 = vector.extract_strided_slice %61 {offsets = [0, 0, 0], sizes = [8, 7, 128], strides = [1, 1, 1]} : vector<8x8x128xf32> to vector<8x7x128xf32>
    %79 = tpu.concatenate %77, %78 in 1 : vector<8x1x128xf32>, vector<8x7x128xf32> -> vector<8x8x128xf32>
    %80 = vector.shape_cast %79 : vector<8x8x128xf32> to vector<64x128xf32>
    %81 = arith.truncf %80 : vector<64x128xf32> to vector<64x128xbf16>
    %82 = vector.shape_cast %61 : vector<8x8x128xf32> to vector<64x128xf32>
    %83 = arith.truncf %82 : vector<64x128xf32> to vector<64x128xbf16>
    %cst_25 = arith.constant 0.000000e+00 : f32
    %84 = vector.broadcast %cst_25 : f32 to vector<8x1x128xf32>
    %85 = vector.extract_strided_slice %61 {offsets = [0, 1, 0], sizes = [8, 7, 128], strides = [1, 1, 1]} : vector<8x8x128xf32> to vector<8x7x128xf32>
    %86 = tpu.concatenate %85, %84 in 1 : vector<8x7x128xf32>, vector<8x1x128xf32> -> vector<8x8x128xf32>
    %87 = vector.shape_cast %86 : vector<8x8x128xf32> to vector<64x128xf32>
    %88 = arith.truncf %87 : vector<64x128xf32> to vector<64x128xbf16>
    %cst_26 = arith.constant 0.000000e+00 : f32
    %89 = vector.broadcast %cst_26 : f32 to vector<1x8x128xf32>
    %90 = vector.extract_strided_slice %61 {offsets = [1, 0, 0], sizes = [7, 8, 128], strides = [1, 1, 1]} : vector<8x8x128xf32> to vector<7x8x128xf32>
    %91 = tpu.concatenate %90, %89 in 0 : vector<7x8x128xf32>, vector<1x8x128xf32> -> vector<8x8x128xf32>
    %cst_27 = arith.constant 0.000000e+00 : f32
    %92 = vector.broadcast %cst_27 : f32 to vector<8x1x128xf32>
    %93 = vector.extract_strided_slice %91 {offsets = [0, 0, 0], sizes = [8, 7, 128], strides = [1, 1, 1]} : vector<8x8x128xf32> to vector<8x7x128xf32>
    %94 = tpu.concatenate %92, %93 in 1 : vector<8x1x128xf32>, vector<8x7x128xf32> -> vector<8x8x128xf32>
    %95 = vector.shape_cast %94 : vector<8x8x128xf32> to vector<64x128xf32>
    %96 = arith.truncf %95 : vector<64x128xf32> to vector<64x128xbf16>
    %97 = vector.shape_cast %91 : vector<8x8x128xf32> to vector<64x128xf32>
    %98 = arith.truncf %97 : vector<64x128xf32> to vector<64x128xbf16>
    %cst_28 = arith.constant 0.000000e+00 : f32
    %99 = vector.broadcast %cst_28 : f32 to vector<8x1x128xf32>
    %100 = vector.extract_strided_slice %91 {offsets = [0, 1, 0], sizes = [8, 7, 128], strides = [1, 1, 1]} : vector<8x8x128xf32> to vector<8x7x128xf32>
    %101 = tpu.concatenate %100, %99 in 1 : vector<8x7x128xf32>, vector<8x1x128xf32> -> vector<8x8x128xf32>
    %102 = vector.shape_cast %101 : vector<8x8x128xf32> to vector<64x128xf32>
    %103 = arith.truncf %102 : vector<64x128xf32> to vector<64x128xbf16>
    %104 = tpu.concatenate %69, %71, %76, %81, %83, %88, %96, %98, %103 in 1 : vector<64x128xbf16>, vector<64x128xbf16>, vector<64x128xbf16>, vector<64x128xbf16>, vector<64x128xbf16>, vector<64x128xbf16>, vector<64x128xbf16>, vector<64x128xbf16>, vector<64x128xbf16> -> vector<64x1152xbf16>
    %c0_29 = arith.constant 0 : index
    %c0_30 = arith.constant 0 : index
    %c0_31 = arith.constant 0 : index
    %105 = vector.load %arg5[%c0_29, %c0_30, %c0_31] : memref<1x1152x128xbf16, #tpu.memory_space<vmem>>, vector<1x1152x128xbf16>
    %106 = vector.shape_cast %105 : vector<1x1152x128xbf16> to vector<1152x128xbf16>
    %cst_32 = arith.constant dense<0.000000e+00> : vector<64x128xf32>
    %107 = tpu.matmul %104, %106, %cst_32 {dimension_numbers = #tpu.dot_dimension_numbers<[1], [0], [0], [1], [0, 0, 1, 1], [], []>} : vector<64x1152xbf16>, vector<1152x128xbf16>, vector<64x128xf32> -> vector<64x128xf32>
    %c0_33 = arith.constant 0 : index
    %c0_34 = arith.constant 0 : index
    %c0_35 = arith.constant 0 : index
    %108 = vector.load %arg6[%c0_33, %c0_34, %c0_35] : memref<1x1x128xf32, #tpu.memory_space<vmem>>, vector<1x1x128xf32>
    %109 = vector.shape_cast %108 : vector<1x1x128xf32> to vector<1x128xf32>
    %110 = vector.broadcast %109 : vector<1x128xf32> to vector<64x128xf32>
    %111 = arith.addf %107, %110 : vector<64x128xf32>
    %112 = arith.truncf %5 : vector<64x128xf32> to vector<64x128xbf16>
    %113 = arith.truncf %58 : vector<64x128xf32> to vector<64x128xbf16>
    %114 = arith.truncf %111 : vector<64x128xf32> to vector<64x128xbf16>
    %115 = tpu.concatenate %112, %113, %114 in 1 : vector<64x128xbf16>, vector<64x128xbf16>, vector<64x128xbf16> -> vector<64x384xbf16>
    %c0_36 = arith.constant 0 : index
    %c0_37 = arith.constant 0 : index
    %c0_38 = arith.constant 0 : index
    %116 = vector.load %arg7[%c0_36, %c0_37, %c0_38] : memref<1x384x128xbf16, #tpu.memory_space<vmem>>, vector<1x384x128xbf16>
    %117 = vector.shape_cast %116 : vector<1x384x128xbf16> to vector<384x128xbf16>
    %cst_39 = arith.constant dense<0.000000e+00> : vector<64x128xf32>
    %118 = tpu.matmul %115, %117, %cst_39 {dimension_numbers = #tpu.dot_dimension_numbers<[1], [0], [0], [1], [0, 0, 1, 1], [], []>} : vector<64x384xbf16>, vector<384x128xbf16>, vector<64x128xf32> -> vector<64x128xf32>
    %c0_40 = arith.constant 0 : index
    %c0_41 = arith.constant 0 : index
    %c0_42 = arith.constant 0 : index
    %119 = vector.load %arg8[%c0_40, %c0_41, %c0_42] : memref<1x1x128xf32, #tpu.memory_space<vmem>>, vector<1x1x128xf32>
    %120 = vector.shape_cast %119 : vector<1x1x128xf32> to vector<1x128xf32>
    %121 = vector.broadcast %120 : vector<1x128xf32> to vector<64x128xf32>
    %122 = arith.addf %118, %121 : vector<64x128xf32>
    %cst_43 = arith.constant dense<0.000000e+00> : vector<128xf32>
    %123 = vector.multi_reduction <add>, %122, %cst_43 [0] : vector<64x128xf32> to vector<128xf32>
    %124 = vector.shape_cast %123 : vector<128xf32> to vector<1x128xf32>
    %cst_44 = arith.constant 6.400000e+01 : f32
    %125 = vector.broadcast %cst_44 : f32 to vector<1x128xf32>
    %126 = arith.divf %124, %125 : vector<1x128xf32>
    %c0_45 = arith.constant 0 : index
    %c0_46 = arith.constant 0 : index
    %c0_47 = arith.constant 0 : index
    %127 = vector.load %arg9[%c0_45, %c0_46, %c0_47] : memref<1x1x128xf32, #tpu.memory_space<vmem>>, vector<1x1x128xf32>
    %128 = vector.shape_cast %127 : vector<1x1x128xf32> to vector<1x128xf32>
    %129 = arith.mulf %126, %128 : vector<1x128xf32>
    %cst_48 = arith.constant dense<0.000000e+00> : vector<1xf32>
    %130 = vector.multi_reduction <add>, %129, %cst_48 [1] : vector<1x128xf32> to vector<1xf32>
    %131 = vector.shape_cast %130 : vector<1xf32> to vector<1x1xf32>
    %c0_49 = arith.constant 0 : index
    %c0_50 = arith.constant 0 : index
    %c0_51 = arith.constant 0 : index
    %132 = vector.load %arg10[%c0_49, %c0_50, %c0_51] : memref<1x1x1xf32, #tpu.memory_space<vmem>>, vector<1x1x1xf32>
    %133 = vector.shape_cast %132 : vector<1x1x1xf32> to vector<1x1xf32>
    %134 = arith.addf %131, %133 : vector<1x1xf32>
    %cst_52 = arith.constant 0.000000e+00 : f32
    %135 = vector.broadcast %cst_52 : f32 to vector<1x1xf32>
    %136 = arith.maximumf %134, %135 : vector<1x1xf32>
    %c0_53 = arith.constant 0 : index
    %c0_54 = arith.constant 0 : index
    %c0_55 = arith.constant 0 : index
    %137 = vector.load %arg11[%c0_53, %c0_54, %c0_55] : memref<1x1x128xf32, #tpu.memory_space<vmem>>, vector<1x1x128xf32>
    %138 = vector.shape_cast %137 : vector<1x1x128xf32> to vector<1x128xf32>
    %139 = vector.broadcast %136 : vector<1x1xf32> to vector<1x128xf32>
    %140 = arith.mulf %139, %138 : vector<1x128xf32>
    %cst_56 = arith.constant dense<0.000000e+00> : vector<128xf32>
    %141 = vector.multi_reduction <add>, %140, %cst_56 [0] : vector<1x128xf32> to vector<128xf32>
    %142 = vector.shape_cast %141 : vector<128xf32> to vector<1x128xf32>
    %c0_57 = arith.constant 0 : index
    %c0_58 = arith.constant 0 : index
    %c0_59 = arith.constant 0 : index
    %143 = vector.load %arg12[%c0_57, %c0_58, %c0_59] : memref<1x1x128xf32, #tpu.memory_space<vmem>>, vector<1x1x128xf32>
    %144 = vector.shape_cast %143 : vector<1x1x128xf32> to vector<1x128xf32>
    %145 = arith.addf %142, %144 : vector<1x128xf32>
    %146 = arith.negf %145 : vector<1x128xf32>
    %147 = math.exp %146 : vector<1x128xf32>
    %cst_60 = arith.constant 1.000000e+00 : f32
    %148 = vector.broadcast %cst_60 : f32 to vector<1x128xf32>
    %149 = arith.addf %148, %147 : vector<1x128xf32>
    %150 = arith.divf %148, %149 : vector<1x128xf32>
    %151 = arith.addf %5, %1 : vector<64x128xf32>
    %152 = vector.broadcast %150 : vector<1x128xf32> to vector<64x128xf32>
    %153 = arith.mulf %122, %152 : vector<64x128xf32>
    %154 = arith.addf %151, %153 : vector<64x128xf32>
    %c0_61 = arith.constant 0 : index
    %c0_62 = arith.constant 0 : index
    %155 = vector.load %arg14[%c0_61, %c0_62] : memref<64x128xf32, #tpu.memory_space<vmem>>, vector<64x128xf32>
    tpu.vector_store %arg14[%c0_61, %c0_62], %154 {strides = array<i32>} : memref<64x128xf32, #tpu.memory_space<vmem>>, vector<64x128xf32>,
    %c4_i32 = arith.constant 4 : i32
    %156 = arith.cmpi eq, %arg1, %c4_i32 : i32
    %157 = arith.extui %156 : i1 to i32
    %c0_i32_63 = arith.constant 0 : i32
    %158 = arith.cmpi ne, %157, %c0_i32_63 : i32
    scf.if %158 {
      %c0_64 = arith.constant 0 : index
      %c0_65 = arith.constant 0 : index
      %c0_66 = arith.constant 0 : index
      %159 = vector.load %arg13[%c0_64, %c0_65, %c0_66] : memref<1x64x128xf32, #tpu.memory_space<vmem>>, vector<1x64x128xf32>
      %160 = vector.shape_cast %159 : vector<1x64x128xf32> to vector<64x128xf32>
      %161 = vector.shape_cast %154 : vector<64x128xf32> to vector<1x64x128xf32>
      tpu.vector_store %arg13[%c0_64, %c0_65, %c0_66], %161 {strides = array<i32>} : memref<1x64x128xf32, #tpu.memory_space<vmem>>, vector<1x64x128xf32>,
    } else {
    }
    return
  }
  func.func @transform_0(%arg0: i32, %arg1: i32) -> (i32, i32, i32) {
    %c0_i32 = arith.constant 0 : i32
    %c0_i32_0 = arith.constant 0 : i32
    %c0_i32_1 = arith.constant 0 : i32
    return %arg0, %c0_i32, %c0_i32_0 : i32, i32, i32
  }
  func.func @transform_1(%arg0: i32, %arg1: i32) -> (i32, i32, i32) {
    %c0_i32 = arith.constant 0 : i32
    %c0_i32_0 = arith.constant 0 : i32
    %c0_i32_1 = arith.constant 0 : i32
    return %arg1, %c0_i32, %c0_i32_0 : i32, i32, i32
  }
  func.func @transform_2(%arg0: i32, %arg1: i32) -> (i32, i32, i32) {
    %c0_i32 = arith.constant 0 : i32
    %c0_i32_0 = arith.constant 0 : i32
    %c0_i32_1 = arith.constant 0 : i32
    return %arg1, %c0_i32, %c0_i32_0 : i32, i32, i32
  }
  func.func @transform_3(%arg0: i32, %arg1: i32) -> (i32, i32, i32) {
    %c0_i32 = arith.constant 0 : i32
    %c0_i32_0 = arith.constant 0 : i32
    %c0_i32_1 = arith.constant 0 : i32
    return %arg1, %c0_i32, %c0_i32_0 : i32, i32, i32
  }
  func.func @transform_4(%arg0: i32, %arg1: i32) -> (i32, i32, i32) {
    %c0_i32 = arith.constant 0 : i32
    %c0_i32_0 = arith.constant 0 : i32
    %c0_i32_1 = arith.constant 0 : i32
    return %arg1, %c0_i32, %c0_i32_0 : i32, i32, i32
  }
  func.func @transform_5(%arg0: i32, %arg1: i32) -> (i32, i32, i32) {
    %c0_i32 = arith.constant 0 : i32
    %c0_i32_0 = arith.constant 0 : i32
    %c0_i32_1 = arith.constant 0 : i32
    return %arg1, %c0_i32, %c0_i32_0 : i32, i32, i32
  }
  func.func @transform_6(%arg0: i32, %arg1: i32) -> (i32, i32, i32) {
    %c0_i32 = arith.constant 0 : i32
    %c0_i32_0 = arith.constant 0 : i32
    %c0_i32_1 = arith.constant 0 : i32
    return %arg1, %c0_i32, %c0_i32_0 : i32, i32, i32
  }
  func.func @transform_7(%arg0: i32, %arg1: i32) -> (i32, i32, i32) {
    %c0_i32 = arith.constant 0 : i32
    %c0_i32_0 = arith.constant 0 : i32
    %c0_i32_1 = arith.constant 0 : i32
    return %arg1, %c0_i32, %c0_i32_0 : i32, i32, i32
  }
  func.func @transform_8(%arg0: i32, %arg1: i32) -> (i32, i32, i32) {
    %c0_i32 = arith.constant 0 : i32
    %c0_i32_0 = arith.constant 0 : i32
    %c0_i32_1 = arith.constant 0 : i32
    return %arg1, %c0_i32, %c0_i32_0 : i32, i32, i32
  }
  func.func @transform_9(%arg0: i32, %arg1: i32) -> (i32, i32, i32) {
    %c0_i32 = arith.constant 0 : i32
    %c0_i32_0 = arith.constant 0 : i32
    %c0_i32_1 = arith.constant 0 : i32
    return %arg1, %c0_i32, %c0_i32_0 : i32, i32, i32
  }
  func.func @transform_10(%arg0: i32, %arg1: i32) -> (i32, i32, i32) {
    %c0_i32 = arith.constant 0 : i32
    %c0_i32_0 = arith.constant 0 : i32
    %c0_i32_1 = arith.constant 0 : i32
    return %arg1, %c0_i32, %c0_i32_0 : i32, i32, i32
  }
  func.func @transform_11(%arg0: i32, %arg1: i32) -> (i32, i32, i32) {
    %c0_i32 = arith.constant 0 : i32
    %c0_i32_0 = arith.constant 0 : i32
    %c0_i32_1 = arith.constant 0 : i32
    return %arg0, %c0_i32, %c0_i32_0 : i32, i32, i32
  }
}

</mosaic_0001>

<llo_original>
// kernel: run.1
$region0: #{run.1}
  #allocation0 [shape = 'u32[]', space=smem, size = 0x4, offset = 0x4, fixed_abs, tag = 'smem constant byte address 0x4 - core index']
  #allocation1 [shape = 'u32[72,128]{1,0:T(1,128)}', space=vmem, size = 0x9000, scoped, tag = 'internal scratch']
  #allocation2 [shape = 'f32[64,128]{1,0:T(8,128)}', space=vmem, size = 0x8000, scoped, tag = 'scratch operand']
  %s0 = inlined_call_operand.vmem [shape: f32[2,64,128], index: 0, kind: input, shape index: {}]
  %s1 = inlined_call_operand.hbm [shape: bf16[5,1152,128], index: 1, kind: input, shape index: {}]
  %s2 = inlined_call_operand.hbm [shape: f32[5,1,128], index: 2, kind: input, shape index: {}]
  %s3 = inlined_call_operand.hbm [shape: bf16[5,1152,128], index: 3, kind: input, shape index: {}]
  %s4 = inlined_call_operand.hbm [shape: f32[5,1,128], index: 4, kind: input, shape index: {}]
  %s5 = inlined_call_operand.hbm [shape: bf16[5,384,128], index: 5, kind: input, shape index: {}]
  %s6 = inlined_call_operand.hbm [shape: f32[5,1,128], index: 6, kind: input, shape index: {}]
  %s7 = inlined_call_operand.hbm [shape: f32[5,1,128], index: 7, kind: input, shape index: {}]
  %s8 = inlined_call_operand.vmem [shape: f32[5,1,1], index: 8, kind: input, shape index: {}]
  %s9 = inlined_call_operand.hbm [shape: f32[5,1,128], index: 9, kind: input, shape index: {}]
  %s10 = inlined_call_operand.hbm [shape: f32[5,1,128], index: 10, kind: input, shape index: {}]
  %s11 = inlined_call_operand.vmem [shape: f32[2,64,128], index: 11, kind: output, shape index: {}]
  %s12 = sld [smem:[#allocation0]]
  $region121: #{run.1} parent=0
    _
  %s14 = ssub.s32 1, %s12
  %s15 = scalar_select 0, %s14, %s12
  $region1: #{run.1} parent=0
    #allocation3 [shape = 'u8[589824]{0}', space=vmem, size = 0x90000, scoped, tag = 'input window, operand 1']
    #allocation4 [shape = 's32[2]{0}', space=sflag, size = 0x8, scoped, tag = 'scoped memory for run.1']
    #allocation5 [shape = 'u8[1024]{0}', space=vmem, size = 0x400, scoped, tag = 'input window, operand 2']
    #allocation6 [shape = 's32[2]{0}', space=sflag, size = 0x8, scoped, tag = 'scoped memory for run.1']
    #allocation7 [shape = 'u8[589824]{0}', space=vmem, size = 0x90000, scoped, tag = 'input window, operand 3']
    #allocation8 [shape = 'u8[1024]{0}', space=vmem, size = 0x400, scoped, tag = 'input window, operand 4']
    #allocation9 [shape = 's32[2]{0}', space=sflag, size = 0x8, scoped, tag = 'scoped memory for run.1']
    #allocation10 [shape = 'u8[196608]{0}', space=vmem, size = 0x30000, scoped, tag = 'input window, operand 5']
    #allocation11 [shape = 'u8[1024]{0}', space=vmem, size = 0x400, scoped, tag = 'input window, operand 6']
    #allocation12 [shape = 's32[2]{0}', space=sflag, size = 0x8, scoped, tag = 'scoped memory for run.1']
    #allocation13 [shape = 'u8[1024]{0}', space=vmem, size = 0x400, scoped, tag = 'input window, operand 7']
    #allocation14 [shape = 'u8[1024]{0}', space=vmem, size = 0x400, scoped, tag = 'input window, operand 9']
    #allocation15 [shape = 's32[2]{0}', space=sflag, size = 0x8, scoped, tag = 'scoped memory for run.1']
    #allocation16 [shape = 'u8[1024]{0}', space=vmem, size = 0x400, scoped, tag = 'input window, operand 10']
    %16 = vsyncpa [#allocation4], 0
    %s17 = scalar_lea.sflag [#allocation4], 1
    %18 = vsyncpa %s17, 0
    %19 = vsyncpa [#allocation6], 0
    %s20 = scalar_lea.sflag [#allocation6], 1
    %21 = vsyncpa %s20, 0
    %22 = vsyncpa [#allocation9], 0
    %s23 = scalar_lea.sflag [#allocation9], 1
    %24 = vsyncpa %s23, 0
    %25 = vsyncpa [#allocation12], 0
    %s26 = scalar_lea.sflag [#allocation12], 1
    %27 = vsyncpa %s26, 0
    %28 = vsyncpa [#allocation15], 0
    %s29 = scalar_lea.sflag [#allocation15], 1
    %30 = vsyncpa %s29, 0
    loop: start=0, step=1, limit=12
    $region2: #{run.1} parent=1 // loop_pre_header
      _
    $region3: #{run.1} parent=1 // loop_header
      %s32 = sphi 0, %s36
      %p33 = scmp.ge.s32.totalorder %s32, 12
      %s39 = sphi 0, %s51
      %s40 = sphi 0, %s47
      %s41 = sphi 0, %s39
      %s42 = sphi 0, %s40
      %s43 = sphi 0, %s41
      %s44 = sphi 0, %s42
      %s54 = sphi 0, %s56
      %s57 = sphi 0, %s54
      %s58 = sphi 0, %s57
      %s74 = sphi 0, %s58
      %s80 = sphi 0, %s82
      %s83 = sphi 0, %s80
      %s84 = sphi 0, %s83
      %s100 = sphi 0, %s84
      %s106 = sphi 0, %s108
      %s109 = sphi 0, %s106
      %s110 = sphi 0, %s109
      %s126 = sphi 0, %s110
      %s132 = sphi 0, %s134
      %s135 = sphi 0, %s132
      %s136 = sphi 0, %s135
      %s152 = sphi 0, %s136
      %s158 = sphi 0, %s160
      %s161 = sphi 0, %s158
      %s162 = sphi 0, %s161
      %s178 = sphi 0, %s162
      %s184 = sphi 0, %s186
      %s187 = sphi 0, %s184
      %s188 = sphi 0, %s187
      %s204 = sphi 0, %s188
      %s210 = sphi 0, %s212
      %s213 = sphi 0, %s210
      %s214 = sphi 0, %s213
      %s230 = sphi 0, %s214
      %s236 = sphi 0, %s238
      %s239 = sphi 0, %s236
      %s240 = sphi 0, %s239
      %s256 = sphi 0, %s240
      %s262 = sphi 0, %s264
      %s265 = sphi 0, %s262
      %s266 = sphi 0, %s265
      %s282 = sphi 0, %s266
      %s288 = sphi 0, %s290
      %s291 = sphi 0, %s288
      %s292 = sphi 0, %s291
      %s308 = sphi 0, %s292
      %s314 = sphi 0, %s316
      %s317 = sphi 0, %s314
      %s318 = sphi 0, %s317
      %s334 = sphi 0, %s318
      %s340 = sphi 0, %s342
      %s343 = sphi 0, %s340
      %s344 = sphi 0, %s343
      %s360 = sphi 0, %s344
    $region4: #{run.1} parent=1 // loop_header_branch
      %35 = sbr.rel (%p33) target = $region8
    $region5: #{run.1} parent=1 // loop_body
      %s37 = ssub.s32 %s32, 1
      %s38 = ssub.s32 %s32, 2
      %s45 = sadd.s32 1, %s40
      %p46 = scmp.ge.s32.totalorder %s45, 5
      %s47 = scalar_select %p46, 0, %s45
      %s48 = sadd.s32 1, %s39
      %s49 = scalar_select %p46, %s48, %s39
      %p50 = scmp.ge.s32.totalorder %s49, 2
      %s51 = scalar_select %p50, 0, %s49
      %s52 = ssub.s32 %s39, %s51
      %p53 = scmp.eq.s32.totalorder %s52, 0
      %s55 = sadd.s32 %s54, 1
      %s56 = scalar_select %p53, %s54, %s55
      %p59 = pneg %p53
      %p60 = scmp.eq.s32.totalorder %s32, 9
      %p61 = por %p59, %p60
      %p62 = scmp.ne.s32.totalorder %s54, %s57
      %p63 = scmp.eq.s32.totalorder %s32, 0
      %p64 = por %p62, %p63
      %p65 = scmp.ne.s32.totalorder %s54, %s57
      %p66 = scmp.eq.s32.totalorder %s37, 9
      %p67 = por %p65, %p66
      %p68 = scmp.ne.s32.totalorder %s57, %s58
      %p69 = scmp.eq.s32.totalorder %s37, 0
      %p70 = por %p68, %p69
      %p71 = scmp.ne.s32.totalorder %s57, %s58
      %p72 = scmp.eq.s32.totalorder %s38, 9
      %p73 = por %p71, %p72
      %p75 = scmp.ne.s32.totalorder %s58, %s74
      %p76 = scmp.eq.s32.totalorder %s38, 0
      %p77 = por %p75, %p76
      %s78 = ssub.s32 %s40, %s47
      %p79 = scmp.eq.s32.totalorder %s78, 0
      %s81 = sadd.s32 %s80, 1
      %s82 = scalar_select %p79, %s80, %s81
      %p85 = pneg %p79
      %p86 = scmp.eq.s32.totalorder %s32, 9
      %p87 = por %p85, %p86
      %p88 = scmp.ne.s32.totalorder %s80, %s83
      %p89 = scmp.eq.s32.totalorder %s32, 0
      %p90 = por %p88, %p89
      %p91 = scmp.ne.s32.totalorder %s80, %s83
      %p92 = scmp.eq.s32.totalorder %s37, 9
      %p93 = por %p91, %p92
      %p94 = scmp.ne.s32.totalorder %s83, %s84
      %p95 = scmp.eq.s32.totalorder %s37, 0
      %p96 = por %p94, %p95
      %p97 = scmp.ne.s32.totalorder %s83, %s84
      %p98 = scmp.eq.s32.totalorder %s38, 9
      %p99 = por %p97, %p98
      %p101 = scmp.ne.s32.totalorder %s84, %s100
      %p102 = scmp.eq.s32.totalorder %s38, 0
      %p103 = por %p101, %p102
      %s104 = ssub.s32 %s40, %s47
      %p105 = scmp.eq.s32.totalorder %s104, 0
      %s107 = sadd.s32 %s106, 1
      %s108 = scalar_select %p105, %s106, %s107
      %p111 = pneg %p105
      %p112 = scmp.eq.s32.totalorder %s32, 9
      %p113 = por %p111, %p112
      %p114 = scmp.ne.s32.totalorder %s106, %s109
      %p115 = scmp.eq.s32.totalorder %s32, 0
      %p116 = por %p114, %p115
      %p117 = scmp.ne.s32.totalorder %s106, %s109
      %p118 = scmp.eq.s32.totalorder %s37, 9
      %p119 = por %p117, %p118
      %p120 = scmp.ne.s32.totalorder %s109, %s110
      %p121 = scmp.eq.s32.totalorder %s37, 0
      %p122 = por %p120, %p121
      %p123 = scmp.ne.s32.totalorder %s109, %s110
      %p124 = scmp.eq.s32.totalorder %s38, 9
      %p125 = por %p123, %p124
      %p127 = scmp.ne.s32.totalorder %s110, %s126
      %p128 = scmp.eq.s32.totalorder %s38, 0
      %p129 = por %p127, %p128
      %s130 = ssub.s32 %s40, %s47
      %p131 = scmp.eq.s32.totalorder %s130, 0
      %s133 = sadd.s32 %s132, 1
      %s134 = scalar_select %p131, %s132, %s133
      %p137 = pneg %p131
      %p138 = scmp.eq.s32.totalorder %s32, 9
      %p139 = por %p137, %p138
      %p140 = scmp.ne.s32.totalorder %s132, %s135
      %p141 = scmp.eq.s32.totalorder %s32, 0
      %p142 = por %p140, %p141
      %p143 = scmp.ne.s32.totalorder %s132, %s135
      %p144 = scmp.eq.s32.totalorder %s37, 9
      %p145 = por %p143, %p144
      %p146 = scmp.ne.s32.totalorder %s135, %s136
      %p147 = scmp.eq.s32.totalorder %s37, 0
      %p148 = por %p146, %p147
      %p149 = scmp.ne.s32.totalorder %s135, %s136
      %p150 = scmp.eq.s32.totalorder %s38, 9
      %p151 = por %p149, %p150
      %p153 = scmp.ne.s32.totalorder %s136, %s152
      %p154 = scmp.eq.s32.totalorder %s38, 0
      %p155 = por %p153, %p154
      %s156 = ssub.s32 %s40, %s47
      %p157 = scmp.eq.s32.totalorder %s156, 0
      %s159 = sadd.s32 %s158, 1
      %s160 = scalar_select %p157, %s158, %s159
      %p163 = pneg %p157
      %p164 = scmp.eq.s32.totalorder %s32, 9
      %p165 = por %p163, %p164
      %p166 = scmp.ne.s32.totalorder %s158, %s161
      %p167 = scmp.eq.s32.totalorder %s32, 0
      %p168 = por %p166, %p167
      %p169 = scmp.ne.s32.totalorder %s158, %s161
      %p170 = scmp.eq.s32.totalorder %s37, 9
      %p171 = por %p169, %p170
      %p172 = scmp.ne.s32.totalorder %s161, %s162
      %p173 = scmp.eq.s32.totalorder %s37, 0
      %p174 = por %p172, %p173
      %p175 = scmp.ne.s32.totalorder %s161, %s162
      %p176 = scmp.eq.s32.totalorder %s38, 9
      %p177 = por %p175, %p176
      %p179 = scmp.ne.s32.totalorder %s162, %s178
      %p180 = scmp.eq.s32.totalorder %s38, 0
      %p181 = por %p179, %p180
      %s182 = ssub.s32 %s40, %s47
      %p183 = scmp.eq.s32.totalorder %s182, 0
      %s185 = sadd.s32 %s184, 1
      %s186 = scalar_select %p183, %s184, %s185
      %p189 = pneg %p183
      %p190 = scmp.eq.s32.totalorder %s32, 9
      %p191 = por %p189, %p190
      %p192 = scmp.ne.s32.totalorder %s184, %s187
      %p193 = scmp.eq.s32.totalorder %s32, 0
      %p194 = por %p192, %p193
      %p195 = scmp.ne.s32.totalorder %s184, %s187
      %p196 = scmp.eq.s32.totalorder %s37, 9
      %p197 = por %p195, %p196
      %p198 = scmp.ne.s32.totalorder %s187, %s188
      %p199 = scmp.eq.s32.totalorder %s37, 0
      %p200 = por %p198, %p199
      %p201 = scmp.ne.s32.totalorder %s187, %s188
      %p202 = scmp.eq.s32.totalorder %s38, 9
      %p203 = por %p201, %p202
      %p205 = scmp.ne.s32.totalorder %s188, %s204
      %p206 = scmp.eq.s32.totalorder %s38, 0
      %p207 = por %p205, %p206
      %s208 = ssub.s32 %s40, %s47
      %p209 = scmp.eq.s32.totalorder %s208, 0
      %s211 = sadd.s32 %s210, 1
      %s212 = scalar_select %p209, %s210, %s211
      %p215 = pneg %p209
      %p216 = scmp.eq.s32.totalorder %s32, 9
      %p217 = por %p215, %p216
      %p218 = scmp.ne.s32.totalorder %s210, %s213
      %p219 = scmp.eq.s32.totalorder %s32, 0
      %p220 = por %p218, %p219
      %p221 = scmp.ne.s32.totalorder %s210, %s213
      %p222 = scmp.eq.s32.totalorder %s37, 9
      %p223 = por %p221, %p222
      %p224 = scmp.ne.s32.totalorder %s213, %s214
      %p225 = scmp.eq.s32.totalorder %s37, 0
      %p226 = por %p224, %p225
      %p227 = scmp.ne.s32.totalorder %s213, %s214
      %p228 = scmp.eq.s32.totalorder %s38, 9
      %p229 = por %p227, %p228
      %p231 = scmp.ne.s32.totalorder %s214, %s230
      %p232 = scmp.eq.s32.totalorder %s38, 0
      %p233 = por %p231, %p232
      %s234 = ssub.s32 %s40, %s47
      %p235 = scmp.eq.s32.totalorder %s234, 0
      %s237 = sadd.s32 %s236, 1
      %s238 = scalar_select %p235, %s236, %s237
      %p241 = pneg %p235
      %p242 = scmp.eq.s32.totalorder %s32, 9
      %p243 = por %p241, %p242
      %p244 = scmp.ne.s32.totalorder %s236, %s239
      %p245 = scmp.eq.s32.totalorder %s32, 0
      %p246 = por %p244, %p245
      %p247 = scmp.ne.s32.totalorder %s236, %s239
      %p248 = scmp.eq.s32.totalorder %s37, 9
      %p249 = por %p247, %p248
      %p250 = scmp.ne.s32.totalorder %s239, %s240
      %p251 = scmp.eq.s32.totalorder %s37, 0
      %p252 = por %p250, %p251
      %p253 = scmp.ne.s32.totalorder %s239, %s240
      %p254 = scmp.eq.s32.totalorder %s38, 9
      %p255 = por %p253, %p254
      %p257 = scmp.ne.s32.totalorder %s240, %s256
      %p258 = scmp.eq.s32.totalorder %s38, 0
      %p259 = por %p257, %p258
      %s260 = ssub.s32 %s40, %s47
      %p261 = scmp.eq.s32.totalorder %s260, 0
      %s263 = sadd.s32 %s262, 1
      %s264 = scalar_select %p261, %s262, %s263
      %p267 = pneg %p261
      %p268 = scmp.eq.s32.totalorder %s32, 9
      %p269 = por %p267, %p268
      %p270 = scmp.ne.s32.totalorder %s262, %s265
      %p271 = scmp.eq.s32.totalorder %s32, 0
      %p272 = por %p270, %p271
      %p273 = scmp.ne.s32.totalorder %s262, %s265
      %p274 = scmp.eq.s32.totalorder %s37, 9
      %p275 = por %p273, %p274
      %p276 = scmp.ne.s32.totalorder %s265, %s266
      %p277 = scmp.eq.s32.totalorder %s37, 0
      %p278 = por %p276, %p277
      %p279 = scmp.ne.s32.totalorder %s265, %s266
      %p280 = scmp.eq.s32.totalorder %s38, 9
      %p281 = por %p279, %p280
      %p283 = scmp.ne.s32.totalorder %s266, %s282
      %p284 = scmp.eq.s32.totalorder %s38, 0
      %p285 = por %p283, %p284
      %s286 = ssub.s32 %s40, %s47
      %p287 = scmp.eq.s32.totalorder %s286, 0
      %s289 = sadd.s32 %s288, 1
      %s290 = scalar_select %p287, %s288, %s289
      %p293 = pneg %p287
      %p294 = scmp.eq.s32.totalorder %s32, 9
      %p295 = por %p293, %p294
      %p296 = scmp.ne.s32.totalorder %s288, %s291
      %p297 = scmp.eq.s32.totalorder %s32, 0
      %p298 = por %p296, %p297
      %p299 = scmp.ne.s32.totalorder %s288, %s291
      %p300 = scmp.eq.s32.totalorder %s37, 9
      %p301 = por %p299, %p300
      %p302 = scmp.ne.s32.totalorder %s291, %s292
      %p303 = scmp.eq.s32.totalorder %s37, 0
      %p304 = por %p302, %p303
      %p305 = scmp.ne.s32.totalorder %s291, %s292
      %p306 = scmp.eq.s32.totalorder %s38, 9
      %p307 = por %p305, %p306
      %p309 = scmp.ne.s32.totalorder %s292, %s308
      %p310 = scmp.eq.s32.totalorder %s38, 0
      %p311 = por %p309, %p310
      %s312 = ssub.s32 %s40, %s47
      %p313 = scmp.eq.s32.totalorder %s312, 0
      %s315 = sadd.s32 %s314, 1
      %s316 = scalar_select %p313, %s314, %s315
      %p319 = pneg %p313
      %p320 = scmp.eq.s32.totalorder %s32, 9
      %p321 = por %p319, %p320
      %p322 = scmp.ne.s32.totalorder %s314, %s317
      %p323 = scmp.eq.s32.totalorder %s32, 0
      %p324 = por %p322, %p323
      %p325 = scmp.ne.s32.totalorder %s314, %s317
      %p326 = scmp.eq.s32.totalorder %s37, 9
      %p327 = por %p325, %p326
      %p328 = scmp.ne.s32.totalorder %s317, %s318
      %p329 = scmp.eq.s32.totalorder %s37, 0
      %p330 = por %p328, %p329
      %p331 = scmp.ne.s32.totalorder %s317, %s318
      %p332 = scmp.eq.s32.totalorder %s38, 9
      %p333 = por %p331, %p332
      %p335 = scmp.ne.s32.totalorder %s318, %s334
      %p336 = scmp.eq.s32.totalorder %s38, 0
      %p337 = por %p335, %p336
      %s338 = ssub.s32 %s39, %s51
      %p339 = scmp.eq.s32.totalorder %s338, 0
      %s341 = sadd.s32 %s340, 1
      %s342 = scalar_select %p339, %s340, %s341
      %p345 = pneg %p339
      %p346 = scmp.eq.s32.totalorder %s32, 9
      %p347 = por %p345, %p346
      %p348 = scmp.ne.s32.totalorder %s340, %s343
      %p349 = scmp.eq.s32.totalorder %s32, 0
      %p350 = por %p348, %p349
      %p351 = scmp.ne.s32.totalorder %s340, %s343
      %p352 = scmp.eq.s32.totalorder %s37, 9
      %p353 = por %p351, %p352
      %p354 = scmp.ne.s32.totalorder %s343, %s344
      %p355 = scmp.eq.s32.totalorder %s37, 0
      %p356 = por %p354, %p355
      %p357 = scmp.ne.s32.totalorder %s343, %s344
      %p358 = scmp.eq.s32.totalorder %s38, 9
      %p359 = por %p357, %p358
      %p361 = scmp.ne.s32.totalorder %s344, %s360
      %p362 = scmp.eq.s32.totalorder %s38, 0
      %p363 = por %p361, %p362
      %p364 = scmp.le.s32.totalorder 1, %s32
      %p365 = scmp.lt.s32.totalorder %s32, 11
      %p366 = pnand %p364, %p365
      %p367 = pneg %p366
      // Predicated region
      $region9: #{run.1} parent=5 // pred_check
        _
      $region10: #{run.1} parent=5 // pred_check_branch
        %369 = sbr.rel (%p366) target = $region12
      $region11: #{run.1} parent=5 // pred_region
        %s370 = ssub.s32 %s32, 1
      $region12: #{run.1} parent=5 // pred_fallthru
        _
      %p371 = scmp.lt.s32.totalorder %s32, 10
      // Predicated region
      $region13: #{run.1} parent=5 // pred_check
        %p372 = pneg %p371
      $region14: #{run.1} parent=5 // pred_check_branch
        %374 = sbr.rel (%p372) target = $region16
      $region15: #{run.1} parent=5 // pred_region
        // Predicated region
        $region17: #{run.1} parent=15 // pred_check
          %p375 = pneg %p64
        $region18: #{run.1} parent=15 // pred_check_branch
          %377 = sbr.rel (%p375) target = $region20
        $region19: #{run.1} parent=15 // pred_region
          %p378 = scmp.lt.s32.totalorder %s39, 1
          %s379 = scalar_select %p378, %s39, 1
          %s380 = smul.addr %s379, 8
          %s381 = smul.addr %s380, 8
          %s382 = scalar_lea.vmem %s0, %s381
        $region20: #{run.1} parent=15 // pred_fallthru
          _
        // Predicated region
        $region21: #{run.1} parent=15 // pred_check
          %p383 = pneg %p90
        $region22: #{run.1} parent=15 // pred_check_branch
          %385 = sbr.rel (%p383) target = $region24
        $region23: #{run.1} parent=15 // pred_region
          %s386 = sand.u32 %s80, 1
          %s387 = scalar_lea.sflag [#allocation4], %s386
          %s388 = sand.u32 %s80, 1
          %s389 = smul.addr %s388, 576
          %s390 = scalar_lea.vmem [#allocation3], %s389
          %392 = vsyncadd %s387, 0
          %s393 = smul.addr %s40, 144
          %s394 = smul.addr %s393, 4
          %s395 = scalar_lea.hbm %s1, %s394
          %s396 = sshll.u32 %s395, 4
          %s397 = int_to_ptr.hbm [resolvable:$true] %s396
          %s398 = sshll.u32 %s390, 4
          %s399 = int_to_ptr.vmem [resolvable:$true] %s398
          %404 = dma.hbm_to_vmem [thread:$0]  %s397, 9216, %s399, %s387, 64, 64, 4
        $region24: #{run.1} parent=15 // pred_fallthru
          _
        // Predicated region
        $region25: #{run.1} parent=15 // pred_check
          %p405 = pneg %p116
        $region26: #{run.1} parent=15 // pred_check_branch
          %407 = sbr.rel (%p405) target = $region28
        $region27: #{run.1} parent=15 // pred_region
          %s408 = sand.u32 %s32, 1
          %s409 = scalar_lea.sflag [#allocation6], %s408
          %s410 = sand.u32 %s106, 1
          %s411 = scalar_lea.vmem [#allocation5], %s410
          %413 = vsyncadd %s409, 0
          %s414 = scalar_lea.hbm %s2, %s40
          %s416 = sshll.u32 %s414, 4
          %s417 = int_to_ptr.hbm [resolvable:$true] %s416
          %s418 = sshll.u32 %s411, 4
          %s419 = int_to_ptr.vmem [resolvable:$true] %s418
          %421 = dma.hbm_to_vmem [thread:$0]  %s417, 16, %s419, %s409
        $region28: #{run.1} parent=15 // pred_fallthru
          _
        // Predicated region
        $region29: #{run.1} parent=15 // pred_check
          %p422 = pneg %p142
        $region30: #{run.1} parent=15 // pred_check_branch
          %424 = sbr.rel (%p422) target = $region32
        $region31: #{run.1} parent=15 // pred_region
          %s425 = sand.u32 %s32, 1
          %s426 = scalar_lea.sflag [#allocation6], %s425
          %s427 = sand.u32 %s132, 1
          %s428 = smul.addr %s427, 576
          %s429 = scalar_lea.vmem [#allocation7], %s428
          %431 = vsyncadd %s426, 0
          %s432 = smul.addr %s40, 144
          %s433 = smul.addr %s432, 4
          %s434 = scalar_lea.hbm %s3, %s433
          %s435 = sshll.u32 %s434, 4
          %s436 = int_to_ptr.hbm [resolvable:$true] %s435
          %s437 = sshll.u32 %s429, 4
          %s438 = int_to_ptr.vmem [resolvable:$true] %s437
          %443 = dma.hbm_to_vmem [thread:$0]  %s436, 9216, %s438, %s426, 64, 64, 4
        $region32: #{run.1} parent=15 // pred_fallthru
          _
        // Predicated region
        $region33: #{run.1} parent=15 // pred_check
          %p444 = pneg %p168
        $region34: #{run.1} parent=15 // pred_check_branch
          %446 = sbr.rel (%p444) target = $region36
        $region35: #{run.1} parent=15 // pred_region
          %s447 = sand.u32 %s32, 1
          %s448 = scalar_lea.sflag [#allocation9], %s447
          %s449 = sand.u32 %s158, 1
          %s450 = scalar_lea.vmem [#allocation8], %s449
          %452 = vsyncadd %s448, 0
          %s453 = scalar_lea.hbm %s4, %s40
          %s455 = sshll.u32 %s453, 4
          %s456 = int_to_ptr.hbm [resolvable:$true] %s455
          %s457 = sshll.u32 %s450, 4
          %s458 = int_to_ptr.vmem [resolvable:$true] %s457
          %460 = dma.hbm_to_vmem [thread:$0]  %s456, 16, %s458, %s448
        $region36: #{run.1} parent=15 // pred_fallthru
          _
        // Predicated region
        $region37: #{run.1} parent=15 // pred_check
          %p461 = pneg %p194
        $region38: #{run.1} parent=15 // pred_check_branch
          %463 = sbr.rel (%p461) target = $region40
        $region39: #{run.1} parent=15 // pred_region
          %s464 = sand.u32 %s32, 1
          %s465 = scalar_lea.sflag [#allocation9], %s464
          %s466 = sand.u32 %s184, 1
          %s467 = smul.addr %s466, 192
          %s468 = scalar_lea.vmem [#allocation10], %s467
          %470 = vsyncadd %s465, 0
          %s471 = smul.addr %s40, 48
          %s472 = smul.addr %s471, 4
          %s473 = scalar_lea.hbm %s5, %s472
          %s474 = sshll.u32 %s473, 4
          %s475 = int_to_ptr.hbm [resolvable:$true] %s474
          %s476 = sshll.u32 %s468, 4
          %s477 = int_to_ptr.vmem [resolvable:$true] %s476
          %482 = dma.hbm_to_vmem [thread:$0]  %s475, 3072, %s477, %s465, 64, 64, 4
        $region40: #{run.1} parent=15 // pred_fallthru
          _
        // Predicated region
        $region41: #{run.1} parent=15 // pred_check
          %p483 = pneg %p220
        $region42: #{run.1} parent=15 // pred_check_branch
          %485 = sbr.rel (%p483) target = $region44
        $region43: #{run.1} parent=15 // pred_region
          %s486 = sand.u32 %s32, 1
          %s487 = scalar_lea.sflag [#allocation12], %s486
          %s488 = sand.u32 %s210, 1
          %s489 = scalar_lea.vmem [#allocation11], %s488
          %491 = vsyncadd %s487, 0
          %s492 = scalar_lea.hbm %s6, %s40
          %s494 = sshll.u32 %s492, 4
          %s495 = int_to_ptr.hbm [resolvable:$true] %s494
          %s496 = sshll.u32 %s489, 4
          %s497 = int_to_ptr.vmem [resolvable:$true] %s496
          %499 = dma.hbm_to_vmem [thread:$0]  %s495, 16, %s497, %s487
        $region44: #{run.1} parent=15 // pred_fallthru
          _
        // Predicated region
        $region45: #{run.1} parent=15 // pred_check
          %p500 = pneg %p246
        $region46: #{run.1} parent=15 // pred_check_branch
          %502 = sbr.rel (%p500) target = $region48
        $region47: #{run.1} parent=15 // pred_region
          %s503 = sand.u32 %s32, 1
          %s504 = scalar_lea.sflag [#allocation12], %s503
          %s505 = sand.u32 %s236, 1
          %s506 = scalar_lea.vmem [#allocation13], %s505
          %508 = vsyncadd %s504, 0
          %s509 = scalar_lea.hbm %s7, %s40
          %s511 = sshll.u32 %s509, 4
          %s512 = int_to_ptr.hbm [resolvable:$true] %s511
          %s513 = sshll.u32 %s506, 4
          %s514 = int_to_ptr.vmem [resolvable:$true] %s513
          %516 = dma.hbm_to_vmem [thread:$0]  %s512, 16, %s514, %s504
        $region48: #{run.1} parent=15 // pred_fallthru
          _
        // Predicated region
        $region49: #{run.1} parent=15 // pred_check
          %p517 = pneg %p272
        $region50: #{run.1} parent=15 // pred_check_branch
          %519 = sbr.rel (%p517) target = $region52
        $region51: #{run.1} parent=15 // pred_region
          %p520 = scmp.lt.s32.totalorder %s40, 4
          %s521 = scalar_select %p520, %s40, 4
          %s522 = scalar_lea.vmem %s8, %s521
        $region52: #{run.1} parent=15 // pred_fallthru
          _
        // Predicated region
        $region53: #{run.1} parent=15 // pred_check
          %p523 = pneg %p298
        $region54: #{run.1} parent=15 // pred_check_branch
          %525 = sbr.rel (%p523) target = $region56
        $region55: #{run.1} parent=15 // pred_region
          %s526 = sand.u32 %s32, 1
          %s527 = scalar_lea.sflag [#allocation15], %s526
          %s528 = sand.u32 %s288, 1
          %s529 = scalar_lea.vmem [#allocation14], %s528
          %531 = vsyncadd %s527, 0
          %s532 = scalar_lea.hbm %s9, %s40
          %s534 = sshll.u32 %s532, 4
          %s535 = int_to_ptr.hbm [resolvable:$true] %s534
          %s536 = sshll.u32 %s529, 4
          %s537 = int_to_ptr.vmem [resolvable:$true] %s536
          %539 = dma.hbm_to_vmem [thread:$0]  %s535, 16, %s537, %s527
        $region56: #{run.1} parent=15 // pred_fallthru
          _
        // Predicated region
        $region57: #{run.1} parent=15 // pred_check
          %p540 = pneg %p324
        $region58: #{run.1} parent=15 // pred_check_branch
          %542 = sbr.rel (%p540) target = $region60
        $region59: #{run.1} parent=15 // pred_region
          %s543 = sand.u32 %s32, 1
          %s544 = scalar_lea.sflag [#allocation15], %s543
          %s545 = sand.u32 %s314, 1
          %s546 = scalar_lea.vmem [#allocation16], %s545
          %548 = vsyncadd %s544, 0
          %s549 = scalar_lea.hbm %s10, %s40
          %s551 = sshll.u32 %s549, 4
          %s552 = int_to_ptr.hbm [resolvable:$true] %s551
          %s553 = sshll.u32 %s546, 4
          %s554 = int_to_ptr.vmem [resolvable:$true] %s553
          %556 = dma.hbm_to_vmem [thread:$0]  %s552, 16, %s554, %s544
        $region60: #{run.1} parent=15 // pred_fallthru
          _
      $region16: #{run.1} parent=5 // pred_fallthru
        _
      %p557 = scmp.le.s32.totalorder 1, %s32
      %p558 = scmp.lt.s32.totalorder %s32, 11
      %p559 = pnand %p557, %p558
      %p560 = pneg %p559
      // Predicated region
      $region61: #{run.1} parent=5 // pred_check
        _
      $region62: #{run.1} parent=5 // pred_check_branch
        %562 = sbr.rel (%p559) target = $region64
      $region63: #{run.1} parent=5 // pred_region
        %s563 = ssub.s32 %s32, 1
        %s564 = sand.u32 %s83, 1
        %s565 = scalar_lea.sflag [#allocation4], %s564
        %s566 = sand.u32 %s83, 1
        %s567 = smul.addr %s566, 576
        %s568 = scalar_lea.vmem [#allocation3], %s567
        // Predicated region
        $region65: #{run.1} parent=63 // pred_check
          %p569 = pneg %p96
        $region66: #{run.1} parent=63 // pred_check_branch
          %571 = sbr.rel (%p569) target = $region68
        $region67: #{run.1} parent=63 // pred_region
          %573 = dma.done %s565, 9216
        $region68: #{run.1} parent=63 // pred_fallthru
          _
        %s574 = sand.u32 %s37, 1
        %s575 = scalar_lea.sflag [#allocation6], %s574
        %s576 = sand.u32 %s109, 1
        %s577 = scalar_lea.vmem [#allocation5], %s576
        // Predicated region
        $region69: #{run.1} parent=63 // pred_check
          %p578 = pneg %p122
        $region70: #{run.1} parent=63 // pred_check_branch
          %580 = sbr.rel (%p578) target = $region72
        $region71: #{run.1} parent=63 // pred_region
          %582 = dma.done %s575, 16
        $region72: #{run.1} parent=63 // pred_fallthru
          _
        %s583 = sand.u32 %s37, 1
        %s584 = scalar_lea.sflag [#allocation6], %s583
        %s585 = sand.u32 %s135, 1
        %s586 = smul.addr %s585, 576
        %s587 = scalar_lea.vmem [#allocation7], %s586
        // Predicated region
        $region73: #{run.1} parent=63 // pred_check
          %p588 = pneg %p148
        $region74: #{run.1} parent=63 // pred_check_branch
          %590 = sbr.rel (%p588) target = $region76
        $region75: #{run.1} parent=63 // pred_region
          %592 = dma.done %s584, 9216
        $region76: #{run.1} parent=63 // pred_fallthru
          _
        %s593 = sand.u32 %s37, 1
        %s594 = scalar_lea.sflag [#allocation9], %s593
        %s595 = sand.u32 %s161, 1
        %s596 = scalar_lea.vmem [#allocation8], %s595
        // Predicated region
        $region77: #{run.1} parent=63 // pred_check
          %p597 = pneg %p174
        $region78: #{run.1} parent=63 // pred_check_branch
          %599 = sbr.rel (%p597) target = $region80
        $region79: #{run.1} parent=63 // pred_region
          %601 = dma.done %s594, 16
        $region80: #{run.1} parent=63 // pred_fallthru
          _
        %s602 = sand.u32 %s37, 1
        %s603 = scalar_lea.sflag [#allocation9], %s602
        %s604 = sand.u32 %s187, 1
        %s605 = smul.addr %s604, 192
        %s606 = scalar_lea.vmem [#allocation10], %s605
        // Predicated region
        $region81: #{run.1} parent=63 // pred_check
          %p607 = pneg %p200
        $region82: #{run.1} parent=63 // pred_check_branch
          %609 = sbr.rel (%p607) target = $region84
        $region83: #{run.1} parent=63 // pred_region
          %611 = dma.done %s603, 3072
        $region84: #{run.1} parent=63 // pred_fallthru
          _
        %s612 = sand.u32 %s37, 1
        %s613 = scalar_lea.sflag [#allocation12], %s612
        %s614 = sand.u32 %s213, 1
        %s615 = scalar_lea.vmem [#allocation11], %s614
        // Predicated region
        $region85: #{run.1} parent=63 // pred_check
          %p616 = pneg %p226
        $region86: #{run.1} parent=63 // pred_check_branch
          %618 = sbr.rel (%p616) target = $region88
        $region87: #{run.1} parent=63 // pred_region
          %620 = dma.done %s613, 16
        $region88: #{run.1} parent=63 // pred_fallthru
          _
        %s621 = sand.u32 %s37, 1
        %s622 = scalar_lea.sflag [#allocation12], %s621
        %s623 = sand.u32 %s239, 1
        %s624 = scalar_lea.vmem [#allocation13], %s623
        // Predicated region
        $region89: #{run.1} parent=63 // pred_check
          %p625 = pneg %p252
        $region90: #{run.1} parent=63 // pred_check_branch
          %627 = sbr.rel (%p625) target = $region92
        $region91: #{run.1} parent=63 // pred_region
          %629 = dma.done %s622, 16
        $region92: #{run.1} parent=63 // pred_fallthru
          _
        %s630 = sand.u32 %s37, 1
        %s631 = scalar_lea.sflag [#allocation15], %s630
        %s632 = sand.u32 %s291, 1
        %s633 = scalar_lea.vmem [#allocation14], %s632
        // Predicated region
        $region93: #{run.1} parent=63 // pred_check
          %p634 = pneg %p304
        $region94: #{run.1} parent=63 // pred_check_branch
          %636 = sbr.rel (%p634) target = $region96
        $region95: #{run.1} parent=63 // pred_region
          %638 = dma.done %s631, 16
        $region96: #{run.1} parent=63 // pred_fallthru
          _
        %s639 = sand.u32 %s37, 1
        %s640 = scalar_lea.sflag [#allocation15], %s639
        %s641 = sand.u32 %s317, 1
        %s642 = scalar_lea.vmem [#allocation16], %s641
        // Predicated region
        $region97: #{run.1} parent=63 // pred_check
          %p643 = pneg %p330
        $region98: #{run.1} parent=63 // pred_check_branch
          %645 = sbr.rel (%p643) target = $region100
        $region99: #{run.1} parent=63 // pred_region
          %647 = dma.done %s640, 16
        $region100: #{run.1} parent=63 // pred_fallthru
          _
        %p648 = scmp.lt.s32.totalorder %s41, 1
        %s649 = scalar_select %p648, %s41, 1
        %s650 = smul.addr %s649, 8
        %s651 = smul.addr %s650, 8
        %s652 = scalar_lea.vmem %s0, %s651
        %p653 = pneg %p70
        %p654 = pneg %p67
        %s655 = sand.u32 %s83, 1
        %s656 = scalar_lea.sflag [#allocation4], %s655
        %s657 = sand.u32 %s83, 1
        %s658 = smul.addr %s657, 576
        %s659 = scalar_lea.vmem [#allocation3], %s658
        %p660 = pneg %p96
        %p661 = pneg %p93
        %s662 = sand.u32 %s37, 1
        %s663 = scalar_lea.sflag [#allocation6], %s662
        %s664 = sand.u32 %s109, 1
        %s665 = scalar_lea.vmem [#allocation5], %s664
        %p666 = pneg %p122
        %p667 = pneg %p119
        %s668 = sand.u32 %s37, 1
        %s669 = scalar_lea.sflag [#allocation6], %s668
        %s670 = sand.u32 %s135, 1
        %s671 = smul.addr %s670, 576
        %s672 = scalar_lea.vmem [#allocation7], %s671
        %p673 = pneg %p148
        %p674 = pneg %p145
        %s675 = sand.u32 %s37, 1
        %s676 = scalar_lea.sflag [#allocation9], %s675
        %s677 = sand.u32 %s161, 1
        %s678 = scalar_lea.vmem [#allocation8], %s677
        %p679 = pneg %p174
        %p680 = pneg %p171
        %s681 = sand.u32 %s37, 1
        %s682 = scalar_lea.sflag [#allocation9], %s681
        %s683 = sand.u32 %s187, 1
        %s684 = smul.addr %s683, 192
        %s685 = scalar_lea.vmem [#allocation10], %s684
        %p686 = pneg %p200
        %p687 = pneg %p197
        %s688 = sand.u32 %s37, 1
        %s689 = scalar_lea.sflag [#allocation12], %s688
        %s690 = sand.u32 %s213, 1
        %s691 = scalar_lea.vmem [#allocation11], %s690
        %p692 = pneg %p226
        %p693 = pneg %p223
        %s694 = sand.u32 %s37, 1
        %s695 = scalar_lea.sflag [#allocation12], %s694
        %s696 = sand.u32 %s239, 1
        %s697 = scalar_lea.vmem [#allocation13], %s696
        %p698 = pneg %p252
        %p699 = pneg %p249
        %p700 = scmp.lt.s32.totalorder %s42, 4
        %s701 = scalar_select %p700, %s42, 4
        %s702 = scalar_lea.vmem %s8, %s701
        %p703 = pneg %p278
        %p704 = pneg %p275
        %s705 = sand.u32 %s37, 1
        %s706 = scalar_lea.sflag [#allocation15], %s705
        %s707 = sand.u32 %s291, 1
        %s708 = scalar_lea.vmem [#allocation14], %s707
        %p709 = pneg %p304
        %p710 = pneg %p301
        %s711 = sand.u32 %s37, 1
        %s712 = scalar_lea.sflag [#allocation15], %s711
        %s713 = sand.u32 %s317, 1
        %s714 = scalar_lea.vmem [#allocation16], %s713
        %p715 = pneg %p330
        %p716 = pneg %p327
        %p717 = pneg %p356
        %p718 = pneg %p353
        %p719 = scmp.lt.s32.totalorder %s41, 1
        %s720 = scalar_select %p719, %s41, 1
        %s721 = smul.addr %s720, 8
        %s722 = smul.addr %s721, 8
        %s723 = scalar_lea.vmem %s11, %s722
        %p724 = scmp.lt.s32.totalorder %s41, 1
        %s725 = scalar_select %p724, %s41, 1
        %s726 = smul.addr %s725, 8
        %s727 = smul.addr %s726, 8
        %s728 = scalar_lea.vmem %s0, %s727
        %p729 = scmp.lt.s32.totalorder %s42, 4
        %s730 = scalar_select %p729, %s42, 4
        %s731 = scalar_lea.vmem %s8, %s730
        %p732 = scmp.lt.s32.totalorder %s41, 1
        %s733 = scalar_select %p732, %s41, 1
        %s734 = smul.addr %s733, 8
        %s735 = smul.addr %s734, 8
        %s736 = scalar_lea.vmem %s11, %s735
        %v737 = vld [vmem:[%s728] sm:$0xff]
        %v738 = vld [vmem:[%s728 + $0x8] sm:$0xff]
        %v739 = vld [vmem:[%s728 + $0x10] sm:$0xff]
        %v740 = vld [vmem:[%s728 + $0x18] sm:$0xff]
        %v741 = vld [vmem:[%s728 + $0x20] sm:$0xff]
        %v742 = vld [vmem:[%s728 + $0x28] sm:$0xff]
        %v743 = vld [vmem:[%s728 + $0x30] sm:$0xff]
        %v744 = vld [vmem:[%s728 + $0x38] sm:$0xff]
        %p745 = scmp.eq.s32.totalorder %s42, 0
        // Predicated region
        $region101: #{run.1} parent=63 // pred_check
          %p746 = pneg %p745
        $region102: #{run.1} parent=63 // pred_check_branch
          %748 = sbr.rel (%p746) target = $region104
        $region103: #{run.1} parent=63 // pred_region
          %749 = vst [vmem:[#allocation2] sm:$0xff] %v737
          %750 = vst [vmem:[#allocation2 + $0x8] sm:$0xff] %v738
          %751 = vst [vmem:[#allocation2 + $0x10] sm:$0xff] %v739
          %752 = vst [vmem:[#allocation2 + $0x18] sm:$0xff] %v740
          %753 = vst [vmem:[#allocation2 + $0x20] sm:$0xff] %v741
          %754 = vst [vmem:[#allocation2 + $0x28] sm:$0xff] %v742
          %755 = vst [vmem:[#allocation2 + $0x30] sm:$0xff] %v743
          %756 = vst [vmem:[#allocation2 + $0x38] sm:$0xff] %v744
        $region104: #{run.1} parent=63 // pred_fallthru
          _
        %v757 = vld [vmem:[#allocation2] sm:$0xff]
        %v758 = vld [vmem:[#allocation2 + $0x8] sm:$0xff]
        %v759 = vld [vmem:[#allocation2 + $0x10] sm:$0xff]
        %v760 = vld [vmem:[#allocation2 + $0x18] sm:$0xff]
        %v761 = vld [vmem:[#allocation2 + $0x20] sm:$0xff]
        %v762 = vld [vmem:[#allocation2 + $0x28] sm:$0xff]
        %v763 = vld [vmem:[#allocation2 + $0x30] sm:$0xff]
        %v764 = vld [vmem:[#allocation2 + $0x38] sm:$0xff]
        %v765 = vmax.f32 %v757, 0.0
        %v766 = vmax.f32 %v758, 0.0
        %v767 = vmax.f32 %v759, 0.0
        %v768 = vmax.f32 %v760, 0.0
        %v769 = vmax.f32 %v761, 0.0
        %v770 = vmax.f32 %v762, 0.0
        %v771 = vmax.f32 %v763, 0.0
        %v772 = vmax.f32 %v764, 0.0
        %v781 = vrot.slane 0.0, 7
        %v782 = vrot.slane %v765, 7
        %v783 = vrot.slane %v766, 7
        %v784 = vrot.slane %v767, 7
        %v785 = vrot.slane %v768, 7
        %v786 = vrot.slane %v769, 7
        %v787 = vrot.slane %v770, 7
        %v788 = vrot.slane %v771, 7
        %vm797 = vcmask 1040384
        %v798 = vsel %vm797, 0.0, %v781
        %v799 = vsel %vm797, 0.0, %v782
        %v800 = vsel %vm797, 0.0, %v783
        %v801 = vsel %vm797, 0.0, %v784
        %v802 = vsel %vm797, 0.0, %v785
        %v803 = vsel %vm797, 0.0, %v786
        %v804 = vsel %vm797, 0.0, %v787
        %v805 = vsel %vm797, 0.0, %v788
        %v806 = vpack.c.bf16 %v798, %v798
        %v807 = vpack.c.bf16 %v799, %v799
        %v808 = vpack.c.bf16 %v800, %v800
        %v809 = vpack.c.bf16 %v801, %v801
        %v810 = vpack.c.bf16 %v802, %v802
        %v811 = vpack.c.bf16 %v803, %v803
        %v812 = vpack.c.bf16 %v804, %v804
        %v813 = vpack.c.bf16 %v805, %v805
        %v814 = vpack.c.bf16 0.0, 0.0
        %v815 = vpack.c.bf16 %v765, %v765
        %v816 = vpack.c.bf16 %v766, %v766
        %v817 = vpack.c.bf16 %v767, %v767
        %v818 = vpack.c.bf16 %v768, %v768
        %v819 = vpack.c.bf16 %v769, %v769
        %v820 = vpack.c.bf16 %v770, %v770
        %v821 = vpack.c.bf16 %v771, %v771
        %v822 = vrot.slane 0.0, 1
        %v823 = vrot.slane %v765, 1
        %v824 = vrot.slane %v766, 1
        %v825 = vrot.slane %v767, 1
        %v826 = vrot.slane %v768, 1
        %v827 = vrot.slane %v769, 1
        %v828 = vrot.slane %v770, 1
        %v829 = vrot.slane %v771, 1
        %vm838 = vcmask 1046528
        %v839 = vsel %vm838, %v822, 0.0
        %v840 = vsel %vm838, %v823, 0.0
        %v841 = vsel %vm838, %v824, 0.0
        %v842 = vsel %vm838, %v825, 0.0
        %v843 = vsel %vm838, %v826, 0.0
        %v844 = vsel %vm838, %v827, 0.0
        %v845 = vsel %vm838, %v828, 0.0
        %v846 = vsel %vm838, %v829, 0.0
        %v847 = vpack.c.bf16 %v839, %v839
        %v848 = vpack.c.bf16 %v840, %v840
        %v849 = vpack.c.bf16 %v841, %v841
        %v850 = vpack.c.bf16 %v842, %v842
        %v851 = vpack.c.bf16 %v843, %v843
        %v852 = vpack.c.bf16 %v844, %v844
        %v853 = vpack.c.bf16 %v845, %v845
        %v854 = vpack.c.bf16 %v846, %v846
        %v856 = vrot.slane %v772, 7
        %v858 = vsel %vm797, 0.0, %v856
        %v859 = vpack.c.bf16 %v858, %v858
        %v860 = vpack.c.bf16 %v772, %v772
        %v861 = vrot.slane %v772, 1
        %v863 = vsel %vm838, %v861, 0.0
        %v864 = vpack.c.bf16 %v863, %v863
        %v873 = vunpack.c.l.b16 %v806
        %v874 = vunpack.c.l.b16 %v807
        %v875 = vunpack.c.l.b16 %v808
        %v876 = vunpack.c.l.b16 %v809
        %v877 = vunpack.c.l.b16 %v810
        %v878 = vunpack.c.l.b16 %v811
        %v879 = vunpack.c.l.b16 %v812
        %v880 = vunpack.c.l.b16 %v813
        %v881 = vpack.c.b16 %v874, %v873
        %v882 = vpack.c.b16 %v876, %v875
        %v883 = vpack.c.b16 %v878, %v877
        %v884 = vpack.c.b16 %v880, %v879
        %v897 = vunpack.c.l.b16 %v814
        %v898 = vunpack.c.l.b16 %v815
        %v899 = vunpack.c.l.b16 %v816
        %v900 = vunpack.c.l.b16 %v817
        %v901 = vunpack.c.l.b16 %v818
        %v902 = vunpack.c.l.b16 %v819
        %v903 = vunpack.c.l.b16 %v820
        %v904 = vunpack.c.l.b16 %v821
        %v905 = vpack.c.b16 %v898, %v897
        %v906 = vpack.c.b16 %v900, %v899
        %v907 = vpack.c.b16 %v902, %v901
        %v908 = vpack.c.b16 %v904, %v903
        %v921 = vunpack.c.l.b16 %v847
        %v922 = vunpack.c.l.b16 %v848
        %v923 = vunpack.c.l.b16 %v849
        %v924 = vunpack.c.l.b16 %v850
        %v925 = vunpack.c.l.b16 %v851
        %v926 = vunpack.c.l.b16 %v852
        %v927 = vunpack.c.l.b16 %v853
        %v928 = vunpack.c.l.b16 %v854
        %v929 = vpack.c.b16 %v922, %v921
        %v930 = vpack.c.b16 %v924, %v923
        %v931 = vpack.c.b16 %v926, %v925
        %v932 = vpack.c.b16 %v928, %v927
        %v938 = vunpack.c.l.b16 %v859
        %v939 = vpack.c.b16 %v875, %v874
        %v940 = vpack.c.b16 %v877, %v876
        %v941 = vpack.c.b16 %v879, %v878
        %v942 = vpack.c.b16 %v938, %v880
        %v948 = vunpack.c.l.b16 %v860
        %v949 = vpack.c.b16 %v899, %v898
        %v950 = vpack.c.b16 %v901, %v900
        %v951 = vpack.c.b16 %v903, %v902
        %v952 = vpack.c.b16 %v948, %v904
        %v958 = vunpack.c.l.b16 %v864
        %v959 = vpack.c.b16 %v923, %v922
        %v960 = vpack.c.b16 %v925, %v924
        %v961 = vpack.c.b16 %v927, %v926
        %v962 = vpack.c.b16 %v958, %v928
        %v967 = vpack.c.b16 %v873, %v938
        %v969 = vpack.c.b16 %v897, %v948
        %v971 = vpack.c.b16 %v921, %v958
        %v973 = vld [vmem:[%s568] sm:$0xf]
        %v974 = vld [vmem:[%s568 + $0x4] sm:$0xf]
        %v975 = vld [vmem:[%s568 + $0x8] sm:$0xf]
        %v976 = vld [vmem:[%s568 + $0xc] sm:$0xf]
        %v977 = vld [vmem:[%s568 + $0x10] sm:$0xf]
        %v978 = vld [vmem:[%s568 + $0x14] sm:$0xf]
        %v979 = vld [vmem:[%s568 + $0x18] sm:$0xf]
        %v980 = vld [vmem:[%s568 + $0x1c] sm:$0xf]
        %v981 = vld [vmem:[%s568 + $0x20] sm:$0xf]
        %v982 = vld [vmem:[%s568 + $0x24] sm:$0xf]
        %v983 = vld [vmem:[%s568 + $0x28] sm:$0xf]
        %v984 = vld [vmem:[%s568 + $0x2c] sm:$0xf]
        %v985 = vld [vmem:[%s568 + $0x30] sm:$0xf]
        %v986 = vld [vmem:[%s568 + $0x34] sm:$0xf]
        %v987 = vld [vmem:[%s568 + $0x38] sm:$0xf]
        %v988 = vld [vmem:[%s568 + $0x3c] sm:$0xf]
        %v989 = vld [vmem:[%s568 + $0x40] sm:$0xf]
        %v990 = vld [vmem:[%s568 + $0x44] sm:$0xf]
        %v991 = vld [vmem:[%s568 + $0x48] sm:$0xf]
        %v992 = vld [vmem:[%s568 + $0x4c] sm:$0xf]
        %v993 = vld [vmem:[%s568 + $0x50] sm:$0xf]
        %v994 = vld [vmem:[%s568 + $0x54] sm:$0xf]
        %v995 = vld [vmem:[%s568 + $0x58] sm:$0xf]
        %v996 = vld [vmem:[%s568 + $0x5c] sm:$0xf]
        %v997 = vld [vmem:[%s568 + $0x60] sm:$0xf]
        %v998 = vld [vmem:[%s568 + $0x64] sm:$0xf]
        %v999 = vld [vmem:[%s568 + $0x68] sm:$0xf]
        %v1000 = vld [vmem:[%s568 + $0x6c] sm:$0xf]
        %v1001 = vld [vmem:[%s568 + $0x70] sm:$0xf]
        %v1002 = vld [vmem:[%s568 + $0x74] sm:$0xf]
        %v1003 = vld [vmem:[%s568 + $0x78] sm:$0xf]
        %v1004 = vld [vmem:[%s568 + $0x7c] sm:$0xf]
        %v1005 = vld [vmem:[%s568 + $0x80] sm:$0xf]
        %v1006 = vld [vmem:[%s568 + $0x84] sm:$0xf]
        %v1007 = vld [vmem:[%s568 + $0x88] sm:$0xf]
        %v1008 = vld [vmem:[%s568 + $0x8c] sm:$0xf]
        %v1009 = vld [vmem:[%s568 + $0x90] sm:$0xf]
        %v1010 = vld [vmem:[%s568 + $0x94] sm:$0xf]
        %v1011 = vld [vmem:[%s568 + $0x98] sm:$0xf]
        %v1012 = vld [vmem:[%s568 + $0x9c] sm:$0xf]
        %v1013 = vld [vmem:[%s568 + $0xa0] sm:$0xf]
        %v1014 = vld [vmem:[%s568 + $0xa4] sm:$0xf]
        %v1015 = vld [vmem:[%s568 + $0xa8] sm:$0xf]
        %v1016 = vld [vmem:[%s568 + $0xac] sm:$0xf]
        %v1017 = vld [vmem:[%s568 + $0xb0] sm:$0xf]
        %v1018 = vld [vmem:[%s568 + $0xb4] sm:$0xf]
        %v1019 = vld [vmem:[%s568 + $0xb8] sm:$0xf]
        %v1020 = vld [vmem:[%s568 + $0xbc] sm:$0xf]
        %v1021 = vld [vmem:[%s568 + $0xc0] sm:$0xf]
        %v1022 = vld [vmem:[%s568 + $0xc4] sm:$0xf]
        %v1023 = vld [vmem:[%s568 + $0xc8] sm:$0xf]
        %v1024 = vld [vmem:[%s568 + $0xcc] sm:$0xf]
        %v1025 = vld [vmem:[%s568 + $0xd0] sm:$0xf]
        %v1026 = vld [vmem:[%s568 + $0xd4] sm:$0xf]
        %v1027 = vld [vmem:[%s568 + $0xd8] sm:$0xf]
        %v1028 = vld [vmem:[%s568 + $0xdc] sm:$0xf]
        %v1029 = vld [vmem:[%s568 + $0xe0] sm:$0xf]
        %v1030 = vld [vmem:[%s568 + $0xe4] sm:$0xf]
        %v1031 = vld [vmem:[%s568 + $0xe8] sm:$0xf]
        %v1032 = vld [vmem:[%s568 + $0xec] sm:$0xf]
        %v1033 = vld [vmem:[%s568 + $0xf0] sm:$0xf]
        %v1034 = vld [vmem:[%s568 + $0xf4] sm:$0xf]
        %v1035 = vld [vmem:[%s568 + $0xf8] sm:$0xf]
        %v1036 = vld [vmem:[%s568 + $0xfc] sm:$0xf]
        %v1037 = vld [vmem:[%s568 + $0x100] sm:$0xf]
        %v1038 = vld [vmem:[%s568 + $0x104] sm:$0xf]
        %v1039 = vld [vmem:[%s568 + $0x108] sm:$0xf]
        %v1040 = vld [vmem:[%s568 + $0x10c] sm:$0xf]
        %v1041 = vld [vmem:[%s568 + $0x110] sm:$0xf]
        %v1042 = vld [vmem:[%s568 + $0x114] sm:$0xf]
        %v1043 = vld [vmem:[%s568 + $0x118] sm:$0xf]
        %v1044 = vld [vmem:[%s568 + $0x11c] sm:$0xf]
        %v1045 = vld [vmem:[%s568 + $0x120] sm:$0xf]
        %v1046 = vld [vmem:[%s568 + $0x124] sm:$0xf]
        %v1047 = vld [vmem:[%s568 + $0x128] sm:$0xf]
        %v1048 = vld [vmem:[%s568 + $0x12c] sm:$0xf]
        %v1049 = vld [vmem:[%s568 + $0x130] sm:$0xf]
        %v1050 = vld [vmem:[%s568 + $0x134] sm:$0xf]
        %v1051 = vld [vmem:[%s568 + $0x138] sm:$0xf]
        %v1052 = vld [vmem:[%s568 + $0x13c] sm:$0xf]
        %v1053 = vld [vmem:[%s568 + $0x140] sm:$0xf]
        %v1054 = vld [vmem:[%s568 + $0x144] sm:$0xf]
        %v1055 = vld [vmem:[%s568 + $0x148] sm:$0xf]
        %v1056 = vld [vmem:[%s568 + $0x14c] sm:$0xf]
        %v1057 = vld [vmem:[%s568 + $0x150] sm:$0xf]
        %v1058 = vld [vmem:[%s568 + $0x154] sm:$0xf]
        %v1059 = vld [vmem:[%s568 + $0x158] sm:$0xf]
        %v1060 = vld [vmem:[%s568 + $0x15c] sm:$0xf]
        %v1061 = vld [vmem:[%s568 + $0x160] sm:$0xf]
        %v1062 = vld [vmem:[%s568 + $0x164] sm:$0xf]
        %v1063 = vld [vmem:[%s568 + $0x168] sm:$0xf]
        %v1064 = vld [vmem:[%s568 + $0x16c] sm:$0xf]
        %v1065 = vld [vmem:[%s568 + $0x170] sm:$0xf]
        %v1066 = vld [vmem:[%s568 + $0x174] sm:$0xf]
        %v1067 = vld [vmem:[%s568 + $0x178] sm:$0xf]
        %v1068 = vld [vmem:[%s568 + $0x17c] sm:$0xf]
        %v1069 = vld [vmem:[%s568 + $0x180] sm:$0xf]
        %v1070 = vld [vmem:[%s568 + $0x184] sm:$0xf]
        %v1071 = vld [vmem:[%s568 + $0x188] sm:$0xf]
        %v1072 = vld [vmem:[%s568 + $0x18c] sm:$0xf]
        %v1073 = vld [vmem:[%s568 + $0x190] sm:$0xf]
        %v1074 = vld [vmem:[%s568 + $0x194] sm:$0xf]
        %v1075 = vld [vmem:[%s568 + $0x198] sm:$0xf]
        %v1076 = vld [vmem:[%s568 + $0x19c] sm:$0xf]
        %v1077 = vld [vmem:[%s568 + $0x1a0] sm:$0xf]
        %v1078 = vld [vmem:[%s568 + $0x1a4] sm:$0xf]
        %v1079 = vld [vmem:[%s568 + $0x1a8] sm:$0xf]
        %v1080 = vld [vmem:[%s568 + $0x1ac] sm:$0xf]
        %v1081 = vld [vmem:[%s568 + $0x1b0] sm:$0xf]
        %v1082 = vld [vmem:[%s568 + $0x1b4] sm:$0xf]
        %v1083 = vld [vmem:[%s568 + $0x1b8] sm:$0xf]
        %v1084 = vld [vmem:[%s568 + $0x1bc] sm:$0xf]
        %v1085 = vld [vmem:[%s568 + $0x1c0] sm:$0xf]
        %v1086 = vld [vmem:[%s568 + $0x1c4] sm:$0xf]
        %v1087 = vld [vmem:[%s568 + $0x1c8] sm:$0xf]
        %v1088 = vld [vmem:[%s568 + $0x1cc] sm:$0xf]
        %v1089 = vld [vmem:[%s568 + $0x1d0] sm:$0xf]
        %v1090 = vld [vmem:[%s568 + $0x1d4] sm:$0xf]
        %v1091 = vld [vmem:[%s568 + $0x1d8] sm:$0xf]
        %v1092 = vld [vmem:[%s568 + $0x1dc] sm:$0xf]
        %v1093 = vld [vmem:[%s568 + $0x1e0] sm:$0xf]
        %v1094 = vld [vmem:[%s568 + $0x1e4] sm:$0xf]
        %v1095 = vld [vmem:[%s568 + $0x1e8] sm:$0xf]
        %v1096 = vld [vmem:[%s568 + $0x1ec] sm:$0xf]
        %v1097 = vld [vmem:[%s568 + $0x1f0] sm:$0xf]
        %v1098 = vld [vmem:[%s568 + $0x1f4] sm:$0xf]
        %v1099 = vld [vmem:[%s568 + $0x1f8] sm:$0xf]
        %v1100 = vld [vmem:[%s568 + $0x1fc] sm:$0xf]
        %v1101 = vld [vmem:[%s568 + $0x200] sm:$0xf]
        %v1102 = vld [vmem:[%s568 + $0x204] sm:$0xf]
        %v1103 = vld [vmem:[%s568 + $0x208] sm:$0xf]
        %v1104 = vld [vmem:[%s568 + $0x20c] sm:$0xf]
        %v1105 = vld [vmem:[%s568 + $0x210] sm:$0xf]
        %v1106 = vld [vmem:[%s568 + $0x214] sm:$0xf]
        %v1107 = vld [vmem:[%s568 + $0x218] sm:$0xf]
        %v1108 = vld [vmem:[%s568 + $0x21c] sm:$0xf]
        %v1109 = vld [vmem:[%s568 + $0x220] sm:$0xf]
        %v1110 = vld [vmem:[%s568 + $0x224] sm:$0xf]
        %v1111 = vld [vmem:[%s568 + $0x228] sm:$0xf]
        %v1112 = vld [vmem:[%s568 + $0x22c] sm:$0xf]
        %v1113 = vld [vmem:[%s568 + $0x230] sm:$0xf]
        %v1114 = vld [vmem:[%s568 + $0x234] sm:$0xf]
        %v1115 = vld [vmem:[%s568 + $0x238] sm:$0xf]
        %v1116 = vld [vmem:[%s568 + $0x23c] sm:$0xf]
        %v1117 = vld [vmem:[%s577] sm:$0x1]
        %v1119 = vperm.slane %v1117, 0
        %v1265 = vunpack.c.l.b16 %v973
        %v1266 = vunpack.c.l.b16 %v974
        %v1267 = vunpack.c.l.b16 %v975
        %v1268 = vunpack.c.l.b16 %v976
        %v1269 = vunpack.c.l.b16 %v977
        %v1270 = vunpack.c.l.b16 %v978
        %v1271 = vunpack.c.l.b16 %v979
        %v1272 = vunpack.c.l.b16 %v980
        %v1273 = vunpack.c.l.b16 %v981
        %v1274 = vunpack.c.l.b16 %v982
        %v1275 = vunpack.c.l.b16 %v983
        %v1276 = vunpack.c.l.b16 %v984
        %v1277 = vunpack.c.l.b16 %v985
        %v1278 = vunpack.c.l.b16 %v986
        %v1279 = vunpack.c.l.b16 %v987
        %v1280 = vunpack.c.l.b16 %v988
        %v1281 = vunpack.c.l.b16 %v989
        %v1282 = vunpack.c.l.b16 %v990
        %v1283 = vunpack.c.l.b16 %v991
        %v1284 = vunpack.c.l.b16 %v992
        %v1285 = vunpack.c.l.b16 %v993
        %v1286 = vunpack.c.l.b16 %v994
        %v1287 = vunpack.c.l.b16 %v995
        %v1288 = vunpack.c.l.b16 %v996
        %v1289 = vunpack.c.l.b16 %v997
        %v1290 = vunpack.c.l.b16 %v998
        %v1291 = vunpack.c.l.b16 %v999
        %v1292 = vunpack.c.l.b16 %v1000
        %v1293 = vunpack.c.l.b16 %v1001
        %v1294 = vunpack.c.l.b16 %v1002
        %v1295 = vunpack.c.l.b16 %v1003
        %v1296 = vunpack.c.l.b16 %v1004
        %v1297 = vunpack.c.l.b16 %v1005
        %v1298 = vunpack.c.l.b16 %v1006
        %v1299 = vunpack.c.l.b16 %v1007
        %v1300 = vunpack.c.l.b16 %v1008
        %v1301 = vunpack.c.l.b16 %v1009
        %v1302 = vunpack.c.l.b16 %v1010
        %v1303 = vunpack.c.l.b16 %v1011
        %v1304 = vunpack.c.l.b16 %v1012
        %v1305 = vunpack.c.l.b16 %v1013
        %v1306 = vunpack.c.l.b16 %v1014
        %v1307 = vunpack.c.l.b16 %v1015
        %v1308 = vunpack.c.l.b16 %v1016
        %v1309 = vunpack.c.l.b16 %v1017
        %v1310 = vunpack.c.l.b16 %v1018
        %v1311 = vunpack.c.l.b16 %v1019
        %v1312 = vunpack.c.l.b16 %v1020
        %v1313 = vunpack.c.l.b16 %v1021
        %v1314 = vunpack.c.l.b16 %v1022
        %v1315 = vunpack.c.l.b16 %v1023
        %v1316 = vunpack.c.l.b16 %v1024
        %v1317 = vunpack.c.l.b16 %v1025
        %v1318 = vunpack.c.l.b16 %v1026
        %v1319 = vunpack.c.l.b16 %v1027
        %v1320 = vunpack.c.l.b16 %v1028
        %v1321 = vunpack.c.l.b16 %v1029
        %v1322 = vunpack.c.l.b16 %v1030
        %v1323 = vunpack.c.l.b16 %v1031
        %v1324 = vunpack.c.l.b16 %v1032
        %v1325 = vunpack.c.l.b16 %v1033
        %v1326 = vunpack.c.l.b16 %v1034
        %v1327 = vunpack.c.l.b16 %v1035
        %v1328 = vunpack.c.l.b16 %v1036
        %v1329 = vunpack.c.l.b16 %v1037
        %v1330 = vunpack.c.l.b16 %v1038
        %v1331 = vunpack.c.l.b16 %v1039
        %v1332 = vunpack.c.l.b16 %v1040
        %v1333 = vunpack.c.l.b16 %v1041
        %v1334 = vunpack.c.l.b16 %v1042
        %v1335 = vunpack.c.l.b16 %v1043
        %v1336 = vunpack.c.l.b16 %v1044
        %v1337 = vunpack.c.l.b16 %v1045
        %v1338 = vunpack.c.l.b16 %v1046
        %v1339 = vunpack.c.l.b16 %v1047
        %v1340 = vunpack.c.l.b16 %v1048
        %v1341 = vunpack.c.l.b16 %v1049
        %v1342 = vunpack.c.l.b16 %v1050
        %v1343 = vunpack.c.l.b16 %v1051
        %v1344 = vunpack.c.l.b16 %v1052
        %v1345 = vunpack.c.l.b16 %v1053
        %v1346 = vunpack.c.l.b16 %v1054
        %v1347 = vunpack.c.l.b16 %v1055
        %v1348 = vunpack.c.l.b16 %v1056
        %v1349 = vunpack.c.l.b16 %v1057
        %v1350 = vunpack.c.l.b16 %v1058
        %v1351 = vunpack.c.l.b16 %v1059
        %v1352 = vunpack.c.l.b16 %v1060
        %v1353 = vunpack.c.l.b16 %v1061
        %v1354 = vunpack.c.l.b16 %v1062
        %v1355 = vunpack.c.l.b16 %v1063
        %v1356 = vunpack.c.l.b16 %v1064
        %v1357 = vunpack.c.l.b16 %v1065
        %v1358 = vunpack.c.l.b16 %v1066
        %v1359 = vunpack.c.l.b16 %v1067
        %v1360 = vunpack.c.l.b16 %v1068
        %v1361 = vunpack.c.l.b16 %v1069
        %v1362 = vunpack.c.l.b16 %v1070
        %v1363 = vunpack.c.l.b16 %v1071
        %v1364 = vunpack.c.l.b16 %v1072
        %v1365 = vunpack.c.l.b16 %v1073
        %v1366 = vunpack.c.l.b16 %v1074
        %v1367 = vunpack.c.l.b16 %v1075
        %v1368 = vunpack.c.l.b16 %v1076
        %v1369 = vunpack.c.l.b16 %v1077
        %v1370 = vunpack.c.l.b16 %v1078
        %v1371 = vunpack.c.l.b16 %v1079
        %v1372 = vunpack.c.l.b16 %v1080
        %v1373 = vunpack.c.l.b16 %v1081
        %v1374 = vunpack.c.l.b16 %v1082
        %v1375 = vunpack.c.l.b16 %v1083
        %v1376 = vunpack.c.l.b16 %v1084
        %v1377 = vunpack.c.l.b16 %v1085
        %v1378 = vunpack.c.l.b16 %v1086
        %v1379 = vunpack.c.l.b16 %v1087
        %v1380 = vunpack.c.l.b16 %v1088
        %v1381 = vunpack.c.l.b16 %v1089
        %v1382 = vunpack.c.l.b16 %v1090
        %v1383 = vunpack.c.l.b16 %v1091
        %v1384 = vunpack.c.l.b16 %v1092
        %v1385 = vunpack.c.l.b16 %v1093
        %v1386 = vunpack.c.l.b16 %v1094
        %v1387 = vunpack.c.l.b16 %v1095
        %v1388 = vunpack.c.l.b16 %v1096
        %v1389 = vunpack.c.l.b16 %v1097
        %v1390 = vunpack.c.l.b16 %v1098
        %v1391 = vunpack.c.l.b16 %v1099
        %v1392 = vunpack.c.l.b16 %v1100
        %v1393 = vunpack.c.l.b16 %v1101
        %v1394 = vunpack.c.l.b16 %v1102
        %v1395 = vunpack.c.l.b16 %v1103
        %v1396 = vunpack.c.l.b16 %v1104
        %v1397 = vunpack.c.l.b16 %v1105
        %v1398 = vunpack.c.l.b16 %v1106
        %v1399 = vunpack.c.l.b16 %v1107
        %v1400 = vunpack.c.l.b16 %v1108
        %v1401 = vunpack.c.l.b16 %v1109
        %v1402 = vunpack.c.l.b16 %v1110
        %v1403 = vunpack.c.l.b16 %v1111
        %v1404 = vunpack.c.l.b16 %v1112
        %v1405 = vunpack.c.l.b16 %v1113
        %v1406 = vunpack.c.l.b16 %v1114
        %v1407 = vunpack.c.l.b16 %v1115
        %v1408 = vunpack.c.l.b16 %v1116
        %v1409 = vpack.c.b16 %v1266, %v1265
        %v1410 = vpack.c.b16 %v1268, %v1267
        %v1411 = vpack.c.b16 %v1270, %v1269
        %v1412 = vpack.c.b16 %v1272, %v1271
        %v1413 = vpack.c.b16 %v1274, %v1273
        %v1414 = vpack.c.b16 %v1276, %v1275
        %v1415 = vpack.c.b16 %v1278, %v1277
        %v1416 = vpack.c.b16 %v1280, %v1279
        %v1417 = vpack.c.b16 %v1282, %v1281
        %v1418 = vpack.c.b16 %v1284, %v1283
        %v1419 = vpack.c.b16 %v1286, %v1285
        %v1420 = vpack.c.b16 %v1288, %v1287
        %v1421 = vpack.c.b16 %v1290, %v1289
        %v1422 = vpack.c.b16 %v1292, %v1291
        %v1423 = vpack.c.b16 %v1294, %v1293
        %v1424 = vpack.c.b16 %v1296, %v1295
        %v1425 = vpack.c.b16 %v1298, %v1297
        %v1426 = vpack.c.b16 %v1300, %v1299
        %v1427 = vpack.c.b16 %v1302, %v1301
        %v1428 = vpack.c.b16 %v1304, %v1303
        %v1429 = vpack.c.b16 %v1306, %v1305
        %v1430 = vpack.c.b16 %v1308, %v1307
        %v1431 = vpack.c.b16 %v1310, %v1309
        %v1432 = vpack.c.b16 %v1312, %v1311
        %v1433 = vpack.c.b16 %v1314, %v1313
        %v1434 = vpack.c.b16 %v1316, %v1315
        %v1435 = vpack.c.b16 %v1318, %v1317
        %v1436 = vpack.c.b16 %v1320, %v1319
        %v1437 = vpack.c.b16 %v1322, %v1321
        %v1438 = vpack.c.b16 %v1324, %v1323
        %v1439 = vpack.c.b16 %v1326, %v1325
        %v1440 = vpack.c.b16 %v1328, %v1327
        %v1441 = vpack.c.b16 %v1330, %v1329
        %v1442 = vpack.c.b16 %v1332, %v1331
        %v1443 = vpack.c.b16 %v1334, %v1333
        %v1444 = vpack.c.b16 %v1336, %v1335
        %v1445 = vpack.c.b16 %v1338, %v1337
        %v1446 = vpack.c.b16 %v1340, %v1339
        %v1447 = vpack.c.b16 %v1342, %v1341
        %v1448 = vpack.c.b16 %v1344, %v1343
        %v1449 = vpack.c.b16 %v1346, %v1345
        %v1450 = vpack.c.b16 %v1348, %v1347
        %v1451 = vpack.c.b16 %v1350, %v1349
        %v1452 = vpack.c.b16 %v1352, %v1351
        %v1453 = vpack.c.b16 %v1354, %v1353
        %v1454 = vpack.c.b16 %v1356, %v1355
        %v1455 = vpack.c.b16 %v1358, %v1357
        %v1456 = vpack.c.b16 %v1360, %v1359
        %v1457 = vpack.c.b16 %v1362, %v1361
        %v1458 = vpack.c.b16 %v1364, %v1363
        %v1459 = vpack.c.b16 %v1366, %v1365
        %v1460 = vpack.c.b16 %v1368, %v1367
        %v1461 = vpack.c.b16 %v1370, %v1369
        %v1462 = vpack.c.b16 %v1372, %v1371
        %v1463 = vpack.c.b16 %v1374, %v1373
        %v1464 = vpack.c.b16 %v1376, %v1375
        %v1465 = vpack.c.b16 %v1378, %v1377
        %v1466 = vpack.c.b16 %v1380, %v1379
        %v1467 = vpack.c.b16 %v1382, %v1381
        %v1468 = vpack.c.b16 %v1384, %v1383
        %v1469 = vpack.c.b16 %v1386, %v1385
        %v1470 = vpack.c.b16 %v1388, %v1387
        %v1471 = vpack.c.b16 %v1390, %v1389
        %v1472 = vpack.c.b16 %v1392, %v1391
        %v1473 = vpack.c.b16 %v1394, %v1393
        %v1474 = vpack.c.b16 %v1396, %v1395
        %v1475 = vpack.c.b16 %v1398, %v1397
        %v1476 = vpack.c.b16 %v1400, %v1399
        %v1477 = vpack.c.b16 %v1402, %v1401
        %v1478 = vpack.c.b16 %v1404, %v1403
        %v1479 = vpack.c.b16 %v1406, %v1405
        %v1480 = vpack.c.b16 %v1408, %v1407
        %1553 = vmatpush.bf16.msra.mxu0 %v1416
        %1554 = vmatpush.bf16.msra.mxu0 %v1415
        %1555 = vmatpush.bf16.msra.mxu0 %v1414
        %1556 = vmatpush.bf16.msra.mxu0 %v1413
        %1557 = vmatpush.bf16.msra.mxu0 %v1412
        %1558 = vmatpush.bf16.msra.mxu0 %v1411
        %1559 = vmatpush.bf16.msra.mxu0 %v1410
        %1560 = vmatpush.bf16.msra.mxu0 %v1409
        %1561 = vmatmul.bf16.gmra.mxu0 %v881
        %v1562 = vpop.f32.mrf.mxu0
        %v1563 = vadd.f32 %v1119, %v1562
        %v1564 = vpop.f32.mrf.mxu0
        %v1565 = vadd.f32 %v1119, %v1564
        %1566 = vmatmul.bf16.gmra.mxu0 %v882
        %v1567 = vpop.f32.mrf.mxu0
        %v1568 = vadd.f32 %v1119, %v1567
        %v1569 = vpop.f32.mrf.mxu0
        %v1570 = vadd.f32 %v1119, %v1569
        %1571 = vmatmul.bf16.gmra.mxu0 %v883
        %v1572 = vpop.f32.mrf.mxu0
        %v1573 = vadd.f32 %v1119, %v1572
        %v1574 = vpop.f32.mrf.mxu0
        %v1575 = vadd.f32 %v1119, %v1574
        %1576 = vmatmul.bf16.gmra.mxu0 %v884
        %v1577 = vpop.f32.mrf.mxu0
        %v1578 = vadd.f32 %v1119, %v1577
        %v1579 = vpop.f32.mrf.mxu0
        %v1580 = vadd.f32 %v1119, %v1579
        %1581 = vdwg.mxu0
        %1582 = vmatpush.bf16.msra.mxu0 %v1424
        %1583 = vmatpush.bf16.msra.mxu0 %v1423
        %1584 = vmatpush.bf16.msra.mxu0 %v1422
        %1585 = vmatpush.bf16.msra.mxu0 %v1421
        %1586 = vmatpush.bf16.msra.mxu0 %v1420
        %1587 = vmatpush.bf16.msra.mxu0 %v1419
        %1588 = vmatpush.bf16.msra.mxu0 %v1418
        %1589 = vmatpush.bf16.msra.mxu0 %v1417
        %1590 = vmatmul.bf16.gmra.mxu0 %v905
        %v1591 = vpop.f32.mrf.mxu0
        %v1592 = vadd.f32 %v1563, %v1591
        %v1593 = vpop.f32.mrf.mxu0
        %v1594 = vadd.f32 %v1565, %v1593
        %1595 = vmatmul.bf16.gmra.mxu0 %v906
        %v1596 = vpop.f32.mrf.mxu0
        %v1597 = vadd.f32 %v1568, %v1596
        %v1598 = vpop.f32.mrf.mxu0
        %v1599 = vadd.f32 %v1570, %v1598
        %1600 = vmatmul.bf16.gmra.mxu0 %v907
        %v1601 = vpop.f32.mrf.mxu0
        %v1602 = vadd.f32 %v1573, %v1601
        %v1603 = vpop.f32.mrf.mxu0
        %v1604 = vadd.f32 %v1575, %v1603
        %1605 = vmatmul.bf16.gmra.mxu0 %v908
        %v1606 = vpop.f32.mrf.mxu0
        %v1607 = vadd.f32 %v1578, %v1606
        %v1608 = vpop.f32.mrf.mxu0
        %v1609 = vadd.f32 %v1580, %v1608
        %1610 = vdwg.mxu0
        %1611 = vmatpush.bf16.msra.mxu0 %v1432
        %1612 = vmatpush.bf16.msra.mxu0 %v1431
        %1613 = vmatpush.bf16.msra.mxu0 %v1430
        %1614 = vmatpush.bf16.msra.mxu0 %v1429
        %1615 = vmatpush.bf16.msra.mxu0 %v1428
        %1616 = vmatpush.bf16.msra.mxu0 %v1427
        %1617 = vmatpush.bf16.msra.mxu0 %v1426
        %1618 = vmatpush.bf16.msra.mxu0 %v1425
        %1619 = vmatmul.bf16.gmra.mxu0 %v929
        %v1620 = vpop.f32.mrf.mxu0
        %v1621 = vadd.f32 %v1592, %v1620
        %v1622 = vpop.f32.mrf.mxu0
        %v1623 = vadd.f32 %v1594, %v1622
        %1624 = vmatmul.bf16.gmra.mxu0 %v930
        %v1625 = vpop.f32.mrf.mxu0
        %v1626 = vadd.f32 %v1597, %v1625
        %v1627 = vpop.f32.mrf.mxu0
        %v1628 = vadd.f32 %v1599, %v1627
        %1629 = vmatmul.bf16.gmra.mxu0 %v931
        %v1630 = vpop.f32.mrf.mxu0
        %v1631 = vadd.f32 %v1602, %v1630
        %v1632 = vpop.f32.mrf.mxu0
        %v1633 = vadd.f32 %v1604, %v1632
        %1634 = vmatmul.bf16.gmra.mxu0 %v932
        %v1635 = vpop.f32.mrf.mxu0
        %v1636 = vadd.f32 %v1607, %v1635
        %v1637 = vpop.f32.mrf.mxu0
        %v1638 = vadd.f32 %v1609, %v1637
        %1639 = vdwg.mxu0
        %1640 = vmatpush.bf16.msra.mxu0 %v1440
        %1641 = vmatpush.bf16.msra.mxu0 %v1439
        %1642 = vmatpush.bf16.msra.mxu0 %v1438
        %1643 = vmatpush.bf16.msra.mxu0 %v1437
        %1644 = vmatpush.bf16.msra.mxu0 %v1436
        %1645 = vmatpush.bf16.msra.mxu0 %v1435
        %1646 = vmatpush.bf16.msra.mxu0 %v1434
        %1647 = vmatpush.bf16.msra.mxu0 %v1433
        %1648 = vmatmul.bf16.gmra.mxu0 %v939
        %v1649 = vpop.f32.mrf.mxu0
        %v1650 = vadd.f32 %v1621, %v1649
        %v1651 = vpop.f32.mrf.mxu0
        %v1652 = vadd.f32 %v1623, %v1651
        %1653 = vmatmul.bf16.gmra.mxu0 %v940
        %v1654 = vpop.f32.mrf.mxu0
        %v1655 = vadd.f32 %v1626, %v1654
        %v1656 = vpop.f32.mrf.mxu0
        %v1657 = vadd.f32 %v1628, %v1656
        %1658 = vmatmul.bf16.gmra.mxu0 %v941
        %v1659 = vpop.f32.mrf.mxu0
        %v1660 = vadd.f32 %v1631, %v1659
        %v1661 = vpop.f32.mrf.mxu0
        %v1662 = vadd.f32 %v1633, %v1661
        %1663 = vmatmul.bf16.gmra.mxu0 %v942
        %v1664 = vpop.f32.mrf.mxu0
        %v1665 = vadd.f32 %v1636, %v1664
        %v1666 = vpop.f32.mrf.mxu0
        %v1667 = vadd.f32 %v1638, %v1666
        %1668 = vdwg.mxu0
        %1669 = vmatpush.bf16.msra.mxu0 %v1448
        %1670 = vmatpush.bf16.msra.mxu0 %v1447
        %1671 = vmatpush.bf16.msra.mxu0 %v1446
        %1672 = vmatpush.bf16.msra.mxu0 %v1445
        %1673 = vmatpush.bf16.msra.mxu0 %v1444
        %1674 = vmatpush.bf16.msra.mxu0 %v1443
        %1675 = vmatpush.bf16.msra.mxu0 %v1442
        %1676 = vmatpush.bf16.msra.mxu0 %v1441
        %1677 = vmatmul.bf16.gmra.mxu0 %v949
        %v1678 = vpop.f32.mrf.mxu0
        %v1679 = vadd.f32 %v1650, %v1678
        %v1680 = vpop.f32.mrf.mxu0
        %v1681 = vadd.f32 %v1652, %v1680
        %1682 = vmatmul.bf16.gmra.mxu0 %v950
        %v1683 = vpop.f32.mrf.mxu0
        %v1684 = vadd.f32 %v1655, %v1683
        %v1685 = vpop.f32.mrf.mxu0
        %v1686 = vadd.f32 %v1657, %v1685
        %1687 = vmatmul.bf16.gmra.mxu0 %v951
        %v1688 = vpop.f32.mrf.mxu0
        %v1689 = vadd.f32 %v1660, %v1688
        %v1690 = vpop.f32.mrf.mxu0
        %v1691 = vadd.f32 %v1662, %v1690
        %1692 = vmatmul.bf16.gmra.mxu0 %v952
        %v1693 = vpop.f32.mrf.mxu0
        %v1694 = vadd.f32 %v1665, %v1693
        %v1695 = vpop.f32.mrf.mxu0
        %v1696 = vadd.f32 %v1667, %v1695
        %1697 = vdwg.mxu0
        %1698 = vmatpush.bf16.msra.mxu0 %v1456
        %1699 = vmatpush.bf16.msra.mxu0 %v1455
        %1700 = vmatpush.bf16.msra.mxu0 %v1454
        %1701 = vmatpush.bf16.msra.mxu0 %v1453
        %1702 = vmatpush.bf16.msra.mxu0 %v1452
        %1703 = vmatpush.bf16.msra.mxu0 %v1451
        %1704 = vmatpush.bf16.msra.mxu0 %v1450
        %1705 = vmatpush.bf16.msra.mxu0 %v1449
        %1706 = vmatmul.bf16.gmra.mxu0 %v959
        %v1707 = vpop.f32.mrf.mxu0
        %v1708 = vadd.f32 %v1679, %v1707
        %v1709 = vpop.f32.mrf.mxu0
        %v1710 = vadd.f32 %v1681, %v1709
        %1711 = vmatmul.bf16.gmra.mxu0 %v960
        %v1712 = vpop.f32.mrf.mxu0
        %v1713 = vadd.f32 %v1684, %v1712
        %v1714 = vpop.f32.mrf.mxu0
        %v1715 = vadd.f32 %v1686, %v1714
        %1716 = vmatmul.bf16.gmra.mxu0 %v961
        %v1717 = vpop.f32.mrf.mxu0
        %v1718 = vadd.f32 %v1689, %v1717
        %v1719 = vpop.f32.mrf.mxu0
        %v1720 = vadd.f32 %v1691, %v1719
        %1721 = vmatmul.bf16.gmra.mxu0 %v962
        %v1722 = vpop.f32.mrf.mxu0
        %v1723 = vadd.f32 %v1694, %v1722
        %v1724 = vpop.f32.mrf.mxu0
        %v1725 = vadd.f32 %v1696, %v1724
        %1726 = vdwg.mxu0
        %1727 = vmatpush.bf16.msra.mxu0 %v1464
        %1728 = vmatpush.bf16.msra.mxu0 %v1463
        %1729 = vmatpush.bf16.msra.mxu0 %v1462
        %1730 = vmatpush.bf16.msra.mxu0 %v1461
        %1731 = vmatpush.bf16.msra.mxu0 %v1460
        %1732 = vmatpush.bf16.msra.mxu0 %v1459
        %1733 = vmatpush.bf16.msra.mxu0 %v1458
        %1734 = vmatpush.bf16.msra.mxu0 %v1457
        %1735 = vmatmul.bf16.gmra.mxu0 %v882
        %v1736 = vpop.f32.mrf.mxu0
        %v1737 = vadd.f32 %v1708, %v1736
        %v1738 = vpop.f32.mrf.mxu0
        %v1739 = vadd.f32 %v1710, %v1738
        %1740 = vmatmul.bf16.gmra.mxu0 %v883
        %v1741 = vpop.f32.mrf.mxu0
        %v1742 = vadd.f32 %v1713, %v1741
        %v1743 = vpop.f32.mrf.mxu0
        %v1744 = vadd.f32 %v1715, %v1743
        %1745 = vmatmul.bf16.gmra.mxu0 %v884
        %v1746 = vpop.f32.mrf.mxu0
        %v1747 = vadd.f32 %v1718, %v1746
        %v1748 = vpop.f32.mrf.mxu0
        %v1749 = vadd.f32 %v1720, %v1748
        %1750 = vmatmul.bf16.gmra.mxu0 %v967
        %v1751 = vpop.f32.mrf.mxu0
        %v1752 = vadd.f32 %v1723, %v1751
        %v1753 = vpop.f32.mrf.mxu0
        %v1754 = vadd.f32 %v1725, %v1753
        %1755 = vdwg.mxu0
        %1756 = vmatpush.bf16.msra.mxu0 %v1472
        %1757 = vmatpush.bf16.msra.mxu0 %v1471
        %1758 = vmatpush.bf16.msra.mxu0 %v1470
        %1759 = vmatpush.bf16.msra.mxu0 %v1469
        %1760 = vmatpush.bf16.msra.mxu0 %v1468
        %1761 = vmatpush.bf16.msra.mxu0 %v1467
        %1762 = vmatpush.bf16.msra.mxu0 %v1466
        %1763 = vmatpush.bf16.msra.mxu0 %v1465
        %1764 = vmatmul.bf16.gmra.mxu0 %v906
        %v1765 = vpop.f32.mrf.mxu0
        %v1766 = vadd.f32 %v1737, %v1765
        %v1767 = vpop.f32.mrf.mxu0
        %v1768 = vadd.f32 %v1739, %v1767
        %1769 = vmatmul.bf16.gmra.mxu0 %v907
        %v1770 = vpop.f32.mrf.mxu0
        %v1771 = vadd.f32 %v1742, %v1770
        %v1772 = vpop.f32.mrf.mxu0
        %v1773 = vadd.f32 %v1744, %v1772
        %1774 = vmatmul.bf16.gmra.mxu0 %v908
        %v1775 = vpop.f32.mrf.mxu0
        %v1776 = vadd.f32 %v1747, %v1775
        %v1777 = vpop.f32.mrf.mxu0
        %v1778 = vadd.f32 %v1749, %v1777
        %1779 = vmatmul.bf16.gmra.mxu0 %v969
        %v1780 = vpop.f32.mrf.mxu0
        %v1781 = vadd.f32 %v1752, %v1780
        %v1782 = vpop.f32.mrf.mxu0
        %v1783 = vadd.f32 %v1754, %v1782
        %1784 = vdwg.mxu0
        %1785 = vmatpush.bf16.msra.mxu0 %v1480
        %1786 = vmatpush.bf16.msra.mxu0 %v1479
        %1787 = vmatpush.bf16.msra.mxu0 %v1478
        %1788 = vmatpush.bf16.msra.mxu0 %v1477
        %1789 = vmatpush.bf16.msra.mxu0 %v1476
        %1790 = vmatpush.bf16.msra.mxu0 %v1475
        %1791 = vmatpush.bf16.msra.mxu0 %v1474
        %1792 = vmatpush.bf16.msra.mxu0 %v1473
        %1793 = vmatmul.bf16.gmra.mxu0 %v930
        %v1794 = vpop.f32.mrf.mxu0
        %v1795 = vadd.f32 %v1766, %v1794
        %v1796 = vpop.f32.mrf.mxu0
        %v1797 = vadd.f32 %v1768, %v1796
        %1798 = vmatmul.bf16.gmra.mxu0 %v931
        %v1799 = vpop.f32.mrf.mxu0
        %v1800 = vadd.f32 %v1771, %v1799
        %v1801 = vpop.f32.mrf.mxu0
        %v1802 = vadd.f32 %v1773, %v1801
        %1803 = vmatmul.bf16.gmra.mxu0 %v932
        %v1804 = vpop.f32.mrf.mxu0
        %v1805 = vadd.f32 %v1776, %v1804
        %v1806 = vpop.f32.mrf.mxu0
        %v1807 = vadd.f32 %v1778, %v1806
        %1808 = vmatmul.bf16.gmra.mxu0 %v971
        %v1809 = vpop.f32.mrf.mxu0
        %v1810 = vadd.f32 %v1781, %v1809
        %v1811 = vpop.f32.mrf.mxu0
        %v1812 = vadd.f32 %v1783, %v1811
        %1813 = vdwg.mxu0
        %v1814 = vmax.f32 %v1795, 0.0
        %v1815 = vmax.f32 %v1797, 0.0
        %v1816 = vmax.f32 %v1800, 0.0
        %v1817 = vmax.f32 %v1802, 0.0
        %v1818 = vmax.f32 %v1805, 0.0
        %v1819 = vmax.f32 %v1807, 0.0
        %v1820 = vmax.f32 %v1810, 0.0
        %v1821 = vmax.f32 %v1812, 0.0
        %v1829 = vrot.slane %v1814, 7
        %v1830 = vrot.slane %v1815, 7
        %v1831 = vrot.slane %v1816, 7
        %v1832 = vrot.slane %v1817, 7
        %v1833 = vrot.slane %v1818, 7
        %v1834 = vrot.slane %v1819, 7
        %v1835 = vrot.slane %v1820, 7
        %v1843 = vsel %vm797, 0.0, %v1829
        %v1844 = vsel %vm797, 0.0, %v1830
        %v1845 = vsel %vm797, 0.0, %v1831
        %v1846 = vsel %vm797, 0.0, %v1832
        %v1847 = vsel %vm797, 0.0, %v1833
        %v1848 = vsel %vm797, 0.0, %v1834
        %v1849 = vsel %vm797, 0.0, %v1835
        %v1850 = vpack.c.bf16 %v1843, %v1843
        %v1851 = vpack.c.bf16 %v1844, %v1844
        %v1852 = vpack.c.bf16 %v1845, %v1845
        %v1853 = vpack.c.bf16 %v1846, %v1846
        %v1854 = vpack.c.bf16 %v1847, %v1847
        %v1855 = vpack.c.bf16 %v1848, %v1848
        %v1856 = vpack.c.bf16 %v1849, %v1849
        %v1857 = vpack.c.bf16 %v1814, %v1814
        %v1858 = vpack.c.bf16 %v1815, %v1815
        %v1859 = vpack.c.bf16 %v1816, %v1816
        %v1860 = vpack.c.bf16 %v1817, %v1817
        %v1861 = vpack.c.bf16 %v1818, %v1818
        %v1862 = vpack.c.bf16 %v1819, %v1819
        %v1863 = vpack.c.bf16 %v1820, %v1820
        %v1864 = vrot.slane %v1814, 1
        %v1865 = vrot.slane %v1815, 1
        %v1866 = vrot.slane %v1816, 1
        %v1867 = vrot.slane %v1817, 1
        %v1868 = vrot.slane %v1818, 1
        %v1869 = vrot.slane %v1819, 1
        %v1870 = vrot.slane %v1820, 1
        %v1878 = vsel %vm838, %v1864, 0.0
        %v1879 = vsel %vm838, %v1865, 0.0
        %v1880 = vsel %vm838, %v1866, 0.0
        %v1881 = vsel %vm838, %v1867, 0.0
        %v1882 = vsel %vm838, %v1868, 0.0
        %v1883 = vsel %vm838, %v1869, 0.0
        %v1884 = vsel %vm838, %v1870, 0.0
        %v1885 = vpack.c.bf16 %v1878, %v1878
        %v1886 = vpack.c.bf16 %v1879, %v1879
        %v1887 = vpack.c.bf16 %v1880, %v1880
        %v1888 = vpack.c.bf16 %v1881, %v1881
        %v1889 = vpack.c.bf16 %v1882, %v1882
        %v1890 = vpack.c.bf16 %v1883, %v1883
        %v1891 = vpack.c.bf16 %v1884, %v1884
        %v1893 = vrot.slane %v1821, 7
        %v1895 = vsel %vm797, 0.0, %v1893
        %v1896 = vpack.c.bf16 %v1895, %v1895
        %v1897 = vpack.c.bf16 %v1821, %v1821
        %v1898 = vrot.slane %v1821, 1
        %v1900 = vsel %vm838, %v1898, 0.0
        %v1901 = vpack.c.bf16 %v1900, %v1900
        %v1909 = vunpack.c.l.b16 %v1850
        %v1910 = vunpack.c.l.b16 %v1851
        %v1911 = vunpack.c.l.b16 %v1852
        %v1912 = vunpack.c.l.b16 %v1853
        %v1913 = vunpack.c.l.b16 %v1854
        %v1914 = vunpack.c.l.b16 %v1855
        %v1915 = vunpack.c.l.b16 %v1856
        %v1916 = vpack.c.b16 %v1909, %v873
        %v1917 = vpack.c.b16 %v1911, %v1910
        %v1918 = vpack.c.b16 %v1913, %v1912
        %v1919 = vpack.c.b16 %v1915, %v1914
        %v1931 = vunpack.c.l.b16 %v1857
        %v1932 = vunpack.c.l.b16 %v1858
        %v1933 = vunpack.c.l.b16 %v1859
        %v1934 = vunpack.c.l.b16 %v1860
        %v1935 = vunpack.c.l.b16 %v1861
        %v1936 = vunpack.c.l.b16 %v1862
        %v1937 = vunpack.c.l.b16 %v1863
        %v1938 = vpack.c.b16 %v1931, %v897
        %v1939 = vpack.c.b16 %v1933, %v1932
        %v1940 = vpack.c.b16 %v1935, %v1934
        %v1941 = vpack.c.b16 %v1937, %v1936
        %v1953 = vunpack.c.l.b16 %v1885
        %v1954 = vunpack.c.l.b16 %v1886
        %v1955 = vunpack.c.l.b16 %v1887
        %v1956 = vunpack.c.l.b16 %v1888
        %v1957 = vunpack.c.l.b16 %v1889
        %v1958 = vunpack.c.l.b16 %v1890
        %v1959 = vunpack.c.l.b16 %v1891
        %v1960 = vpack.c.b16 %v1953, %v921
        %v1961 = vpack.c.b16 %v1955, %v1954
        %v1962 = vpack.c.b16 %v1957, %v1956
        %v1963 = vpack.c.b16 %v1959, %v1958
        %v1969 = vunpack.c.l.b16 %v1896
        %v1970 = vpack.c.b16 %v1910, %v1909
        %v1971 = vpack.c.b16 %v1912, %v1911
        %v1972 = vpack.c.b16 %v1914, %v1913
        %v1973 = vpack.c.b16 %v1969, %v1915
        %v1979 = vunpack.c.l.b16 %v1897
        %v1980 = vpack.c.b16 %v1932, %v1931
        %v1981 = vpack.c.b16 %v1934, %v1933
        %v1982 = vpack.c.b16 %v1936, %v1935
        %v1983 = vpack.c.b16 %v1979, %v1937
        %v1989 = vunpack.c.l.b16 %v1901
        %v1990 = vpack.c.b16 %v1954, %v1953
        %v1991 = vpack.c.b16 %v1956, %v1955
        %v1992 = vpack.c.b16 %v1958, %v1957
        %v1993 = vpack.c.b16 %v1989, %v1959
        %v1998 = vpack.c.b16 %v873, %v1969
        %v2000 = vpack.c.b16 %v897, %v1979
        %v2002 = vpack.c.b16 %v921, %v1989
        %v2004 = vld [vmem:[%s587] sm:$0xf]
        %v2005 = vld [vmem:[%s587 + $0x4] sm:$0xf]
        %v2006 = vld [vmem:[%s587 + $0x8] sm:$0xf]
        %v2007 = vld [vmem:[%s587 + $0xc] sm:$0xf]
        %v2008 = vld [vmem:[%s587 + $0x10] sm:$0xf]
        %v2009 = vld [vmem:[%s587 + $0x14] sm:$0xf]
        %v2010 = vld [vmem:[%s587 + $0x18] sm:$0xf]
        %v2011 = vld [vmem:[%s587 + $0x1c] sm:$0xf]
        %v2012 = vld [vmem:[%s587 + $0x20] sm:$0xf]
        %v2013 = vld [vmem:[%s587 + $0x24] sm:$0xf]
        %v2014 = vld [vmem:[%s587 + $0x28] sm:$0xf]
        %v2015 = vld [vmem:[%s587 + $0x2c] sm:$0xf]
        %v2016 = vld [vmem:[%s587 + $0x30] sm:$0xf]
        %v2017 = vld [vmem:[%s587 + $0x34] sm:$0xf]
        %v2018 = vld [vmem:[%s587 + $0x38] sm:$0xf]
        %v2019 = vld [vmem:[%s587 + $0x3c] sm:$0xf]
        %v2020 = vld [vmem:[%s587 + $0x40] sm:$0xf]
        %v2021 = vld [vmem:[%s587 + $0x44] sm:$0xf]
        %v2022 = vld [vmem:[%s587 + $0x48] sm:$0xf]
        %v2023 = vld [vmem:[%s587 + $0x4c] sm:$0xf]
        %v2024 = vld [vmem:[%s587 + $0x50] sm:$0xf]
        %v2025 = vld [vmem:[%s587 + $0x54] sm:$0xf]
        %v2026 = vld [vmem:[%s587 + $0x58] sm:$0xf]
        %v2027 = vld [vmem:[%s587 + $0x5c] sm:$0xf]
        %v2028 = vld [vmem:[%s587 + $0x60] sm:$0xf]
        %v2029 = vld [vmem:[%s587 + $0x64] sm:$0xf]
        %v2030 = vld [vmem:[%s587 + $0x68] sm:$0xf]
        %v2031 = vld [vmem:[%s587 + $0x6c] sm:$0xf]
        %v2032 = vld [vmem:[%s587 + $0x70] sm:$0xf]
        %v2033 = vld [vmem:[%s587 + $0x74] sm:$0xf]
        %v2034 = vld [vmem:[%s587 + $0x78] sm:$0xf]
        %v2035 = vld [vmem:[%s587 + $0x7c] sm:$0xf]
        %v2036 = vld [vmem:[%s587 + $0x80] sm:$0xf]
        %v2037 = vld [vmem:[%s587 + $0x84] sm:$0xf]
        %v2038 = vld [vmem:[%s587 + $0x88] sm:$0xf]
        %v2039 = vld [vmem:[%s587 + $0x8c] sm:$0xf]
        %v2040 = vld [vmem:[%s587 + $0x90] sm:$0xf]
        %v2041 = vld [vmem:[%s587 + $0x94] sm:$0xf]
        %v2042 = vld [vmem:[%s587 + $0x98] sm:$0xf]
        %v2043 = vld [vmem:[%s587 + $0x9c] sm:$0xf]
        %v2044 = vld [vmem:[%s587 + $0xa0] sm:$0xf]
        %v2045 = vld [vmem:[%s587 + $0xa4] sm:$0xf]
        %v2046 = vld [vmem:[%s587 + $0xa8] sm:$0xf]
        %v2047 = vld [vmem:[%s587 + $0xac] sm:$0xf]
        %v2048 = vld [vmem:[%s587 + $0xb0] sm:$0xf]
        %v2049 = vld [vmem:[%s587 + $0xb4] sm:$0xf]
        %v2050 = vld [vmem:[%s587 + $0xb8] sm:$0xf]
        %v2051 = vld [vmem:[%s587 + $0xbc] sm:$0xf]
        %v2052 = vld [vmem:[%s587 + $0xc0] sm:$0xf]
        %v2053 = vld [vmem:[%s587 + $0xc4] sm:$0xf]
        %v2054 = vld [vmem:[%s587 + $0xc8] sm:$0xf]
        %v2055 = vld [vmem:[%s587 + $0xcc] sm:$0xf]
        %v2056 = vld [vmem:[%s587 + $0xd0] sm:$0xf]
        %v2057 = vld [vmem:[%s587 + $0xd4] sm:$0xf]
        %v2058 = vld [vmem:[%s587 + $0xd8] sm:$0xf]
        %v2059 = vld [vmem:[%s587 + $0xdc] sm:$0xf]
        %v2060 = vld [vmem:[%s587 + $0xe0] sm:$0xf]
        %v2061 = vld [vmem:[%s587 + $0xe4] sm:$0xf]
        %v2062 = vld [vmem:[%s587 + $0xe8] sm:$0xf]
        %v2063 = vld [vmem:[%s587 + $0xec] sm:$0xf]
        %v2064 = vld [vmem:[%s587 + $0xf0] sm:$0xf]
        %v2065 = vld [vmem:[%s587 + $0xf4] sm:$0xf]
        %v2066 = vld [vmem:[%s587 + $0xf8] sm:$0xf]
        %v2067 = vld [vmem:[%s587 + $0xfc] sm:$0xf]
        %v2068 = vld [vmem:[%s587 + $0x100] sm:$0xf]
        %v2069 = vld [vmem:[%s587 + $0x104] sm:$0xf]
        %v2070 = vld [vmem:[%s587 + $0x108] sm:$0xf]
        %v2071 = vld [vmem:[%s587 + $0x10c] sm:$0xf]
        %v2072 = vld [vmem:[%s587 + $0x110] sm:$0xf]
        %v2073 = vld [vmem:[%s587 + $0x114] sm:$0xf]
        %v2074 = vld [vmem:[%s587 + $0x118] sm:$0xf]
        %v2075 = vld [vmem:[%s587 + $0x11c] sm:$0xf]
        %v2076 = vld [vmem:[%s587 + $0x120] sm:$0xf]
        %v2077 = vld [vmem:[%s587 + $0x124] sm:$0xf]
        %v2078 = vld [vmem:[%s587 + $0x128] sm:$0xf]
        %v2079 = vld [vmem:[%s587 + $0x12c] sm:$0xf]
        %v2080 = vld [vmem:[%s587 + $0x130] sm:$0xf]
        %v2081 = vld [vmem:[%s587 + $0x134] sm:$0xf]
        %v2082 = vld [vmem:[%s587 + $0x138] sm:$0xf]
        %v2083 = vld [vmem:[%s587 + $0x13c] sm:$0xf]
        %v2084 = vld [vmem:[%s587 + $0x140] sm:$0xf]
        %v2085 = vld [vmem:[%s587 + $0x144] sm:$0xf]
        %v2086 = vld [vmem:[%s587 + $0x148] sm:$0xf]
        %v2087 = vld [vmem:[%s587 + $0x14c] sm:$0xf]
        %v2088 = vld [vmem:[%s587 + $0x150] sm:$0xf]
        %v2089 = vld [vmem:[%s587 + $0x154] sm:$0xf]
        %v2090 = vld [vmem:[%s587 + $0x158] sm:$0xf]
        %v2091 = vld [vmem:[%s587 + $0x15c] sm:$0xf]
        %v2092 = vld [vmem:[%s587 + $0x160] sm:$0xf]
        %v2093 = vld [vmem:[%s587 + $0x164] sm:$0xf]
        %v2094 = vld [vmem:[%s587 + $0x168] sm:$0xf]
        %v2095 = vld [vmem:[%s587 + $0x16c] sm:$0xf]
        %v2096 = vld [vmem:[%s587 + $0x170] sm:$0xf]
        %v2097 = vld [vmem:[%s587 + $0x174] sm:$0xf]
        %v2098 = vld [vmem:[%s587 + $0x178] sm:$0xf]
        %v2099 = vld [vmem:[%s587 + $0x17c] sm:$0xf]
        %v2100 = vld [vmem:[%s587 + $0x180] sm:$0xf]
        %v2101 = vld [vmem:[%s587 + $0x184] sm:$0xf]
        %v2102 = vld [vmem:[%s587 + $0x188] sm:$0xf]
        %v2103 = vld [vmem:[%s587 + $0x18c] sm:$0xf]
        %v2104 = vld [vmem:[%s587 + $0x190] sm:$0xf]
        %v2105 = vld [vmem:[%s587 + $0x194] sm:$0xf]
        %v2106 = vld [vmem:[%s587 + $0x198] sm:$0xf]
        %v2107 = vld [vmem:[%s587 + $0x19c] sm:$0xf]
        %v2108 = vld [vmem:[%s587 + $0x1a0] sm:$0xf]
        %v2109 = vld [vmem:[%s587 + $0x1a4] sm:$0xf]
        %v2110 = vld [vmem:[%s587 + $0x1a8] sm:$0xf]
        %v2111 = vld [vmem:[%s587 + $0x1ac] sm:$0xf]
        %v2112 = vld [vmem:[%s587 + $0x1b0] sm:$0xf]
        %v2113 = vld [vmem:[%s587 + $0x1b4] sm:$0xf]
        %v2114 = vld [vmem:[%s587 + $0x1b8] sm:$0xf]
        %v2115 = vld [vmem:[%s587 + $0x1bc] sm:$0xf]
        %v2116 = vld [vmem:[%s587 + $0x1c0] sm:$0xf]
        %v2117 = vld [vmem:[%s587 + $0x1c4] sm:$0xf]
        %v2118 = vld [vmem:[%s587 + $0x1c8] sm:$0xf]
        %v2119 = vld [vmem:[%s587 + $0x1cc] sm:$0xf]
        %v2120 = vld [vmem:[%s587 + $0x1d0] sm:$0xf]
        %v2121 = vld [vmem:[%s587 + $0x1d4] sm:$0xf]
        %v2122 = vld [vmem:[%s587 + $0x1d8] sm:$0xf]
        %v2123 = vld [vmem:[%s587 + $0x1dc] sm:$0xf]
        %v2124 = vld [vmem:[%s587 + $0x1e0] sm:$0xf]
        %v2125 = vld [vmem:[%s587 + $0x1e4] sm:$0xf]
        %v2126 = vld [vmem:[%s587 + $0x1e8] sm:$0xf]
        %v2127 = vld [vmem:[%s587 + $0x1ec] sm:$0xf]
        %v2128 = vld [vmem:[%s587 + $0x1f0] sm:$0xf]
        %v2129 = vld [vmem:[%s587 + $0x1f4] sm:$0xf]
        %v2130 = vld [vmem:[%s587 + $0x1f8] sm:$0xf]
        %v2131 = vld [vmem:[%s587 + $0x1fc] sm:$0xf]
        %v2132 = vld [vmem:[%s587 + $0x200] sm:$0xf]
        %v2133 = vld [vmem:[%s587 + $0x204] sm:$0xf]
        %v2134 = vld [vmem:[%s587 + $0x208] sm:$0xf]
        %v2135 = vld [vmem:[%s587 + $0x20c] sm:$0xf]
        %v2136 = vld [vmem:[%s587 + $0x210] sm:$0xf]
        %v2137 = vld [vmem:[%s587 + $0x214] sm:$0xf]
        %v2138 = vld [vmem:[%s587 + $0x218] sm:$0xf]
        %v2139 = vld [vmem:[%s587 + $0x21c] sm:$0xf]
        %v2140 = vld [vmem:[%s587 + $0x220] sm:$0xf]
        %v2141 = vld [vmem:[%s587 + $0x224] sm:$0xf]
        %v2142 = vld [vmem:[%s587 + $0x228] sm:$0xf]
        %v2143 = vld [vmem:[%s587 + $0x22c] sm:$0xf]
        %v2144 = vld [vmem:[%s587 + $0x230] sm:$0xf]
        %v2145 = vld [vmem:[%s587 + $0x234] sm:$0xf]
        %v2146 = vld [vmem:[%s587 + $0x238] sm:$0xf]
        %v2147 = vld [vmem:[%s587 + $0x23c] sm:$0xf]
        %v2148 = vld [vmem:[%s596] sm:$0x1]
        %v2150 = vperm.slane %v2148, 0
        %v2296 = vunpack.c.l.b16 %v2004
        %v2297 = vunpack.c.l.b16 %v2005
        %v2298 = vunpack.c.l.b16 %v2006
        %v2299 = vunpack.c.l.b16 %v2007
        %v2300 = vunpack.c.l.b16 %v2008
        %v2301 = vunpack.c.l.b16 %v2009
        %v2302 = vunpack.c.l.b16 %v2010
        %v2303 = vunpack.c.l.b16 %v2011
        %v2304 = vunpack.c.l.b16 %v2012
        %v2305 = vunpack.c.l.b16 %v2013
        %v2306 = vunpack.c.l.b16 %v2014
        %v2307 = vunpack.c.l.b16 %v2015
        %v2308 = vunpack.c.l.b16 %v2016
        %v2309 = vunpack.c.l.b16 %v2017
        %v2310 = vunpack.c.l.b16 %v2018
        %v2311 = vunpack.c.l.b16 %v2019
        %v2312 = vunpack.c.l.b16 %v2020
        %v2313 = vunpack.c.l.b16 %v2021
        %v2314 = vunpack.c.l.b16 %v2022
        %v2315 = vunpack.c.l.b16 %v2023
        %v2316 = vunpack.c.l.b16 %v2024
        %v2317 = vunpack.c.l.b16 %v2025
        %v2318 = vunpack.c.l.b16 %v2026
        %v2319 = vunpack.c.l.b16 %v2027
        %v2320 = vunpack.c.l.b16 %v2028
        %v2321 = vunpack.c.l.b16 %v2029
        %v2322 = vunpack.c.l.b16 %v2030
        %v2323 = vunpack.c.l.b16 %v2031
        %v2324 = vunpack.c.l.b16 %v2032
        %v2325 = vunpack.c.l.b16 %v2033
        %v2326 = vunpack.c.l.b16 %v2034
        %v2327 = vunpack.c.l.b16 %v2035
        %v2328 = vunpack.c.l.b16 %v2036
        %v2329 = vunpack.c.l.b16 %v2037
        %v2330 = vunpack.c.l.b16 %v2038
        %v2331 = vunpack.c.l.b16 %v2039
        %v2332 = vunpack.c.l.b16 %v2040
        %v2333 = vunpack.c.l.b16 %v2041
        %v2334 = vunpack.c.l.b16 %v2042
        %v2335 = vunpack.c.l.b16 %v2043
        %v2336 = vunpack.c.l.b16 %v2044
        %v2337 = vunpack.c.l.b16 %v2045
        %v2338 = vunpack.c.l.b16 %v2046
        %v2339 = vunpack.c.l.b16 %v2047
        %v2340 = vunpack.c.l.b16 %v2048
        %v2341 = vunpack.c.l.b16 %v2049
        %v2342 = vunpack.c.l.b16 %v2050
        %v2343 = vunpack.c.l.b16 %v2051
        %v2344 = vunpack.c.l.b16 %v2052
        %v2345 = vunpack.c.l.b16 %v2053
        %v2346 = vunpack.c.l.b16 %v2054
        %v2347 = vunpack.c.l.b16 %v2055
        %v2348 = vunpack.c.l.b16 %v2056
        %v2349 = vunpack.c.l.b16 %v2057
        %v2350 = vunpack.c.l.b16 %v2058
        %v2351 = vunpack.c.l.b16 %v2059
        %v2352 = vunpack.c.l.b16 %v2060
        %v2353 = vunpack.c.l.b16 %v2061
        %v2354 = vunpack.c.l.b16 %v2062
        %v2355 = vunpack.c.l.b16 %v2063
        %v2356 = vunpack.c.l.b16 %v2064
        %v2357 = vunpack.c.l.b16 %v2065
        %v2358 = vunpack.c.l.b16 %v2066
        %v2359 = vunpack.c.l.b16 %v2067
        %v2360 = vunpack.c.l.b16 %v2068
        %v2361 = vunpack.c.l.b16 %v2069
        %v2362 = vunpack.c.l.b16 %v2070
        %v2363 = vunpack.c.l.b16 %v2071
        %v2364 = vunpack.c.l.b16 %v2072
        %v2365 = vunpack.c.l.b16 %v2073
        %v2366 = vunpack.c.l.b16 %v2074
        %v2367 = vunpack.c.l.b16 %v2075
        %v2368 = vunpack.c.l.b16 %v2076
        %v2369 = vunpack.c.l.b16 %v2077
        %v2370 = vunpack.c.l.b16 %v2078
        %v2371 = vunpack.c.l.b16 %v2079
        %v2372 = vunpack.c.l.b16 %v2080
        %v2373 = vunpack.c.l.b16 %v2081
        %v2374 = vunpack.c.l.b16 %v2082
        %v2375 = vunpack.c.l.b16 %v2083
        %v2376 = vunpack.c.l.b16 %v2084
        %v2377 = vunpack.c.l.b16 %v2085
        %v2378 = vunpack.c.l.b16 %v2086
        %v2379 = vunpack.c.l.b16 %v2087
        %v2380 = vunpack.c.l.b16 %v2088
        %v2381 = vunpack.c.l.b16 %v2089
        %v2382 = vunpack.c.l.b16 %v2090
        %v2383 = vunpack.c.l.b16 %v2091
        %v2384 = vunpack.c.l.b16 %v2092
        %v2385 = vunpack.c.l.b16 %v2093
        %v2386 = vunpack.c.l.b16 %v2094
        %v2387 = vunpack.c.l.b16 %v2095
        %v2388 = vunpack.c.l.b16 %v2096
        %v2389 = vunpack.c.l.b16 %v2097
        %v2390 = vunpack.c.l.b16 %v2098
        %v2391 = vunpack.c.l.b16 %v2099
        %v2392 = vunpack.c.l.b16 %v2100
        %v2393 = vunpack.c.l.b16 %v2101
        %v2394 = vunpack.c.l.b16 %v2102
        %v2395 = vunpack.c.l.b16 %v2103
        %v2396 = vunpack.c.l.b16 %v2104
        %v2397 = vunpack.c.l.b16 %v2105
        %v2398 = vunpack.c.l.b16 %v2106
        %v2399 = vunpack.c.l.b16 %v2107
        %v2400 = vunpack.c.l.b16 %v2108
        %v2401 = vunpack.c.l.b16 %v2109
        %v2402 = vunpack.c.l.b16 %v2110
        %v2403 = vunpack.c.l.b16 %v2111
        %v2404 = vunpack.c.l.b16 %v2112
        %v2405 = vunpack.c.l.b16 %v2113
        %v2406 = vunpack.c.l.b16 %v2114
        %v2407 = vunpack.c.l.b16 %v2115
        %v2408 = vunpack.c.l.b16 %v2116
        %v2409 = vunpack.c.l.b16 %v2117
        %v2410 = vunpack.c.l.b16 %v2118
        %v2411 = vunpack.c.l.b16 %v2119
        %v2412 = vunpack.c.l.b16 %v2120
        %v2413 = vunpack.c.l.b16 %v2121
        %v2414 = vunpack.c.l.b16 %v2122
        %v2415 = vunpack.c.l.b16 %v2123
        %v2416 = vunpack.c.l.b16 %v2124
        %v2417 = vunpack.c.l.b16 %v2125
        %v2418 = vunpack.c.l.b16 %v2126
        %v2419 = vunpack.c.l.b16 %v2127
        %v2420 = vunpack.c.l.b16 %v2128
        %v2421 = vunpack.c.l.b16 %v2129
        %v2422 = vunpack.c.l.b16 %v2130
        %v2423 = vunpack.c.l.b16 %v2131
        %v2424 = vunpack.c.l.b16 %v2132
        %v2425 = vunpack.c.l.b16 %v2133
        %v2426 = vunpack.c.l.b16 %v2134
        %v2427 = vunpack.c.l.b16 %v2135
        %v2428 = vunpack.c.l.b16 %v2136
        %v2429 = vunpack.c.l.b16 %v2137
        %v2430 = vunpack.c.l.b16 %v2138
        %v2431 = vunpack.c.l.b16 %v2139
        %v2432 = vunpack.c.l.b16 %v2140
        %v2433 = vunpack.c.l.b16 %v2141
        %v2434 = vunpack.c.l.b16 %v2142
        %v2435 = vunpack.c.l.b16 %v2143
        %v2436 = vunpack.c.l.b16 %v2144
        %v2437 = vunpack.c.l.b16 %v2145
        %v2438 = vunpack.c.l.b16 %v2146
        %v2439 = vunpack.c.l.b16 %v2147
        %v2440 = vpack.c.b16 %v2297, %v2296
        %v2441 = vpack.c.b16 %v2299, %v2298
        %v2442 = vpack.c.b16 %v2301, %v2300
        %v2443 = vpack.c.b16 %v2303, %v2302
        %v2444 = vpack.c.b16 %v2305, %v2304
        %v2445 = vpack.c.b16 %v2307, %v2306
        %v2446 = vpack.c.b16 %v2309, %v2308
        %v2447 = vpack.c.b16 %v2311, %v2310
        %v2448 = vpack.c.b16 %v2313, %v2312
        %v2449 = vpack.c.b16 %v2315, %v2314
        %v2450 = vpack.c.b16 %v2317, %v2316
        %v2451 = vpack.c.b16 %v2319, %v2318
        %v2452 = vpack.c.b16 %v2321, %v2320
        %v2453 = vpack.c.b16 %v2323, %v2322
        %v2454 = vpack.c.b16 %v2325, %v2324
        %v2455 = vpack.c.b16 %v2327, %v2326
        %v2456 = vpack.c.b16 %v2329, %v2328
        %v2457 = vpack.c.b16 %v2331, %v2330
        %v2458 = vpack.c.b16 %v2333, %v2332
        %v2459 = vpack.c.b16 %v2335, %v2334
        %v2460 = vpack.c.b16 %v2337, %v2336
        %v2461 = vpack.c.b16 %v2339, %v2338
        %v2462 = vpack.c.b16 %v2341, %v2340
        %v2463 = vpack.c.b16 %v2343, %v2342
        %v2464 = vpack.c.b16 %v2345, %v2344
        %v2465 = vpack.c.b16 %v2347, %v2346
        %v2466 = vpack.c.b16 %v2349, %v2348
        %v2467 = vpack.c.b16 %v2351, %v2350
        %v2468 = vpack.c.b16 %v2353, %v2352
        %v2469 = vpack.c.b16 %v2355, %v2354
        %v2470 = vpack.c.b16 %v2357, %v2356
        %v2471 = vpack.c.b16 %v2359, %v2358
        %v2472 = vpack.c.b16 %v2361, %v2360
        %v2473 = vpack.c.b16 %v2363, %v2362
        %v2474 = vpack.c.b16 %v2365, %v2364
        %v2475 = vpack.c.b16 %v2367, %v2366
        %v2476 = vpack.c.b16 %v2369, %v2368
        %v2477 = vpack.c.b16 %v2371, %v2370
        %v2478 = vpack.c.b16 %v2373, %v2372
        %v2479 = vpack.c.b16 %v2375, %v2374
        %v2480 = vpack.c.b16 %v2377, %v2376
        %v2481 = vpack.c.b16 %v2379, %v2378
        %v2482 = vpack.c.b16 %v2381, %v2380
        %v2483 = vpack.c.b16 %v2383, %v2382
        %v2484 = vpack.c.b16 %v2385, %v2384
        %v2485 = vpack.c.b16 %v2387, %v2386
        %v2486 = vpack.c.b16 %v2389, %v2388
        %v2487 = vpack.c.b16 %v2391, %v2390
        %v2488 = vpack.c.b16 %v2393, %v2392
        %v2489 = vpack.c.b16 %v2395, %v2394
        %v2490 = vpack.c.b16 %v2397, %v2396
        %v2491 = vpack.c.b16 %v2399, %v2398
        %v2492 = vpack.c.b16 %v2401, %v2400
        %v2493 = vpack.c.b16 %v2403, %v2402
        %v2494 = vpack.c.b16 %v2405, %v2404
        %v2495 = vpack.c.b16 %v2407, %v2406
        %v2496 = vpack.c.b16 %v2409, %v2408
        %v2497 = vpack.c.b16 %v2411, %v2410
        %v2498 = vpack.c.b16 %v2413, %v2412
        %v2499 = vpack.c.b16 %v2415, %v2414
        %v2500 = vpack.c.b16 %v2417, %v2416
        %v2501 = vpack.c.b16 %v2419, %v2418
        %v2502 = vpack.c.b16 %v2421, %v2420
        %v2503 = vpack.c.b16 %v2423, %v2422
        %v2504 = vpack.c.b16 %v2425, %v2424
        %v2505 = vpack.c.b16 %v2427, %v2426
        %v2506 = vpack.c.b16 %v2429, %v2428
        %v2507 = vpack.c.b16 %v2431, %v2430
        %v2508 = vpack.c.b16 %v2433, %v2432
        %v2509 = vpack.c.b16 %v2435, %v2434
        %v2510 = vpack.c.b16 %v2437, %v2436
        %v2511 = vpack.c.b16 %v2439, %v2438
        %2584 = vmatpush.bf16.msra.mxu0 %v2447
        %2585 = vmatpush.bf16.msra.mxu0 %v2446
        %2586 = vmatpush.bf16.msra.mxu0 %v2445
        %2587 = vmatpush.bf16.msra.mxu0 %v2444
        %2588 = vmatpush.bf16.msra.mxu0 %v2443
        %2589 = vmatpush.bf16.msra.mxu0 %v2442
        %2590 = vmatpush.bf16.msra.mxu0 %v2441
        %2591 = vmatpush.bf16.msra.mxu0 %v2440
        %2592 = vmatmul.bf16.gmra.mxu0 %v1916
        %v2593 = vpop.f32.mrf.mxu0
        %v2594 = vadd.f32 %v2150, %v2593
        %v2595 = vpop.f32.mrf.mxu0
        %v2596 = vadd.f32 %v2150, %v2595
        %2597 = vmatmul.bf16.gmra.mxu0 %v1917
        %v2598 = vpop.f32.mrf.mxu0
        %v2599 = vadd.f32 %v2150, %v2598
        %v2600 = vpop.f32.mrf.mxu0
        %v2601 = vadd.f32 %v2150, %v2600
        %2602 = vmatmul.bf16.gmra.mxu0 %v1918
        %v2603 = vpop.f32.mrf.mxu0
        %v2604 = vadd.f32 %v2150, %v2603
        %v2605 = vpop.f32.mrf.mxu0
        %v2606 = vadd.f32 %v2150, %v2605
        %2607 = vmatmul.bf16.gmra.mxu0 %v1919
        %v2608 = vpop.f32.mrf.mxu0
        %v2609 = vadd.f32 %v2150, %v2608
        %v2610 = vpop.f32.mrf.mxu0
        %v2611 = vadd.f32 %v2150, %v2610
        %2612 = vdwg.mxu0
        %2613 = vmatpush.bf16.msra.mxu0 %v2455
        %2614 = vmatpush.bf16.msra.mxu0 %v2454
        %2615 = vmatpush.bf16.msra.mxu0 %v2453
        %2616 = vmatpush.bf16.msra.mxu0 %v2452
        %2617 = vmatpush.bf16.msra.mxu0 %v2451
        %2618 = vmatpush.bf16.msra.mxu0 %v2450
        %2619 = vmatpush.bf16.msra.mxu0 %v2449
        %2620 = vmatpush.bf16.msra.mxu0 %v2448
        %2621 = vmatmul.bf16.gmra.mxu0 %v1938
        %v2622 = vpop.f32.mrf.mxu0
        %v2623 = vadd.f32 %v2594, %v2622
        %v2624 = vpop.f32.mrf.mxu0
        %v2625 = vadd.f32 %v2596, %v2624
        %2626 = vmatmul.bf16.gmra.mxu0 %v1939
        %v2627 = vpop.f32.mrf.mxu0
        %v2628 = vadd.f32 %v2599, %v2627
        %v2629 = vpop.f32.mrf.mxu0
        %v2630 = vadd.f32 %v2601, %v2629
        %2631 = vmatmul.bf16.gmra.mxu0 %v1940
        %v2632 = vpop.f32.mrf.mxu0
        %v2633 = vadd.f32 %v2604, %v2632
        %v2634 = vpop.f32.mrf.mxu0
        %v2635 = vadd.f32 %v2606, %v2634
        %2636 = vmatmul.bf16.gmra.mxu0 %v1941
        %v2637 = vpop.f32.mrf.mxu0
        %v2638 = vadd.f32 %v2609, %v2637
        %v2639 = vpop.f32.mrf.mxu0
        %v2640 = vadd.f32 %v2611, %v2639
        %2641 = vdwg.mxu0
        %2642 = vmatpush.bf16.msra.mxu0 %v2463
        %2643 = vmatpush.bf16.msra.mxu0 %v2462
        %2644 = vmatpush.bf16.msra.mxu0 %v2461
        %2645 = vmatpush.bf16.msra.mxu0 %v2460
        %2646 = vmatpush.bf16.msra.mxu0 %v2459
        %2647 = vmatpush.bf16.msra.mxu0 %v2458
        %2648 = vmatpush.bf16.msra.mxu0 %v2457
        %2649 = vmatpush.bf16.msra.mxu0 %v2456
        %2650 = vmatmul.bf16.gmra.mxu0 %v1960
        %v2651 = vpop.f32.mrf.mxu0
        %v2652 = vadd.f32 %v2623, %v2651
        %v2653 = vpop.f32.mrf.mxu0
        %v2654 = vadd.f32 %v2625, %v2653
        %2655 = vmatmul.bf16.gmra.mxu0 %v1961
        %v2656 = vpop.f32.mrf.mxu0
        %v2657 = vadd.f32 %v2628, %v2656
        %v2658 = vpop.f32.mrf.mxu0
        %v2659 = vadd.f32 %v2630, %v2658
        %2660 = vmatmul.bf16.gmra.mxu0 %v1962
        %v2661 = vpop.f32.mrf.mxu0
        %v2662 = vadd.f32 %v2633, %v2661
        %v2663 = vpop.f32.mrf.mxu0
        %v2664 = vadd.f32 %v2635, %v2663
        %2665 = vmatmul.bf16.gmra.mxu0 %v1963
        %v2666 = vpop.f32.mrf.mxu0
        %v2667 = vadd.f32 %v2638, %v2666
        %v2668 = vpop.f32.mrf.mxu0
        %v2669 = vadd.f32 %v2640, %v2668
        %2670 = vdwg.mxu0
        %2671 = vmatpush.bf16.msra.mxu0 %v2471
        %2672 = vmatpush.bf16.msra.mxu0 %v2470
        %2673 = vmatpush.bf16.msra.mxu0 %v2469
        %2674 = vmatpush.bf16.msra.mxu0 %v2468
        %2675 = vmatpush.bf16.msra.mxu0 %v2467
        %2676 = vmatpush.bf16.msra.mxu0 %v2466
        %2677 = vmatpush.bf16.msra.mxu0 %v2465
        %2678 = vmatpush.bf16.msra.mxu0 %v2464
        %2679 = vmatmul.bf16.gmra.mxu0 %v1970
        %v2680 = vpop.f32.mrf.mxu0
        %v2681 = vadd.f32 %v2652, %v2680
        %v2682 = vpop.f32.mrf.mxu0
        %v2683 = vadd.f32 %v2654, %v2682
        %2684 = vmatmul.bf16.gmra.mxu0 %v1971
        %v2685 = vpop.f32.mrf.mxu0
        %v2686 = vadd.f32 %v2657, %v2685
        %v2687 = vpop.f32.mrf.mxu0
        %v2688 = vadd.f32 %v2659, %v2687
        %2689 = vmatmul.bf16.gmra.mxu0 %v1972
        %v2690 = vpop.f32.mrf.mxu0
        %v2691 = vadd.f32 %v2662, %v2690
        %v2692 = vpop.f32.mrf.mxu0
        %v2693 = vadd.f32 %v2664, %v2692
        %2694 = vmatmul.bf16.gmra.mxu0 %v1973
        %v2695 = vpop.f32.mrf.mxu0
        %v2696 = vadd.f32 %v2667, %v2695
        %v2697 = vpop.f32.mrf.mxu0
        %v2698 = vadd.f32 %v2669, %v2697
        %2699 = vdwg.mxu0
        %2700 = vmatpush.bf16.msra.mxu0 %v2479
        %2701 = vmatpush.bf16.msra.mxu0 %v2478
        %2702 = vmatpush.bf16.msra.mxu0 %v2477
        %2703 = vmatpush.bf16.msra.mxu0 %v2476
        %2704 = vmatpush.bf16.msra.mxu0 %v2475
        %2705 = vmatpush.bf16.msra.mxu0 %v2474
        %2706 = vmatpush.bf16.msra.mxu0 %v2473
        %2707 = vmatpush.bf16.msra.mxu0 %v2472
        %2708 = vmatmul.bf16.gmra.mxu0 %v1980
        %v2709 = vpop.f32.mrf.mxu0
        %v2710 = vadd.f32 %v2681, %v2709
        %v2711 = vpop.f32.mrf.mxu0
        %v2712 = vadd.f32 %v2683, %v2711
        %2713 = vmatmul.bf16.gmra.mxu0 %v1981
        %v2714 = vpop.f32.mrf.mxu0
        %v2715 = vadd.f32 %v2686, %v2714
        %v2716 = vpop.f32.mrf.mxu0
        %v2717 = vadd.f32 %v2688, %v2716
        %2718 = vmatmul.bf16.gmra.mxu0 %v1982
        %v2719 = vpop.f32.mrf.mxu0
        %v2720 = vadd.f32 %v2691, %v2719
        %v2721 = vpop.f32.mrf.mxu0
        %v2722 = vadd.f32 %v2693, %v2721
        %2723 = vmatmul.bf16.gmra.mxu0 %v1983
        %v2724 = vpop.f32.mrf.mxu0
        %v2725 = vadd.f32 %v2696, %v2724
        %v2726 = vpop.f32.mrf.mxu0
        %v2727 = vadd.f32 %v2698, %v2726
        %2728 = vdwg.mxu0
        %2729 = vmatpush.bf16.msra.mxu0 %v2487
        %2730 = vmatpush.bf16.msra.mxu0 %v2486
        %2731 = vmatpush.bf16.msra.mxu0 %v2485
        %2732 = vmatpush.bf16.msra.mxu0 %v2484
        %2733 = vmatpush.bf16.msra.mxu0 %v2483
        %2734 = vmatpush.bf16.msra.mxu0 %v2482
        %2735 = vmatpush.bf16.msra.mxu0 %v2481
        %2736 = vmatpush.bf16.msra.mxu0 %v2480
        %2737 = vmatmul.bf16.gmra.mxu0 %v1990
        %v2738 = vpop.f32.mrf.mxu0
        %v2739 = vadd.f32 %v2710, %v2738
        %v2740 = vpop.f32.mrf.mxu0
        %v2741 = vadd.f32 %v2712, %v2740
        %2742 = vmatmul.bf16.gmra.mxu0 %v1991
        %v2743 = vpop.f32.mrf.mxu0
        %v2744 = vadd.f32 %v2715, %v2743
        %v2745 = vpop.f32.mrf.mxu0
        %v2746 = vadd.f32 %v2717, %v2745
        %2747 = vmatmul.bf16.gmra.mxu0 %v1992
        %v2748 = vpop.f32.mrf.mxu0
        %v2749 = vadd.f32 %v2720, %v2748
        %v2750 = vpop.f32.mrf.mxu0
        %v2751 = vadd.f32 %v2722, %v2750
        %2752 = vmatmul.bf16.gmra.mxu0 %v1993
        %v2753 = vpop.f32.mrf.mxu0
        %v2754 = vadd.f32 %v2725, %v2753
        %v2755 = vpop.f32.mrf.mxu0
        %v2756 = vadd.f32 %v2727, %v2755
        %2757 = vdwg.mxu0
        %2758 = vmatpush.bf16.msra.mxu0 %v2495
        %2759 = vmatpush.bf16.msra.mxu0 %v2494
        %2760 = vmatpush.bf16.msra.mxu0 %v2493
        %2761 = vmatpush.bf16.msra.mxu0 %v2492
        %2762 = vmatpush.bf16.msra.mxu0 %v2491
        %2763 = vmatpush.bf16.msra.mxu0 %v2490
        %2764 = vmatpush.bf16.msra.mxu0 %v2489
        %2765 = vmatpush.bf16.msra.mxu0 %v2488
        %2766 = vmatmul.bf16.gmra.mxu0 %v1917
        %v2767 = vpop.f32.mrf.mxu0
        %v2768 = vadd.f32 %v2739, %v2767
        %v2769 = vpop.f32.mrf.mxu0
        %v2770 = vadd.f32 %v2741, %v2769
        %2771 = vmatmul.bf16.gmra.mxu0 %v1918
        %v2772 = vpop.f32.mrf.mxu0
        %v2773 = vadd.f32 %v2744, %v2772
        %v2774 = vpop.f32.mrf.mxu0
        %v2775 = vadd.f32 %v2746, %v2774
        %2776 = vmatmul.bf16.gmra.mxu0 %v1919
        %v2777 = vpop.f32.mrf.mxu0
        %v2778 = vadd.f32 %v2749, %v2777
        %v2779 = vpop.f32.mrf.mxu0
        %v2780 = vadd.f32 %v2751, %v2779
        %2781 = vmatmul.bf16.gmra.mxu0 %v1998
        %v2782 = vpop.f32.mrf.mxu0
        %v2783 = vadd.f32 %v2754, %v2782
        %v2784 = vpop.f32.mrf.mxu0
        %v2785 = vadd.f32 %v2756, %v2784
        %2786 = vdwg.mxu0
        %2787 = vmatpush.bf16.msra.mxu0 %v2503
        %2788 = vmatpush.bf16.msra.mxu0 %v2502
        %2789 = vmatpush.bf16.msra.mxu0 %v2501
        %2790 = vmatpush.bf16.msra.mxu0 %v2500
        %2791 = vmatpush.bf16.msra.mxu0 %v2499
        %2792 = vmatpush.bf16.msra.mxu0 %v2498
        %2793 = vmatpush.bf16.msra.mxu0 %v2497
        %2794 = vmatpush.bf16.msra.mxu0 %v2496
        %2795 = vmatmul.bf16.gmra.mxu0 %v1939
        %v2796 = vpop.f32.mrf.mxu0
        %v2797 = vadd.f32 %v2768, %v2796
        %v2798 = vpop.f32.mrf.mxu0
        %v2799 = vadd.f32 %v2770, %v2798
        %2800 = vmatmul.bf16.gmra.mxu0 %v1940
        %v2801 = vpop.f32.mrf.mxu0
        %v2802 = vadd.f32 %v2773, %v2801
        %v2803 = vpop.f32.mrf.mxu0
        %v2804 = vadd.f32 %v2775, %v2803
        %2805 = vmatmul.bf16.gmra.mxu0 %v1941
        %v2806 = vpop.f32.mrf.mxu0
        %v2807 = vadd.f32 %v2778, %v2806
        %v2808 = vpop.f32.mrf.mxu0
        %v2809 = vadd.f32 %v2780, %v2808
        %2810 = vmatmul.bf16.gmra.mxu0 %v2000
        %v2811 = vpop.f32.mrf.mxu0
        %v2812 = vadd.f32 %v2783, %v2811
        %v2813 = vpop.f32.mrf.mxu0
        %v2814 = vadd.f32 %v2785, %v2813
        %2815 = vdwg.mxu0
        %2816 = vmatpush.bf16.msra.mxu0 %v2511
        %2817 = vmatpush.bf16.msra.mxu0 %v2510
        %2818 = vmatpush.bf16.msra.mxu0 %v2509
        %2819 = vmatpush.bf16.msra.mxu0 %v2508
        %2820 = vmatpush.bf16.msra.mxu0 %v2507
        %2821 = vmatpush.bf16.msra.mxu0 %v2506
        %2822 = vmatpush.bf16.msra.mxu0 %v2505
        %2823 = vmatpush.bf16.msra.mxu0 %v2504
        %2824 = vmatmul.bf16.gmra.mxu0 %v1961
        %v2825 = vpop.f32.mrf.mxu0
        %v2826 = vadd.f32 %v2797, %v2825
        %v2827 = vpop.f32.mrf.mxu0
        %v2828 = vadd.f32 %v2799, %v2827
        %2829 = vmatmul.bf16.gmra.mxu0 %v1962
        %v2830 = vpop.f32.mrf.mxu0
        %v2831 = vadd.f32 %v2802, %v2830
        %v2832 = vpop.f32.mrf.mxu0
        %v2833 = vadd.f32 %v2804, %v2832
        %2834 = vmatmul.bf16.gmra.mxu0 %v1963
        %v2835 = vpop.f32.mrf.mxu0
        %v2836 = vadd.f32 %v2807, %v2835
        %v2837 = vpop.f32.mrf.mxu0
        %v2838 = vadd.f32 %v2809, %v2837
        %2839 = vmatmul.bf16.gmra.mxu0 %v2002
        %v2840 = vpop.f32.mrf.mxu0
        %v2841 = vadd.f32 %v2812, %v2840
        %v2842 = vpop.f32.mrf.mxu0
        %v2843 = vadd.f32 %v2814, %v2842
        %2844 = vdwg.mxu0
        %v2845 = vpack.c.bf16 %v757, %v757
        %v2846 = vpack.c.bf16 %v758, %v758
        %v2847 = vpack.c.bf16 %v759, %v759
        %v2848 = vpack.c.bf16 %v760, %v760
        %v2849 = vpack.c.bf16 %v761, %v761
        %v2850 = vpack.c.bf16 %v762, %v762
        %v2851 = vpack.c.bf16 %v763, %v763
        %v2852 = vpack.c.bf16 %v764, %v764
        %v2853 = vpack.c.bf16 %v1795, %v1795
        %v2854 = vpack.c.bf16 %v1797, %v1797
        %v2855 = vpack.c.bf16 %v1800, %v1800
        %v2856 = vpack.c.bf16 %v1802, %v1802
        %v2857 = vpack.c.bf16 %v1805, %v1805
        %v2858 = vpack.c.bf16 %v1807, %v1807
        %v2859 = vpack.c.bf16 %v1810, %v1810
        %v2860 = vpack.c.bf16 %v1812, %v1812
        %v2861 = vpack.c.bf16 %v2826, %v2826
        %v2862 = vpack.c.bf16 %v2828, %v2828
        %v2863 = vpack.c.bf16 %v2831, %v2831
        %v2864 = vpack.c.bf16 %v2833, %v2833
        %v2865 = vpack.c.bf16 %v2836, %v2836
        %v2866 = vpack.c.bf16 %v2838, %v2838
        %v2867 = vpack.c.bf16 %v2841, %v2841
        %v2868 = vpack.c.bf16 %v2843, %v2843
        %v2877 = vunpack.c.l.b16 %v2845
        %v2878 = vunpack.c.l.b16 %v2846
        %v2879 = vunpack.c.l.b16 %v2847
        %v2880 = vunpack.c.l.b16 %v2848
        %v2881 = vunpack.c.l.b16 %v2849
        %v2882 = vunpack.c.l.b16 %v2850
        %v2883 = vunpack.c.l.b16 %v2851
        %v2884 = vunpack.c.l.b16 %v2852
        %v2885 = vpack.c.b16 %v2878, %v2877
        %v2886 = vpack.c.b16 %v2880, %v2879
        %v2887 = vpack.c.b16 %v2882, %v2881
        %v2888 = vpack.c.b16 %v2884, %v2883
        %v2901 = vunpack.c.l.b16 %v2853
        %v2902 = vunpack.c.l.b16 %v2854
        %v2903 = vunpack.c.l.b16 %v2855
        %v2904 = vunpack.c.l.b16 %v2856
        %v2905 = vunpack.c.l.b16 %v2857
        %v2906 = vunpack.c.l.b16 %v2858
        %v2907 = vunpack.c.l.b16 %v2859
        %v2908 = vunpack.c.l.b16 %v2860
        %v2909 = vpack.c.b16 %v2902, %v2901
        %v2910 = vpack.c.b16 %v2904, %v2903
        %v2911 = vpack.c.b16 %v2906, %v2905
        %v2912 = vpack.c.b16 %v2908, %v2907
        %v2925 = vunpack.c.l.b16 %v2861
        %v2926 = vunpack.c.l.b16 %v2862
        %v2927 = vunpack.c.l.b16 %v2863
        %v2928 = vunpack.c.l.b16 %v2864
        %v2929 = vunpack.c.l.b16 %v2865
        %v2930 = vunpack.c.l.b16 %v2866
        %v2931 = vunpack.c.l.b16 %v2867
        %v2932 = vunpack.c.l.b16 %v2868
        %v2933 = vpack.c.b16 %v2926, %v2925
        %v2934 = vpack.c.b16 %v2928, %v2927
        %v2935 = vpack.c.b16 %v2930, %v2929
        %v2936 = vpack.c.b16 %v2932, %v2931
        %v2941 = vld [vmem:[%s606] sm:$0xf]
        %v2942 = vld [vmem:[%s606 + $0x4] sm:$0xf]
        %v2943 = vld [vmem:[%s606 + $0x8] sm:$0xf]
        %v2944 = vld [vmem:[%s606 + $0xc] sm:$0xf]
        %v2945 = vld [vmem:[%s606 + $0x10] sm:$0xf]
        %v2946 = vld [vmem:[%s606 + $0x14] sm:$0xf]
        %v2947 = vld [vmem:[%s606 + $0x18] sm:$0xf]
        %v2948 = vld [vmem:[%s606 + $0x1c] sm:$0xf]
        %v2949 = vld [vmem:[%s606 + $0x20] sm:$0xf]
        %v2950 = vld [vmem:[%s606 + $0x24] sm:$0xf]
        %v2951 = vld [vmem:[%s606 + $0x28] sm:$0xf]
        %v2952 = vld [vmem:[%s606 + $0x2c] sm:$0xf]
        %v2953 = vld [vmem:[%s606 + $0x30] sm:$0xf]
        %v2954 = vld [vmem:[%s606 + $0x34] sm:$0xf]
        %v2955 = vld [vmem:[%s606 + $0x38] sm:$0xf]
        %v2956 = vld [vmem:[%s606 + $0x3c] sm:$0xf]
        %v2957 = vld [vmem:[%s606 + $0x40] sm:$0xf]
        %v2958 = vld [vmem:[%s606 + $0x44] sm:$0xf]
        %v2959 = vld [vmem:[%s606 + $0x48] sm:$0xf]
        %v2960 = vld [vmem:[%s606 + $0x4c] sm:$0xf]
        %v2961 = vld [vmem:[%s606 + $0x50] sm:$0xf]
        %v2962 = vld [vmem:[%s606 + $0x54] sm:$0xf]
        %v2963 = vld [vmem:[%s606 + $0x58] sm:$0xf]
        %v2964 = vld [vmem:[%s606 + $0x5c] sm:$0xf]
        %v2965 = vld [vmem:[%s606 + $0x60] sm:$0xf]
        %v2966 = vld [vmem:[%s606 + $0x64] sm:$0xf]
        %v2967 = vld [vmem:[%s606 + $0x68] sm:$0xf]
        %v2968 = vld [vmem:[%s606 + $0x6c] sm:$0xf]
        %v2969 = vld [vmem:[%s606 + $0x70] sm:$0xf]
        %v2970 = vld [vmem:[%s606 + $0x74] sm:$0xf]
        %v2971 = vld [vmem:[%s606 + $0x78] sm:$0xf]
        %v2972 = vld [vmem:[%s606 + $0x7c] sm:$0xf]
        %v2973 = vld [vmem:[%s606 + $0x80] sm:$0xf]
        %v2974 = vld [vmem:[%s606 + $0x84] sm:$0xf]
        %v2975 = vld [vmem:[%s606 + $0x88] sm:$0xf]
        %v2976 = vld [vmem:[%s606 + $0x8c] sm:$0xf]
        %v2977 = vld [vmem:[%s606 + $0x90] sm:$0xf]
        %v2978 = vld [vmem:[%s606 + $0x94] sm:$0xf]
        %v2979 = vld [vmem:[%s606 + $0x98] sm:$0xf]
        %v2980 = vld [vmem:[%s606 + $0x9c] sm:$0xf]
        %v2981 = vld [vmem:[%s606 + $0xa0] sm:$0xf]
        %v2982 = vld [vmem:[%s606 + $0xa4] sm:$0xf]
        %v2983 = vld [vmem:[%s606 + $0xa8] sm:$0xf]
        %v2984 = vld [vmem:[%s606 + $0xac] sm:$0xf]
        %v2985 = vld [vmem:[%s606 + $0xb0] sm:$0xf]
        %v2986 = vld [vmem:[%s606 + $0xb4] sm:$0xf]
        %v2987 = vld [vmem:[%s606 + $0xb8] sm:$0xf]
        %v2988 = vld [vmem:[%s606 + $0xbc] sm:$0xf]
        %v2989 = vld [vmem:[%s615] sm:$0x1]
        %v2991 = vperm.slane %v2989, 0
        %v3041 = vunpack.c.l.b16 %v2941
        %v3042 = vunpack.c.l.b16 %v2942
        %v3043 = vunpack.c.l.b16 %v2943
        %v3044 = vunpack.c.l.b16 %v2944
        %v3045 = vunpack.c.l.b16 %v2945
        %v3046 = vunpack.c.l.b16 %v2946
        %v3047 = vunpack.c.l.b16 %v2947
        %v3048 = vunpack.c.l.b16 %v2948
        %v3049 = vunpack.c.l.b16 %v2949
        %v3050 = vunpack.c.l.b16 %v2950
        %v3051 = vunpack.c.l.b16 %v2951
        %v3052 = vunpack.c.l.b16 %v2952
        %v3053 = vunpack.c.l.b16 %v2953
        %v3054 = vunpack.c.l.b16 %v2954
        %v3055 = vunpack.c.l.b16 %v2955
        %v3056 = vunpack.c.l.b16 %v2956
        %v3057 = vunpack.c.l.b16 %v2957
        %v3058 = vunpack.c.l.b16 %v2958
        %v3059 = vunpack.c.l.b16 %v2959
        %v3060 = vunpack.c.l.b16 %v2960
        %v3061 = vunpack.c.l.b16 %v2961
        %v3062 = vunpack.c.l.b16 %v2962
        %v3063 = vunpack.c.l.b16 %v2963
        %v3064 = vunpack.c.l.b16 %v2964
        %v3065 = vunpack.c.l.b16 %v2965
        %v3066 = vunpack.c.l.b16 %v2966
        %v3067 = vunpack.c.l.b16 %v2967
        %v3068 = vunpack.c.l.b16 %v2968
        %v3069 = vunpack.c.l.b16 %v2969
        %v3070 = vunpack.c.l.b16 %v2970
        %v3071 = vunpack.c.l.b16 %v2971
        %v3072 = vunpack.c.l.b16 %v2972
        %v3073 = vunpack.c.l.b16 %v2973
        %v3074 = vunpack.c.l.b16 %v2974
        %v3075 = vunpack.c.l.b16 %v2975
        %v3076 = vunpack.c.l.b16 %v2976
        %v3077 = vunpack.c.l.b16 %v2977
        %v3078 = vunpack.c.l.b16 %v2978
        %v3079 = vunpack.c.l.b16 %v2979
        %v3080 = vunpack.c.l.b16 %v2980
        %v3081 = vunpack.c.l.b16 %v2981
        %v3082 = vunpack.c.l.b16 %v2982
        %v3083 = vunpack.c.l.b16 %v2983
        %v3084 = vunpack.c.l.b16 %v2984
        %v3085 = vunpack.c.l.b16 %v2985
        %v3086 = vunpack.c.l.b16 %v2986
        %v3087 = vunpack.c.l.b16 %v2987
        %v3088 = vunpack.c.l.b16 %v2988
        %v3089 = vpack.c.b16 %v3042, %v3041
        %v3090 = vpack.c.b16 %v3044, %v3043
        %v3091 = vpack.c.b16 %v3046, %v3045
        %v3092 = vpack.c.b16 %v3048, %v3047
        %v3093 = vpack.c.b16 %v3050, %v3049
        %v3094 = vpack.c.b16 %v3052, %v3051
        %v3095 = vpack.c.b16 %v3054, %v3053
        %v3096 = vpack.c.b16 %v3056, %v3055
        %v3097 = vpack.c.b16 %v3058, %v3057
        %v3098 = vpack.c.b16 %v3060, %v3059
        %v3099 = vpack.c.b16 %v3062, %v3061
        %v3100 = vpack.c.b16 %v3064, %v3063
        %v3101 = vpack.c.b16 %v3066, %v3065
        %v3102 = vpack.c.b16 %v3068, %v3067
        %v3103 = vpack.c.b16 %v3070, %v3069
        %v3104 = vpack.c.b16 %v3072, %v3071
        %v3105 = vpack.c.b16 %v3074, %v3073
        %v3106 = vpack.c.b16 %v3076, %v3075
        %v3107 = vpack.c.b16 %v3078, %v3077
        %v3108 = vpack.c.b16 %v3080, %v3079
        %v3109 = vpack.c.b16 %v3082, %v3081
        %v3110 = vpack.c.b16 %v3084, %v3083
        %v3111 = vpack.c.b16 %v3086, %v3085
        %v3112 = vpack.c.b16 %v3088, %v3087
        %3137 = vmatpush.bf16.msra.mxu0 %v3096
        %3138 = vmatpush.bf16.msra.mxu0 %v3095
        %3139 = vmatpush.bf16.msra.mxu0 %v3094
        %3140 = vmatpush.bf16.msra.mxu0 %v3093
        %3141 = vmatpush.bf16.msra.mxu0 %v3092
        %3142 = vmatpush.bf16.msra.mxu0 %v3091
        %3143 = vmatpush.bf16.msra.mxu0 %v3090
        %3144 = vmatpush.bf16.msra.mxu0 %v3089
        %3145 = vmatmul.bf16.gmra.mxu0 %v2885
        %v3146 = vpop.f32.mrf.mxu0
        %v3147 = vadd.f32 %v2991, %v3146
        %v3148 = vpop.f32.mrf.mxu0
        %v3149 = vadd.f32 %v2991, %v3148
        %3150 = vmatmul.bf16.gmra.mxu0 %v2886
        %v3151 = vpop.f32.mrf.mxu0
        %v3152 = vadd.f32 %v2991, %v3151
        %v3153 = vpop.f32.mrf.mxu0
        %v3154 = vadd.f32 %v2991, %v3153
        %3155 = vmatmul.bf16.gmra.mxu0 %v2887
        %v3156 = vpop.f32.mrf.mxu0
        %v3157 = vadd.f32 %v2991, %v3156
        %v3158 = vpop.f32.mrf.mxu0
        %v3159 = vadd.f32 %v2991, %v3158
        %3160 = vmatmul.bf16.gmra.mxu0 %v2888
        %v3161 = vpop.f32.mrf.mxu0
        %v3162 = vadd.f32 %v2991, %v3161
        %v3163 = vpop.f32.mrf.mxu0
        %v3164 = vadd.f32 %v2991, %v3163
        %3165 = vdwg.mxu0
        %3166 = vmatpush.bf16.msra.mxu0 %v3104
        %3167 = vmatpush.bf16.msra.mxu0 %v3103
        %3168 = vmatpush.bf16.msra.mxu0 %v3102
        %3169 = vmatpush.bf16.msra.mxu0 %v3101
        %3170 = vmatpush.bf16.msra.mxu0 %v3100
        %3171 = vmatpush.bf16.msra.mxu0 %v3099
        %3172 = vmatpush.bf16.msra.mxu0 %v3098
        %3173 = vmatpush.bf16.msra.mxu0 %v3097
        %3174 = vmatmul.bf16.gmra.mxu0 %v2909
        %v3175 = vpop.f32.mrf.mxu0
        %v3176 = vadd.f32 %v3147, %v3175
        %v3177 = vpop.f32.mrf.mxu0
        %v3178 = vadd.f32 %v3149, %v3177
        %3179 = vmatmul.bf16.gmra.mxu0 %v2910
        %v3180 = vpop.f32.mrf.mxu0
        %v3181 = vadd.f32 %v3152, %v3180
        %v3182 = vpop.f32.mrf.mxu0
        %v3183 = vadd.f32 %v3154, %v3182
        %3184 = vmatmul.bf16.gmra.mxu0 %v2911
        %v3185 = vpop.f32.mrf.mxu0
        %v3186 = vadd.f32 %v3157, %v3185
        %v3187 = vpop.f32.mrf.mxu0
        %v3188 = vadd.f32 %v3159, %v3187
        %3189 = vmatmul.bf16.gmra.mxu0 %v2912
        %v3190 = vpop.f32.mrf.mxu0
        %v3191 = vadd.f32 %v3162, %v3190
        %v3192 = vpop.f32.mrf.mxu0
        %v3193 = vadd.f32 %v3164, %v3192
        %3194 = vdwg.mxu0
        %3195 = vmatpush.bf16.msra.mxu0 %v3112
        %3196 = vmatpush.bf16.msra.mxu0 %v3111
        %3197 = vmatpush.bf16.msra.mxu0 %v3110
        %3198 = vmatpush.bf16.msra.mxu0 %v3109
        %3199 = vmatpush.bf16.msra.mxu0 %v3108
        %3200 = vmatpush.bf16.msra.mxu0 %v3107
        %3201 = vmatpush.bf16.msra.mxu0 %v3106
        %3202 = vmatpush.bf16.msra.mxu0 %v3105
        %3203 = vmatmul.bf16.gmra.mxu0 %v2933
        %v3204 = vpop.f32.mrf.mxu0
        %v3205 = vadd.f32 %v3176, %v3204
        %v3206 = vpop.f32.mrf.mxu0
        %v3207 = vadd.f32 %v3178, %v3206
        %3208 = vmatmul.bf16.gmra.mxu0 %v2934
        %v3209 = vpop.f32.mrf.mxu0
        %v3210 = vadd.f32 %v3181, %v3209
        %v3211 = vpop.f32.mrf.mxu0
        %v3212 = vadd.f32 %v3183, %v3211
        %3213 = vmatmul.bf16.gmra.mxu0 %v2935
        %v3214 = vpop.f32.mrf.mxu0
        %v3215 = vadd.f32 %v3186, %v3214
        %v3216 = vpop.f32.mrf.mxu0
        %v3217 = vadd.f32 %v3188, %v3216
        %3218 = vmatmul.bf16.gmra.mxu0 %v2936
        %v3219 = vpop.f32.mrf.mxu0
        %v3220 = vadd.f32 %v3191, %v3219
        %v3221 = vpop.f32.mrf.mxu0
        %v3222 = vadd.f32 %v3193, %v3221
        %3223 = vdwg.mxu0
        %v3224 = vadd.f32 %v3205, %v3207
        %v3225 = vadd.f32 %v3224, %v3210
        %v3226 = vadd.f32 %v3225, %v3212
        %v3227 = vadd.f32 %v3226, %v3215
        %v3228 = vadd.f32 %v3227, %v3217
        %v3229 = vadd.f32 %v3228, %v3220
        %v3230 = vadd.f32 %v3229, %v3222
        %v3231 = vrot.slane %v3230, 4
        %v3232 = vadd.f32 %v3230, %v3231
        %v3233 = vrot.slane %v3232, 2
        %v3234 = vadd.f32 %v3232, %v3233
        %v3235 = vrot.slane %v3234, 1
        %v3236 = vadd.f32 %v3234, %v3235
        %v3237 = vrcp.pop 64.0
        %v3238 = vmul.f32 64.0, %v3237
        %v3239 = vsub.f32 1.0, %v3238
        %v3240 = vmul.f32 %v3237, %v3239
        %v3241 = vadd.f32 %v3237, %v3240
        %vm3242 = vweird.f32 %v3237
        %v3243 = vsel %vm3242, %v3237, %v3241
        %v3244 = vmul.f32 %v3236, %v3243
        %v3245 = vld [vmem:[%s624] sm:$0x1]
        %v3246 = vmul.f32 %v3244, %v3245
        %v3247 = vsel %vm797, %v3246, 0.0
        %3248 = vadd.xlane.f32.xlu0 %v3247
        %v3249 = vpop.xlane.xlu0 %3248
        %v3250 = vld [vmem:[%s731] sm:$0x1]
        %v3251 = vadd.f32 %v3249, %v3250
        %v3252 = vmax.f32 %v3251, 0.0
        %v3253 = vld [vmem:[%s633] sm:$0x1]
        %3255 = vset.pattern.permute.xlu0 0
        %3256 = vperm.xlu0 %3255, %v3252
        %v3257 = vpop.permute.xlu0 %3256
        %v3259 = vmul.f32 %v3257, %v3253
        %v3260 = vadd.f32 %v3259, 0.0
        %v3261 = vld [vmem:[%s642] sm:$0x1]
        %v3262 = vadd.f32 %v3260, %v3261
        %v3263 = vxor.u32 %v3262, 2147483648
        %v3264 = vmul.f32 %v3263, 1.442695
        %v3265 = vpow.pop %v3264
        %v3266 = vadd.f32 %v3265, 1.0
        %v3267 = vrcp.pop %v3266
        %v3268 = vmul.f32 %v3266, %v3267
        %v3269 = vsub.f32 1.0, %v3268
        %v3270 = vmul.f32 %v3267, %v3269
        %v3271 = vadd.f32 %v3267, %v3270
        %vm3272 = vweird.f32 %v3266
        %vm3273 = vweird.f32 %v3267
        %vm3274 = vmor %vm3272, %vm3273
        %v3275 = vsel %vm3274, %v3267, %v3271
        %v3276 = vand.u32 2147483647, %v3266
        %vm3277 = vcmp.eq.f32.partialorder %v3276, 8.507059e+37
        %v3278 = vand.u32 %v3266, 2147483648
        %v3279 = vor.u32 1.1754944e-38, %v3278
        %v3280 = vsel %vm3277, %v3279, %v3275
        %v3281 = vmul.f32 1.0, %v3280
        %v3282 = vadd.f32 %v757, %v737
        %v3283 = vadd.f32 %v758, %v738
        %v3284 = vadd.f32 %v759, %v739
        %v3285 = vadd.f32 %v760, %v740
        %v3286 = vadd.f32 %v761, %v741
        %v3287 = vadd.f32 %v762, %v742
        %v3288 = vadd.f32 %v763, %v743
        %v3289 = vadd.f32 %v764, %v744
        %v3290 = vperm.slane %v3281, 0
        %v3291 = vmul.f32 %v3205, %v3290
        %v3292 = vmul.f32 %v3207, %v3290
        %v3293 = vmul.f32 %v3210, %v3290
        %v3294 = vmul.f32 %v3212, %v3290
        %v3295 = vmul.f32 %v3215, %v3290
        %v3296 = vmul.f32 %v3217, %v3290
        %v3297 = vmul.f32 %v3220, %v3290
        %v3298 = vmul.f32 %v3222, %v3290
        %v3299 = vadd.f32 %v3282, %v3291
        %v3300 = vadd.f32 %v3283, %v3292
        %v3301 = vadd.f32 %v3284, %v3293
        %v3302 = vadd.f32 %v3285, %v3294
        %v3303 = vadd.f32 %v3286, %v3295
        %v3304 = vadd.f32 %v3287, %v3296
        %v3305 = vadd.f32 %v3288, %v3297
        %v3306 = vadd.f32 %v3289, %v3298
        %3307 = vst [vmem:[#allocation2] sm:$0xff] %v3299
        %3308 = vst [vmem:[#allocation2 + $0x8] sm:$0xff] %v3300
        %3309 = vst [vmem:[#allocation2 + $0x10] sm:$0xff] %v3301
        %3310 = vst [vmem:[#allocation2 + $0x18] sm:$0xff] %v3302
        %3311 = vst [vmem:[#allocation2 + $0x20] sm:$0xff] %v3303
        %3312 = vst [vmem:[#allocation2 + $0x28] sm:$0xff] %v3304
        %3313 = vst [vmem:[#allocation2 + $0x30] sm:$0xff] %v3305
        %3314 = vst [vmem:[#allocation2 + $0x38] sm:$0xff] %v3306
        %p3315 = scmp.eq.s32.totalorder %s42, 4
        // Predicated region
        $region105: #{run.1} parent=63 // pred_check
          %p3316 = pneg %p3315
        $region106: #{run.1} parent=63 // pred_check_branch
          %3318 = sbr.rel (%p3316) target = $region108
        $region107: #{run.1} parent=63 // pred_region
          %3319 = vst [vmem:[%s736] sm:$0xff] %v3299
          %3320 = vst [vmem:[%s736 + $0x8] sm:$0xff] %v3300
          %3321 = vst [vmem:[%s736 + $0x10] sm:$0xff] %v3301
          %3322 = vst [vmem:[%s736 + $0x18] sm:$0xff] %v3302
          %3323 = vst [vmem:[%s736 + $0x20] sm:$0xff] %v3303
          %3324 = vst [vmem:[%s736 + $0x28] sm:$0xff] %v3304
          %3325 = vst [vmem:[%s736 + $0x30] sm:$0xff] %v3305
          %3326 = vst [vmem:[%s736 + $0x38] sm:$0xff] %v3306
        $region108: #{run.1} parent=63 // pred_fallthru
          _
        %p3327 = scmp.lt.s32.totalorder %s41, 1
        %s3328 = scalar_select %p3327, %s41, 1
        %s3329 = smul.addr %s3328, 8
        %s3330 = smul.addr %s3329, 8
        %s3331 = scalar_lea.vmem %s11, %s3330
        // Predicated region
        $region109: #{run.1} parent=63 // pred_check
          %p3332 = pneg %p353
        $region110: #{run.1} parent=63 // pred_check_branch
          %3334 = sbr.rel (%p3332) target = $region112
        $region111: #{run.1} parent=63 // pred_region
          _
        $region112: #{run.1} parent=63 // pred_fallthru
          _
      $region64: #{run.1} parent=5 // pred_fallthru
        _
      %p3335 = scmp.le.s32.totalorder 2, %s32
      // Predicated region
      $region113: #{run.1} parent=5 // pred_check
        %p3336 = pneg %p3335
      $region114: #{run.1} parent=5 // pred_check_branch
        %3338 = sbr.rel (%p3336) target = $region116
      $region115: #{run.1} parent=5 // pred_region
        %s3339 = ssub.s32 %s32, 2
        // Predicated region
        $region117: #{run.1} parent=115 // pred_check
          %p3340 = pneg %p359
        $region118: #{run.1} parent=115 // pred_check_branch
          %3342 = sbr.rel (%p3340) target = $region120
        $region119: #{run.1} parent=115 // pred_region
          %p3343 = scmp.lt.s32.totalorder %s43, 1
          %s3344 = scalar_select %p3343, %s43, 1
          %s3345 = smul.addr %s3344, 8
          %s3346 = smul.addr %s3345, 8
          %s3347 = scalar_lea.vmem %s11, %s3346
        $region120: #{run.1} parent=115 // pred_fallthru
          _
      $region116: #{run.1} parent=5 // pred_fallthru
        _
    $region6: #{run.1} parent=1 // loop_footer
      %s36 = sadd.s32 1, %s32
    $region7: #{run.1} parent=1 // loop_footer_branch
      %31 = sbr.rel target = $region3
    $region8: #{run.1} parent=1 // loop_exit
      _
    %3348 = vsyncpa [#allocation4], 1
    %s3349 = scalar_lea.sflag [#allocation4], 1
    %3350 = vsyncpa %s3349, 1
    %3351 = vsyncpa [#allocation6], 1
    %s3352 = scalar_lea.sflag [#allocation6], 1
    %3353 = vsyncpa %s3352, 1
    %3354 = vsyncpa [#allocation9], 1
    %s3355 = scalar_lea.sflag [#allocation9], 1
    %3356 = vsyncpa %s3355, 1
    %3357 = vsyncpa [#allocation12], 1
    %s3358 = scalar_lea.sflag [#allocation12], 1
    %3359 = vsyncpa %s3358, 1
    %3360 = vsyncpa [#allocation15], 1
    %s3361 = scalar_lea.sflag [#allocation15], 1
    %3362 = vsyncpa %s3361, 1

</llo_original>
